<compile_context>
chip_gen: v7x
topology: tpu7x:2x2x1
jax: 0.10.0
libtpu: 0.0.40
codegen_flags: <defaults>
</compile_context>

<pallas_src>
import functools
import math
import numpy as np
import jax
import jax.numpy as jnp
from jax.experimental import pallas as pl
from jax.experimental.pallas import tpu as pltpu

# ----------------------------- configuration ------------------------------
HIDDEN = 32          # args.hidden_dim
ALPHABET = 4         # alphabet_size
SEQ_LEN = 64         # sequence length L
BATCH = 2
NUM_STACKS = 1       # args.num_cnn_stacks
NUM_LAYERS = 5 * NUM_STACKS
DILATIONS = (1, 1, 4, 16, 64)
KSIZE = 9
PAD0 = (KSIZE - 1) // 2          # 4
LN_EPS = 1e-5
A_PAD = 8                        # alphabet padded to f32 sublane granularity


# ------------------------------ Pallas kernel ------------------------------
def cnn_kernel(t_ref, seq_ref,
               wf_ref, tew_ref, teb_ref,
               linw_ref, linb_ref,
               convw_ref, convb_ref,
               tlw_ref, tlb_ref,
               lng_ref, lnb_ref,
               f1w_ref, f1b_ref,
               f2w_ref, f2b_ref,
               out_ref, *, seq_len):
    H = tew_ref.shape[0]
    M = seq_ref.shape[1]              # B * L, sequence+batch live on lanes
    L = seq_len

    # lane position within each length-L batch segment
    lane_l = jax.lax.broadcasted_iota(jnp.int32, (1, M), 1) % L

    def shifted(x, o):
        """col m <- x[:, m + o] within its length-L segment, zero outside."""
        if o == 0:
            return x
        r = pltpu.roll(x, (-o) % M, 1)          # r[:, m] == x[:, (m + o) % M]
        valid = (lane_l < (L - o)) if o > 0 else (lane_l >= (-o))
        return jnp.where(valid, r, 0.0)         # mask zero-pad / cross-batch spill

    # --- time embedding: GaussianFourierProjection -> Linear -> ReLU, plus ALL 5
    #     time_layers Dense projections fused; computed lane-dense so the result is
    #     already the hoisted per-lane bias slab te_big (5H, M). -------------------
    xproj = wf_ref[...] * t_ref[...] * (2.0 * math.pi)                 # (H/2, M)
    gfp = jnp.concatenate([jnp.sin(xproj), jnp.cos(xproj)], axis=0)    # (H, M)
    temb = jnp.maximum(
        jnp.dot(tew_ref[...], gfp, preferred_element_type=jnp.float32)
        + teb_ref[...], 0.0)                                           # (H, M)
    te_big = jnp.dot(tlw_ref[...], temb,
                     preferred_element_type=jnp.float32) + tlb_ref[...]  # (5H, M)

    # --- input conv: Conv1d(A -> H, k=9, pad=4) as ONE fused matmul --------------
    x0 = seq_ref[...]                                                  # (A_pad, M)
    stacked = jnp.concatenate([shifted(x0, k - PAD0) for k in range(KSIZE)],
                              axis=0)                                  # (9*A_pad, M)
    feat = jnp.maximum(
        jnp.dot(linw_ref[...], stacked, preferred_element_type=jnp.float32)
        + linb_ref[...], 0.0)                                          # (H, M)

    # --- 5 dilated residual conv blocks (unrolled) --------------------------------
    # TODO(synk): dropout is eval-mode identity here (args.dropout ignored).
    for i in range(NUM_LAYERS):
        d = DILATIONS[i % 5]
        h = feat + te_big[i * H:(i + 1) * H, :]                        # time bias

        # LayerNorm over channels (channels live on sublanes)
        mu = jnp.mean(h, axis=0, keepdims=True)
        var = jnp.mean((h - mu) ** 2, axis=0, keepdims=True)
        hn = (h - mu) * jax.lax.rsqrt(var + LN_EPS)
        hn = hn * lng_ref[i * H:(i + 1) * H, :] + lnb_ref[i * H:(i + 1) * H, :]

        # dilated Conv1d(H -> H, k=9, dilation=d): tap shifts via pltpu.roll along
        # lanes + iota mask; all 9 taps fused into one (H, 9H) @ (9H, M) MXU call.
        # Taps whose receptive field is entirely zero pad become zero blocks
        # (no roll issued, no weight slicing needed).
        parts = []
        for k in range(KSIZE):
            o = (k - PAD0) * d
            parts.append(shifted(hn, o) if abs(o) < L else jnp.zeros_like(hn))
        stacked = jnp.concatenate(parts, axis=0)                       # (9H, M)
        acc = jnp.dot(convw_ref[i], stacked,
                      preferred_element_type=jnp.float32) \
              + convb_ref[i * H:(i + 1) * H, :]
        feat = jnp.maximum(acc, 0.0) + feat                            # ReLU + res

    # --- final head: 1x1 conv -> ReLU -> 1x1 conv; lane-dense (A, M) store --------
    z = jnp.maximum(
        jnp.dot(f1w_ref[...], feat, preferred_element_type=jnp.float32)
        + f1b_ref[...], 0.0)                                           # (H, M)
    out_ref[...] = jnp.dot(f2w_ref[...], z,
                           preferred_element_type=jnp.float32) + f2b_ref[...]


# ------------------------------- wrapper -----------------------------------
def cnn_forward(seq, t, params):
    B, L, A = seq.shape
    H = HIDDEN
    M = B * L

    # channels-on-sublanes / sequence-on-lanes operands (layout plumbing only)
    seq_t = jnp.transpose(seq, (2, 0, 1)).reshape(A, M).astype(jnp.float32)
    seq_t = jnp.pad(seq_t, ((0, A_PAD - A), (0, 0)))                   # (A_pad, M)
    t_big = jnp.repeat(t.astype(jnp.float32), L).reshape(1, M)         # per-lane t

    wf_col = params['wf'].reshape(H // 2, 1)
    tew_t = params['tew'].T                                            # (out, in)
    teb_col = params['teb'].reshape(H, 1)

    linw_p = jnp.pad(params['linw'], ((0, 0), (0, A_PAD - A), (0, 0)))  # (K,A_pad,H)
    linw_t = jnp.transpose(linw_p, (2, 0, 1)).reshape(H, KSIZE * A_PAD)
    linb_col = params['linb'].reshape(H, 1)

    # (NL,K,Cin,Cout) -> (NL, Cout, K*Cin), tap order matching the stacked operand
    convw_t = jnp.transpose(params['convw'], (0, 3, 1, 2)).reshape(
        NUM_LAYERS, H, KSIZE * H)
    convb_col = params['convb'].reshape(NUM_LAYERS * H, 1)

    tlw_t = jnp.transpose(params['tlw'], (0, 2, 1)).reshape(NUM_LAYERS * H, H)
    tlb_col = params['tlb'].reshape(NUM_LAYERS * H, 1)
    lng_col = params['lng'].reshape(NUM_LAYERS * H, 1)
    lnb_col = params['lnb'].reshape(NUM_LAYERS * H, 1)

    f1w_t = params['f1w'].T
    f1b_col = params['f1b'].reshape(H, 1)
    f2w_t = params['f2w'].T
    f2b_col = params['f2b'].reshape(A, 1)

    vmem = pl.BlockSpec(memory_space=pltpu.MemorySpace.VMEM)
    out_t = pl.pallas_call(
        functools.partial(cnn_kernel, seq_len=L),
        in_specs=[vmem] * 17,
        out_specs=vmem,
        out_shape=jax.ShapeDtypeStruct((A, M), jnp.float32),
    )(t_big, seq_t,
      wf_col, tew_t, teb_col,
      linw_t, linb_col,
      convw_t, convb_col,
      tlw_t, tlb_col,
      lng_col, lnb_col,
      f1w_t, f1b_col, f2w_t, f2b_col)

    # back to (B, L, A) outside the kernel
    return jnp.transpose(out_t.reshape(A, B, L), (1, 2, 0))


# --------------------- deterministic parameter init ------------------------
def init_params(key):
    ks = jax.random.split(key, 16)

    def n(k, shape, scale=0.1):
        return jax.random.normal(k, shape, jnp.float32) * scale

    p = {}
    p['wf'] = n(ks[0], (1, HIDDEN // 2), 30.0)          # GaussianFourierProjection.W
    p['tew'] = n(ks[1], (HIDDEN, HIDDEN))               # time_embedder Linear (in,out)
    p['teb'] = n(ks[2], (1, HIDDEN))
    p['linw'] = n(ks[3], (KSIZE, ALPHABET, HIDDEN))     # input conv (K,Cin,Cout)
    p['linb'] = n(ks[4], (1, HIDDEN))
    p['convw'] = n(ks[5], (NUM_LAYERS, KSIZE, HIDDEN, HIDDEN), 0.05)
    p['convb'] = n(ks[6], (NUM_LAYERS, HIDDEN))
    p['tlw'] = n(ks[7], (NUM_LAYERS, HIDDEN, HIDDEN))   # time_layers Dense (in,out)
    p['tlb'] = n(ks[8], (NUM_LAYERS, HIDDEN))
    p['lng'] = 1.0 + n(ks[9], (NUM_LAYERS, HIDDEN), 0.01)
    p['lnb'] = n(ks[10], (NUM_LAYERS, HIDDEN), 0.01)
    p['f1w'] = n(ks[11], (HIDDEN, HIDDEN))              # final 1x1 conv #1
    p['f1b'] = n(ks[12], (1, HIDDEN))
    p['f2w'] = n(ks[13], (HIDDEN, ALPHABET))            # final 1x1 conv #2
    p['f2b'] = n(ks[14], (1, ALPHABET))
    return p


# ------------------------- pure-JAX reference ------------------------------
def _conv1d_ref(x, w, b, d):
    # x: (B, L, Cin), w: (K, Cin, Cout)  ("same" padding for kernel 9)
    p = d * (w.shape[0] - 1) // 2
    y = jax.lax.conv_general_dilated(
        x, w, window_strides=(1,), padding=[(p, p)], rhs_dilation=(d,),
        dimension_numbers=('NWC', 'WIO', 'NWC'),
        precision=jax.lax.Precision.HIGHEST)
    return y + b


def reference_forward(seq, t, params):
    xproj = t[:, None] * params['wf'][0][None, :] * 2.0 * np.pi
    gfp = jnp.concatenate([jnp.sin(xproj), jnp.cos(xproj)], axis=-1)
    time_emb = jax.nn.relu(gfp @ params['tew'] + params['teb'])
    feat = jax.nn.relu(_conv1d_ref(seq, params['linw'], params['linb'], 1))
    for i in range(NUM_LAYERS):
        d = DILATIONS[i % 5]
        h = feat + (time_emb @ params['tlw'][i] + params['tlb'][i])[:, None, :]
        mu = h.mean(-1, keepdims=True)
        var = ((h - mu) ** 2).mean(-1, keepdims=True)
        hn = (h - mu) / jnp.sqrt(var + LN_EPS) * params['lng'][i] + params['lnb'][i]
        h = jax.nn.relu(_conv1d_ref(hn, params['convw'][i],
                                    params['convb'][i:i + 1], d))
        feat = h + feat
    z = jax.nn.relu(feat @ params['f1w'] + params['f1b'])
    return z @ params['f2w'] + params['f2b']


# ---------------------------------- main ------------------------------------
if __name__ == "__main__":
    key = jax.random.PRNGKey(0)
    kp, ks, kt = jax.random.split(key, 3)
    params = init_params(kp)

    # simplex-style input (B, L, alphabet) and timesteps (B,)
    seq = jax.nn.softmax(jax.random.normal(ks, (BATCH, SEQ_LEN, ALPHABET),
                                           jnp.float32), axis=-1)
    t = jax.random.uniform(kt, (BATCH,), jnp.float32)

    out = jax.block_until_ready(cnn_forward(seq, t, params))
    ref = reference_forward(seq, t, params)

    np.testing.assert_allclose(np.asarray(out), np.asarray(ref),
                               rtol=2e-2, atol=2e-2)
    assert out.shape == (BATCH, SEQ_LEN, ALPHABET)
    print("KERNEL_OK")
</pallas_src>

<mosaic_0001>
module attributes {stable_mosaic.version = 11 : i64} {
  func.func @cnn_kernel(%arg0: memref<1x128xf32, #tpu.memory_space<vmem>>, %arg1: memref<8x128xf32, #tpu.memory_space<vmem>>, %arg2: memref<16x1xf32, #tpu.memory_space<vmem>>, %arg3: memref<32x32xf32, #tpu.memory_space<vmem>>, %arg4: memref<32x1xf32, #tpu.memory_space<vmem>>, %arg5: memref<32x72xf32, #tpu.memory_space<vmem>>, %arg6: memref<32x1xf32, #tpu.memory_space<vmem>>, %arg7: memref<5x32x288xf32, #tpu.memory_space<vmem>>, %arg8: memref<160x1xf32, #tpu.memory_space<vmem>>, %arg9: memref<160x32xf32, #tpu.memory_space<vmem>>, %arg10: memref<160x1xf32, #tpu.memory_space<vmem>>, %arg11: memref<160x1xf32, #tpu.memory_space<vmem>>, %arg12: memref<160x1xf32, #tpu.memory_space<vmem>>, %arg13: memref<32x32xf32, #tpu.memory_space<vmem>>, %arg14: memref<32x1xf32, #tpu.memory_space<vmem>>, %arg15: memref<4x32xf32, #tpu.memory_space<vmem>>, %arg16: memref<4x1xf32, #tpu.memory_space<vmem>>, %arg17: memref<4x128xf32, #tpu.memory_space<vmem>>) attributes {dimension_semantics = [], scalar_prefetch = 0 : i64, scratch_operands = 0 : i64, tpu.core_type = #tpu.core_type<tc>} {
    %0 = tpu.iota {dimensions = array<i32: 1>} : vector<1x128xi32>
    %c64_i32 = arith.constant 64 : i32
    %c0_i32 = arith.constant 0 : i32
    %1 = arith.cmpi eq, %c64_i32, %c0_i32 : i32
    %c1_i32 = arith.constant 1 : i32
    %2 = arith.select %1, %c1_i32, %c64_i32 : i32
    %3 = vector.broadcast %2 : i32 to vector<1x128xi32>
    %4 = arith.remsi %0, %3 : vector<1x128xi32>
    %c0_i32_0 = arith.constant 0 : i32
    %5 = vector.broadcast %c0_i32_0 : i32 to vector<1x128xi32>
    %6 = arith.cmpi ne, %4, %5 : vector<1x128xi32>
    %c0_i32_1 = arith.constant 0 : i32
    %7 = vector.broadcast %c0_i32_1 : i32 to vector<1x128xi32>
    %8 = arith.cmpi slt, %4, %7 : vector<1x128xi32>
    %c0_i32_2 = arith.constant 0 : i32
    %9 = arith.cmpi slt, %2, %c0_i32_2 : i32
    %10 = vector.broadcast %9 : i1 to vector<1x128xi1>
    %11 = vector.broadcast %10 : vector<1x128xi1> to vector<1x128xi1>
    %12 = arith.xori %8, %11 : vector<1x128xi1>
    %13 = arith.andi %12, %6 : vector<1x128xi1>
    %14 = vector.broadcast %2 : i32 to vector<1x128xi32>
    %15 = arith.addi %4, %14 : vector<1x128xi32>
    %16 = arith.select %13, %15, %4 : vector<1x128xi1>, vector<1x128xi32>
    %c0 = arith.constant 0 : index
    %c0_3 = arith.constant 0 : index
    %17 = vector.load %arg2[%c0, %c0_3] : memref<16x1xf32, #tpu.memory_space<vmem>>, vector<16x1xf32>
    %c0_4 = arith.constant 0 : index
    %c0_5 = arith.constant 0 : index
    %18 = vector.load %arg0[%c0_4, %c0_5] : memref<1x128xf32, #tpu.memory_space<vmem>>, vector<1x128xf32>
    %19 = vector.broadcast %17 : vector<16x1xf32> to vector<16x128xf32>
    %20 = vector.broadcast %18 : vector<1x128xf32> to vector<16x128xf32>
    %21 = arith.mulf %19, %20 : vector<16x128xf32>
    %cst = arith.constant 6.28318548 : f32
    %22 = vector.broadcast %cst : f32 to vector<16x128xf32>
    %23 = arith.mulf %21, %22 : vector<16x128xf32>
    %24 = math.sin %23 : vector<16x128xf32>
    %25 = math.cos %23 : vector<16x128xf32>
    %26 = tpu.concatenate %24, %25 in 0 : vector<16x128xf32>, vector<16x128xf32> -> vector<32x128xf32>
    %c0_6 = arith.constant 0 : index
    %c0_7 = arith.constant 0 : index
    %27 = vector.load %arg3[%c0_6, %c0_7] : memref<32x32xf32, #tpu.memory_space<vmem>>, vector<32x32xf32>
    %cst_8 = arith.constant dense<0.000000e+00> : vector<32x128xf32>
    %28 = tpu.matmul %27, %26, %cst_8 {dimension_numbers = #tpu.dot_dimension_numbers<[1], [0], [0], [1], [0, 0, 1, 1], [], []>} : vector<32x32xf32>, vector<32x128xf32>, vector<32x128xf32> -> vector<32x128xf32>
    %c0_9 = arith.constant 0 : index
    %c0_10 = arith.constant 0 : index
    %29 = vector.load %arg4[%c0_9, %c0_10] : memref<32x1xf32, #tpu.memory_space<vmem>>, vector<32x1xf32>
    %30 = vector.broadcast %29 : vector<32x1xf32> to vector<32x128xf32>
    %31 = arith.addf %28, %30 : vector<32x128xf32>
    %cst_11 = arith.constant 0.000000e+00 : f32
    %32 = vector.broadcast %cst_11 : f32 to vector<32x128xf32>
    %33 = arith.maximumf %31, %32 : vector<32x128xf32>
    %c0_12 = arith.constant 0 : index
    %c0_13 = arith.constant 0 : index
    %34 = vector.load %arg9[%c0_12, %c0_13] : memref<160x32xf32, #tpu.memory_space<vmem>>, vector<160x32xf32>
    %cst_14 = arith.constant dense<0.000000e+00> : vector<160x128xf32>
    %35 = tpu.matmul %34, %33, %cst_14 {dimension_numbers = #tpu.dot_dimension_numbers<[1], [0], [0], [1], [0, 0, 1, 1], [], []>} : vector<160x32xf32>, vector<32x128xf32>, vector<160x128xf32> -> vector<160x128xf32>
    %c0_15 = arith.constant 0 : index
    %c0_16 = arith.constant 0 : index
    %36 = vector.load %arg10[%c0_15, %c0_16] : memref<160x1xf32, #tpu.memory_space<vmem>>, vector<160x1xf32>
    %37 = vector.broadcast %36 : vector<160x1xf32> to vector<160x128xf32>
    %38 = arith.addf %35, %37 : vector<160x128xf32>
    %c0_17 = arith.constant 0 : index
    %c0_18 = arith.constant 0 : index
    %39 = vector.load %arg1[%c0_17, %c0_18] : memref<8x128xf32, #tpu.memory_space<vmem>>, vector<8x128xf32>
    %c4_i32 = arith.constant 4 : i32
    %40 = tpu.dynamic_rotate %39 by %c4_i32 dim 1 : vector<8x128xf32>, i32 -> vector<8x128xf32>
    %c4_i32_19 = arith.constant 4 : i32
    %41 = vector.broadcast %c4_i32_19 : i32 to vector<1x128xi32>
    %42 = arith.cmpi sge, %16, %41 : vector<1x128xi32>
    %cst_20 = arith.constant 0.000000e+00 : f32
    %43 = vector.shape_cast %42 : vector<1x128xi1> to vector<1x128xi1>
    %44 = vector.broadcast %43 : vector<1x128xi1> to vector<8x128xi1>
    %45 = vector.broadcast %cst_20 : f32 to vector<8x128xf32>
    %46 = arith.select %44, %40, %45 : vector<8x128xi1>, vector<8x128xf32>
    %c3_i32 = arith.constant 3 : i32
    %47 = tpu.dynamic_rotate %39 by %c3_i32 dim 1 : vector<8x128xf32>, i32 -> vector<8x128xf32>
    %c3_i32_21 = arith.constant 3 : i32
    %48 = vector.broadcast %c3_i32_21 : i32 to vector<1x128xi32>
    %49 = arith.cmpi sge, %16, %48 : vector<1x128xi32>
    %cst_22 = arith.constant 0.000000e+00 : f32
    %50 = vector.shape_cast %49 : vector<1x128xi1> to vector<1x128xi1>
    %51 = vector.broadcast %50 : vector<1x128xi1> to vector<8x128xi1>
    %52 = vector.broadcast %cst_22 : f32 to vector<8x128xf32>
    %53 = arith.select %51, %47, %52 : vector<8x128xi1>, vector<8x128xf32>
    %c2_i32 = arith.constant 2 : i32
    %54 = tpu.dynamic_rotate %39 by %c2_i32 dim 1 : vector<8x128xf32>, i32 -> vector<8x128xf32>
    %c2_i32_23 = arith.constant 2 : i32
    %55 = vector.broadcast %c2_i32_23 : i32 to vector<1x128xi32>
    %56 = arith.cmpi sge, %16, %55 : vector<1x128xi32>
    %cst_24 = arith.constant 0.000000e+00 : f32
    %57 = vector.shape_cast %56 : vector<1x128xi1> to vector<1x128xi1>
    %58 = vector.broadcast %57 : vector<1x128xi1> to vector<8x128xi1>
    %59 = vector.broadcast %cst_24 : f32 to vector<8x128xf32>
    %60 = arith.select %58, %54, %59 : vector<8x128xi1>, vector<8x128xf32>
    %c1_i32_25 = arith.constant 1 : i32
    %61 = tpu.dynamic_rotate %39 by %c1_i32_25 dim 1 : vector<8x128xf32>, i32 -> vector<8x128xf32>
    %c1_i32_26 = arith.constant 1 : i32
    %62 = vector.broadcast %c1_i32_26 : i32 to vector<1x128xi32>
    %63 = arith.cmpi sge, %16, %62 : vector<1x128xi32>
    %cst_27 = arith.constant 0.000000e+00 : f32
    %64 = vector.shape_cast %63 : vector<1x128xi1> to vector<1x128xi1>
    %65 = vector.broadcast %64 : vector<1x128xi1> to vector<8x128xi1>
    %66 = vector.broadcast %cst_27 : f32 to vector<8x128xf32>
    %67 = arith.select %65, %61, %66 : vector<8x128xi1>, vector<8x128xf32>
    %c127_i32 = arith.constant 127 : i32
    %68 = tpu.dynamic_rotate %39 by %c127_i32 dim 1 : vector<8x128xf32>, i32 -> vector<8x128xf32>
    %c63_i32 = arith.constant 63 : i32
    %69 = vector.broadcast %c63_i32 : i32 to vector<1x128xi32>
    %70 = arith.cmpi slt, %16, %69 : vector<1x128xi32>
    %cst_28 = arith.constant 0.000000e+00 : f32
    %71 = vector.shape_cast %70 : vector<1x128xi1> to vector<1x128xi1>
    %72 = vector.broadcast %71 : vector<1x128xi1> to vector<8x128xi1>
    %73 = vector.broadcast %cst_28 : f32 to vector<8x128xf32>
    %74 = arith.select %72, %68, %73 : vector<8x128xi1>, vector<8x128xf32>
    %c126_i32 = arith.constant 126 : i32
    %75 = tpu.dynamic_rotate %39 by %c126_i32 dim 1 : vector<8x128xf32>, i32 -> vector<8x128xf32>
    %c62_i32 = arith.constant 62 : i32
    %76 = vector.broadcast %c62_i32 : i32 to vector<1x128xi32>
    %77 = arith.cmpi slt, %16, %76 : vector<1x128xi32>
    %cst_29 = arith.constant 0.000000e+00 : f32
    %78 = vector.shape_cast %77 : vector<1x128xi1> to vector<1x128xi1>
    %79 = vector.broadcast %78 : vector<1x128xi1> to vector<8x128xi1>
    %80 = vector.broadcast %cst_29 : f32 to vector<8x128xf32>
    %81 = arith.select %79, %75, %80 : vector<8x128xi1>, vector<8x128xf32>
    %c125_i32 = arith.constant 125 : i32
    %82 = tpu.dynamic_rotate %39 by %c125_i32 dim 1 : vector<8x128xf32>, i32 -> vector<8x128xf32>
    %c61_i32 = arith.constant 61 : i32
    %83 = vector.broadcast %c61_i32 : i32 to vector<1x128xi32>
    %84 = arith.cmpi slt, %16, %83 : vector<1x128xi32>
    %cst_30 = arith.constant 0.000000e+00 : f32
    %85 = vector.shape_cast %84 : vector<1x128xi1> to vector<1x128xi1>
    %86 = vector.broadcast %85 : vector<1x128xi1> to vector<8x128xi1>
    %87 = vector.broadcast %cst_30 : f32 to vector<8x128xf32>
    %88 = arith.select %86, %82, %87 : vector<8x128xi1>, vector<8x128xf32>
    %c124_i32 = arith.constant 124 : i32
    %89 = tpu.dynamic_rotate %39 by %c124_i32 dim 1 : vector<8x128xf32>, i32 -> vector<8x128xf32>
    %c60_i32 = arith.constant 60 : i32
    %90 = vector.broadcast %c60_i32 : i32 to vector<1x128xi32>
    %91 = arith.cmpi slt, %16, %90 : vector<1x128xi32>
    %cst_31 = arith.constant 0.000000e+00 : f32
    %92 = vector.shape_cast %91 : vector<1x128xi1> to vector<1x128xi1>
    %93 = vector.broadcast %92 : vector<1x128xi1> to vector<8x128xi1>
    %94 = vector.broadcast %cst_31 : f32 to vector<8x128xf32>
    %95 = arith.select %93, %89, %94 : vector<8x128xi1>, vector<8x128xf32>
    %96 = tpu.concatenate %46, %53, %60, %67, %39, %74, %81, %88, %95 in 0 : vector<8x128xf32>, vector<8x128xf32>, vector<8x128xf32>, vector<8x128xf32>, vector<8x128xf32>, vector<8x128xf32>, vector<8x128xf32>, vector<8x128xf32>, vector<8x128xf32> -> vector<72x128xf32>
    %c0_32 = arith.constant 0 : index
    %c0_33 = arith.constant 0 : index
    %97 = vector.load %arg5[%c0_32, %c0_33] : memref<32x72xf32, #tpu.memory_space<vmem>>, vector<32x72xf32>
    %cst_34 = arith.constant dense<0.000000e+00> : vector<32x128xf32>
    %98 = tpu.matmul %97, %96, %cst_34 {dimension_numbers = #tpu.dot_dimension_numbers<[1], [0], [0], [1], [0, 0, 1, 1], [], []>} : vector<32x72xf32>, vector<72x128xf32>, vector<32x128xf32> -> vector<32x128xf32>
    %c0_35 = arith.constant 0 : index
    %c0_36 = arith.constant 0 : index
    %99 = vector.load %arg6[%c0_35, %c0_36] : memref<32x1xf32, #tpu.memory_space<vmem>>, vector<32x1xf32>
    %100 = vector.broadcast %99 : vector<32x1xf32> to vector<32x128xf32>
    %101 = arith.addf %98, %100 : vector<32x128xf32>
    %cst_37 = arith.constant 0.000000e+00 : f32
    %102 = vector.broadcast %cst_37 : f32 to vector<32x128xf32>
    %103 = arith.maximumf %101, %102 : vector<32x128xf32>
    %104 = vector.extract_strided_slice %38 {offsets = [0, 0], sizes = [32, 128], strides = [1, 1]} : vector<160x128xf32> to vector<32x128xf32>
    %105 = arith.addf %103, %104 : vector<32x128xf32>
    %cst_38 = arith.constant dense<0.000000e+00> : vector<128xf32>
    %106 = vector.multi_reduction <add>, %105, %cst_38 [0] : vector<32x128xf32> to vector<128xf32>
    %107 = vector.shape_cast %106 : vector<128xf32> to vector<1x128xf32>
    %cst_39 = arith.constant 3.200000e+01 : f32
    %108 = vector.broadcast %cst_39 : f32 to vector<1x128xf32>
    %109 = arith.divf %107, %108 : vector<1x128xf32>
    %110 = vector.broadcast %109 : vector<1x128xf32> to vector<32x128xf32>
    %111 = arith.subf %105, %110 : vector<32x128xf32>
    %112 = arith.mulf %111, %111 : vector<32x128xf32>
    %cst_40 = arith.constant dense<0.000000e+00> : vector<128xf32>
    %113 = vector.multi_reduction <add>, %112, %cst_40 [0] : vector<32x128xf32> to vector<128xf32>
    %114 = vector.shape_cast %113 : vector<128xf32> to vector<1x128xf32>
    %cst_41 = arith.constant 3.200000e+01 : f32
    %115 = vector.broadcast %cst_41 : f32 to vector<1x128xf32>
    %116 = arith.divf %114, %115 : vector<1x128xf32>
    %117 = vector.broadcast %109 : vector<1x128xf32> to vector<32x128xf32>
    %118 = arith.subf %105, %117 : vector<32x128xf32>
    %cst_42 = arith.constant 9.99999974E-6 : f32
    %119 = vector.broadcast %cst_42 : f32 to vector<1x128xf32>
    %120 = arith.addf %116, %119 : vector<1x128xf32>
    %121 = math.rsqrt %120 : vector<1x128xf32>
    %122 = vector.broadcast %121 : vector<1x128xf32> to vector<32x128xf32>
    %123 = arith.mulf %118, %122 : vector<32x128xf32>
    %c0_43 = arith.constant 0 : index
    %c0_44 = arith.constant 0 : index
    %124 = vector.load %arg11[%c0_43, %c0_44] : memref<160x1xf32, #tpu.memory_space<vmem>>, vector<32x1xf32>
    %125 = vector.broadcast %124 : vector<32x1xf32> to vector<32x128xf32>
    %126 = arith.mulf %123, %125 : vector<32x128xf32>
    %c0_45 = arith.constant 0 : index
    %c0_46 = arith.constant 0 : index
    %127 = vector.load %arg12[%c0_45, %c0_46] : memref<160x1xf32, #tpu.memory_space<vmem>>, vector<32x1xf32>
    %128 = vector.broadcast %127 : vector<32x1xf32> to vector<32x128xf32>
    %129 = arith.addf %126, %128 : vector<32x128xf32>
    %c4_i32_47 = arith.constant 4 : i32
    %130 = tpu.dynamic_rotate %129 by %c4_i32_47 dim 1 : vector<32x128xf32>, i32 -> vector<32x128xf32>
    %c4_i32_48 = arith.constant 4 : i32
    %131 = vector.broadcast %c4_i32_48 : i32 to vector<1x128xi32>
    %132 = arith.cmpi sge, %16, %131 : vector<1x128xi32>
    %cst_49 = arith.constant 0.000000e+00 : f32
    %133 = vector.shape_cast %132 : vector<1x128xi1> to vector<1x128xi1>
    %134 = vector.broadcast %133 : vector<1x128xi1> to vector<32x128xi1>
    %135 = vector.broadcast %cst_49 : f32 to vector<32x128xf32>
    %136 = arith.select %134, %130, %135 : vector<32x128xi1>, vector<32x128xf32>
    %c3_i32_50 = arith.constant 3 : i32
    %137 = tpu.dynamic_rotate %129 by %c3_i32_50 dim 1 : vector<32x128xf32>, i32 -> vector<32x128xf32>
    %c3_i32_51 = arith.constant 3 : i32
    %138 = vector.broadcast %c3_i32_51 : i32 to vector<1x128xi32>
    %139 = arith.cmpi sge, %16, %138 : vector<1x128xi32>
    %cst_52 = arith.constant 0.000000e+00 : f32
    %140 = vector.shape_cast %139 : vector<1x128xi1> to vector<1x128xi1>
    %141 = vector.broadcast %140 : vector<1x128xi1> to vector<32x128xi1>
    %142 = vector.broadcast %cst_52 : f32 to vector<32x128xf32>
    %143 = arith.select %141, %137, %142 : vector<32x128xi1>, vector<32x128xf32>
    %c2_i32_53 = arith.constant 2 : i32
    %144 = tpu.dynamic_rotate %129 by %c2_i32_53 dim 1 : vector<32x128xf32>, i32 -> vector<32x128xf32>
    %c2_i32_54 = arith.constant 2 : i32
    %145 = vector.broadcast %c2_i32_54 : i32 to vector<1x128xi32>
    %146 = arith.cmpi sge, %16, %145 : vector<1x128xi32>
    %cst_55 = arith.constant 0.000000e+00 : f32
    %147 = vector.shape_cast %146 : vector<1x128xi1> to vector<1x128xi1>
    %148 = vector.broadcast %147 : vector<1x128xi1> to vector<32x128xi1>
    %149 = vector.broadcast %cst_55 : f32 to vector<32x128xf32>
    %150 = arith.select %148, %144, %149 : vector<32x128xi1>, vector<32x128xf32>
    %c1_i32_56 = arith.constant 1 : i32
    %151 = tpu.dynamic_rotate %129 by %c1_i32_56 dim 1 : vector<32x128xf32>, i32 -> vector<32x128xf32>
    %c1_i32_57 = arith.constant 1 : i32
    %152 = vector.broadcast %c1_i32_57 : i32 to vector<1x128xi32>
    %153 = arith.cmpi sge, %16, %152 : vector<1x128xi32>
    %cst_58 = arith.constant 0.000000e+00 : f32
    %154 = vector.shape_cast %153 : vector<1x128xi1> to vector<1x128xi1>
    %155 = vector.broadcast %154 : vector<1x128xi1> to vector<32x128xi1>
    %156 = vector.broadcast %cst_58 : f32 to vector<32x128xf32>
    %157 = arith.select %155, %151, %156 : vector<32x128xi1>, vector<32x128xf32>
    %c127_i32_59 = arith.constant 127 : i32
    %158 = tpu.dynamic_rotate %129 by %c127_i32_59 dim 1 : vector<32x128xf32>, i32 -> vector<32x128xf32>
    %c63_i32_60 = arith.constant 63 : i32
    %159 = vector.broadcast %c63_i32_60 : i32 to vector<1x128xi32>
    %160 = arith.cmpi slt, %16, %159 : vector<1x128xi32>
    %cst_61 = arith.constant 0.000000e+00 : f32
    %161 = vector.shape_cast %160 : vector<1x128xi1> to vector<1x128xi1>
    %162 = vector.broadcast %161 : vector<1x128xi1> to vector<32x128xi1>
    %163 = vector.broadcast %cst_61 : f32 to vector<32x128xf32>
    %164 = arith.select %162, %158, %163 : vector<32x128xi1>, vector<32x128xf32>
    %c126_i32_62 = arith.constant 126 : i32
    %165 = tpu.dynamic_rotate %129 by %c126_i32_62 dim 1 : vector<32x128xf32>, i32 -> vector<32x128xf32>
    %c62_i32_63 = arith.constant 62 : i32
    %166 = vector.broadcast %c62_i32_63 : i32 to vector<1x128xi32>
    %167 = arith.cmpi slt, %16, %166 : vector<1x128xi32>
    %cst_64 = arith.constant 0.000000e+00 : f32
    %168 = vector.shape_cast %167 : vector<1x128xi1> to vector<1x128xi1>
    %169 = vector.broadcast %168 : vector<1x128xi1> to vector<32x128xi1>
    %170 = vector.broadcast %cst_64 : f32 to vector<32x128xf32>
    %171 = arith.select %169, %165, %170 : vector<32x128xi1>, vector<32x128xf32>
    %c125_i32_65 = arith.constant 125 : i32
    %172 = tpu.dynamic_rotate %129 by %c125_i32_65 dim 1 : vector<32x128xf32>, i32 -> vector<32x128xf32>
    %c61_i32_66 = arith.constant 61 : i32
    %173 = vector.broadcast %c61_i32_66 : i32 to vector<1x128xi32>
    %174 = arith.cmpi slt, %16, %173 : vector<1x128xi32>
    %cst_67 = arith.constant 0.000000e+00 : f32
    %175 = vector.shape_cast %174 : vector<1x128xi1> to vector<1x128xi1>
    %176 = vector.broadcast %175 : vector<1x128xi1> to vector<32x128xi1>
    %177 = vector.broadcast %cst_67 : f32 to vector<32x128xf32>
    %178 = arith.select %176, %172, %177 : vector<32x128xi1>, vector<32x128xf32>
    %c124_i32_68 = arith.constant 124 : i32
    %179 = tpu.dynamic_rotate %129 by %c124_i32_68 dim 1 : vector<32x128xf32>, i32 -> vector<32x128xf32>
    %c60_i32_69 = arith.constant 60 : i32
    %180 = vector.broadcast %c60_i32_69 : i32 to vector<1x128xi32>
    %181 = arith.cmpi slt, %16, %180 : vector<1x128xi32>
    %cst_70 = arith.constant 0.000000e+00 : f32
    %182 = vector.shape_cast %181 : vector<1x128xi1> to vector<1x128xi1>
    %183 = vector.broadcast %182 : vector<1x128xi1> to vector<32x128xi1>
    %184 = vector.broadcast %cst_70 : f32 to vector<32x128xf32>
    %185 = arith.select %183, %179, %184 : vector<32x128xi1>, vector<32x128xf32>
    %186 = tpu.concatenate %136, %143, %150, %157, %129, %164, %171, %178, %185 in 0 : vector<32x128xf32>, vector<32x128xf32>, vector<32x128xf32>, vector<32x128xf32>, vector<32x128xf32>, vector<32x128xf32>, vector<32x128xf32>, vector<32x128xf32>, vector<32x128xf32> -> vector<288x128xf32>
    %c0_71 = arith.constant 0 : index
    %c0_72 = arith.constant 0 : index
    %c0_73 = arith.constant 0 : index
    %187 = vector.load %arg7[%c0_71, %c0_72, %c0_73] : memref<5x32x288xf32, #tpu.memory_space<vmem>>, vector<1x32x288xf32>
    %188 = vector.shape_cast %187 : vector<1x32x288xf32> to vector<32x288xf32>
    %cst_74 = arith.constant dense<0.000000e+00> : vector<32x128xf32>
    %189 = tpu.matmul %188, %186, %cst_74 {dimension_numbers = #tpu.dot_dimension_numbers<[1], [0], [0], [1], [0, 0, 1, 1], [], []>} : vector<32x288xf32>, vector<288x128xf32>, vector<32x128xf32> -> vector<32x128xf32>
    %c0_75 = arith.constant 0 : index
    %c0_76 = arith.constant 0 : index
    %190 = vector.load %arg8[%c0_75, %c0_76] : memref<160x1xf32, #tpu.memory_space<vmem>>, vector<32x1xf32>
    %191 = vector.broadcast %190 : vector<32x1xf32> to vector<32x128xf32>
    %192 = arith.addf %189, %191 : vector<32x128xf32>
    %cst_77 = arith.constant 0.000000e+00 : f32
    %193 = vector.broadcast %cst_77 : f32 to vector<32x128xf32>
    %194 = arith.maximumf %192, %193 : vector<32x128xf32>
    %195 = arith.addf %194, %103 : vector<32x128xf32>
    %196 = vector.extract_strided_slice %38 {offsets = [32, 0], sizes = [32, 128], strides = [1, 1]} : vector<160x128xf32> to vector<32x128xf32>
    %197 = arith.addf %195, %196 : vector<32x128xf32>
    %cst_78 = arith.constant dense<0.000000e+00> : vector<128xf32>
    %198 = vector.multi_reduction <add>, %197, %cst_78 [0] : vector<32x128xf32> to vector<128xf32>
    %199 = vector.shape_cast %198 : vector<128xf32> to vector<1x128xf32>
    %cst_79 = arith.constant 3.200000e+01 : f32
    %200 = vector.broadcast %cst_79 : f32 to vector<1x128xf32>
    %201 = arith.divf %199, %200 : vector<1x128xf32>
    %202 = vector.broadcast %201 : vector<1x128xf32> to vector<32x128xf32>
    %203 = arith.subf %197, %202 : vector<32x128xf32>
    %204 = arith.mulf %203, %203 : vector<32x128xf32>
    %cst_80 = arith.constant dense<0.000000e+00> : vector<128xf32>
    %205 = vector.multi_reduction <add>, %204, %cst_80 [0] : vector<32x128xf32> to vector<128xf32>
    %206 = vector.shape_cast %205 : vector<128xf32> to vector<1x128xf32>
    %cst_81 = arith.constant 3.200000e+01 : f32
    %207 = vector.broadcast %cst_81 : f32 to vector<1x128xf32>
    %208 = arith.divf %206, %207 : vector<1x128xf32>
    %209 = vector.broadcast %201 : vector<1x128xf32> to vector<32x128xf32>
    %210 = arith.subf %197, %209 : vector<32x128xf32>
    %cst_82 = arith.constant 9.99999974E-6 : f32
    %211 = vector.broadcast %cst_82 : f32 to vector<1x128xf32>
    %212 = arith.addf %208, %211 : vector<1x128xf32>
    %213 = math.rsqrt %212 : vector<1x128xf32>
    %214 = vector.broadcast %213 : vector<1x128xf32> to vector<32x128xf32>
    %215 = arith.mulf %210, %214 : vector<32x128xf32>
    %c32 = arith.constant 32 : index
    %c0_83 = arith.constant 0 : index
    %216 = vector.load %arg11[%c32, %c0_83] : memref<160x1xf32, #tpu.memory_space<vmem>>, vector<32x1xf32>
    %217 = vector.broadcast %216 : vector<32x1xf32> to vector<32x128xf32>
    %218 = arith.mulf %215, %217 : vector<32x128xf32>
    %c32_84 = arith.constant 32 : index
    %c0_85 = arith.constant 0 : index
    %219 = vector.load %arg12[%c32_84, %c0_85] : memref<160x1xf32, #tpu.memory_space<vmem>>, vector<32x1xf32>
    %220 = vector.broadcast %219 : vector<32x1xf32> to vector<32x128xf32>
    %221 = arith.addf %218, %220 : vector<32x128xf32>
    %c4_i32_86 = arith.constant 4 : i32
    %222 = tpu.dynamic_rotate %221 by %c4_i32_86 dim 1 : vector<32x128xf32>, i32 -> vector<32x128xf32>
    %c4_i32_87 = arith.constant 4 : i32
    %223 = vector.broadcast %c4_i32_87 : i32 to vector<1x128xi32>
    %224 = arith.cmpi sge, %16, %223 : vector<1x128xi32>
    %cst_88 = arith.constant 0.000000e+00 : f32
    %225 = vector.shape_cast %224 : vector<1x128xi1> to vector<1x128xi1>
    %226 = vector.broadcast %225 : vector<1x128xi1> to vector<32x128xi1>
    %227 = vector.broadcast %cst_88 : f32 to vector<32x128xf32>
    %228 = arith.select %226, %222, %227 : vector<32x128xi1>, vector<32x128xf32>
    %c3_i32_89 = arith.constant 3 : i32
    %229 = tpu.dynamic_rotate %221 by %c3_i32_89 dim 1 : vector<32x128xf32>, i32 -> vector<32x128xf32>
    %c3_i32_90 = arith.constant 3 : i32
    %230 = vector.broadcast %c3_i32_90 : i32 to vector<1x128xi32>
    %231 = arith.cmpi sge, %16, %230 : vector<1x128xi32>
    %cst_91 = arith.constant 0.000000e+00 : f32
    %232 = vector.shape_cast %231 : vector<1x128xi1> to vector<1x128xi1>
    %233 = vector.broadcast %232 : vector<1x128xi1> to vector<32x128xi1>
    %234 = vector.broadcast %cst_91 : f32 to vector<32x128xf32>
    %235 = arith.select %233, %229, %234 : vector<32x128xi1>, vector<32x128xf32>
    %c2_i32_92 = arith.constant 2 : i32
    %236 = tpu.dynamic_rotate %221 by %c2_i32_92 dim 1 : vector<32x128xf32>, i32 -> vector<32x128xf32>
    %c2_i32_93 = arith.constant 2 : i32
    %237 = vector.broadcast %c2_i32_93 : i32 to vector<1x128xi32>
    %238 = arith.cmpi sge, %16, %237 : vector<1x128xi32>
    %cst_94 = arith.constant 0.000000e+00 : f32
    %239 = vector.shape_cast %238 : vector<1x128xi1> to vector<1x128xi1>
    %240 = vector.broadcast %239 : vector<1x128xi1> to vector<32x128xi1>
    %241 = vector.broadcast %cst_94 : f32 to vector<32x128xf32>
    %242 = arith.select %240, %236, %241 : vector<32x128xi1>, vector<32x128xf32>
    %c1_i32_95 = arith.constant 1 : i32
    %243 = tpu.dynamic_rotate %221 by %c1_i32_95 dim 1 : vector<32x128xf32>, i32 -> vector<32x128xf32>
    %c1_i32_96 = arith.constant 1 : i32
    %244 = vector.broadcast %c1_i32_96 : i32 to vector<1x128xi32>
    %245 = arith.cmpi sge, %16, %244 : vector<1x128xi32>
    %cst_97 = arith.constant 0.000000e+00 : f32
    %246 = vector.shape_cast %245 : vector<1x128xi1> to vector<1x128xi1>
    %247 = vector.broadcast %246 : vector<1x128xi1> to vector<32x128xi1>
    %248 = vector.broadcast %cst_97 : f32 to vector<32x128xf32>
    %249 = arith.select %247, %243, %248 : vector<32x128xi1>, vector<32x128xf32>
    %c127_i32_98 = arith.constant 127 : i32
    %250 = tpu.dynamic_rotate %221 by %c127_i32_98 dim 1 : vector<32x128xf32>, i32 -> vector<32x128xf32>
    %c63_i32_99 = arith.constant 63 : i32
    %251 = vector.broadcast %c63_i32_99 : i32 to vector<1x128xi32>
    %252 = arith.cmpi slt, %16, %251 : vector<1x128xi32>
    %cst_100 = arith.constant 0.000000e+00 : f32
    %253 = vector.shape_cast %252 : vector<1x128xi1> to vector<1x128xi1>
    %254 = vector.broadcast %253 : vector<1x128xi1> to vector<32x128xi1>
    %255 = vector.broadcast %cst_100 : f32 to vector<32x128xf32>
    %256 = arith.select %254, %250, %255 : vector<32x128xi1>, vector<32x128xf32>
    %c126_i32_101 = arith.constant 126 : i32
    %257 = tpu.dynamic_rotate %221 by %c126_i32_101 dim 1 : vector<32x128xf32>, i32 -> vector<32x128xf32>
    %c62_i32_102 = arith.constant 62 : i32
    %258 = vector.broadcast %c62_i32_102 : i32 to vector<1x128xi32>
    %259 = arith.cmpi slt, %16, %258 : vector<1x128xi32>
    %cst_103 = arith.constant 0.000000e+00 : f32
    %260 = vector.shape_cast %259 : vector<1x128xi1> to vector<1x128xi1>
    %261 = vector.broadcast %260 : vector<1x128xi1> to vector<32x128xi1>
    %262 = vector.broadcast %cst_103 : f32 to vector<32x128xf32>
    %263 = arith.select %261, %257, %262 : vector<32x128xi1>, vector<32x128xf32>
    %c125_i32_104 = arith.constant 125 : i32
    %264 = tpu.dynamic_rotate %221 by %c125_i32_104 dim 1 : vector<32x128xf32>, i32 -> vector<32x128xf32>
    %c61_i32_105 = arith.constant 61 : i32
    %265 = vector.broadcast %c61_i32_105 : i32 to vector<1x128xi32>
    %266 = arith.cmpi slt, %16, %265 : vector<1x128xi32>
    %cst_106 = arith.constant 0.000000e+00 : f32
    %267 = vector.shape_cast %266 : vector<1x128xi1> to vector<1x128xi1>
    %268 = vector.broadcast %267 : vector<1x128xi1> to vector<32x128xi1>
    %269 = vector.broadcast %cst_106 : f32 to vector<32x128xf32>
    %270 = arith.select %268, %264, %269 : vector<32x128xi1>, vector<32x128xf32>
    %c124_i32_107 = arith.constant 124 : i32
    %271 = tpu.dynamic_rotate %221 by %c124_i32_107 dim 1 : vector<32x128xf32>, i32 -> vector<32x128xf32>
    %c60_i32_108 = arith.constant 60 : i32
    %272 = vector.broadcast %c60_i32_108 : i32 to vector<1x128xi32>
    %273 = arith.cmpi slt, %16, %272 : vector<1x128xi32>
    %cst_109 = arith.constant 0.000000e+00 : f32
    %274 = vector.shape_cast %273 : vector<1x128xi1> to vector<1x128xi1>
    %275 = vector.broadcast %274 : vector<1x128xi1> to vector<32x128xi1>
    %276 = vector.broadcast %cst_109 : f32 to vector<32x128xf32>
    %277 = arith.select %275, %271, %276 : vector<32x128xi1>, vector<32x128xf32>
    %278 = tpu.concatenate %228, %235, %242, %249, %221, %256, %263, %270, %277 in 0 : vector<32x128xf32>, vector<32x128xf32>, vector<32x128xf32>, vector<32x128xf32>, vector<32x128xf32>, vector<32x128xf32>, vector<32x128xf32>, vector<32x128xf32>, vector<32x128xf32> -> vector<288x128xf32>
    %c1 = arith.constant 1 : index
    %c0_110 = arith.constant 0 : index
    %c0_111 = arith.constant 0 : index
    %279 = vector.load %arg7[%c1, %c0_110, %c0_111] : memref<5x32x288xf32, #tpu.memory_space<vmem>>, vector<1x32x288xf32>
    %280 = vector.shape_cast %279 : vector<1x32x288xf32> to vector<32x288xf32>
    %cst_112 = arith.constant dense<0.000000e+00> : vector<32x128xf32>
    %281 = tpu.matmul %280, %278, %cst_112 {dimension_numbers = #tpu.dot_dimension_numbers<[1], [0], [0], [1], [0, 0, 1, 1], [], []>} : vector<32x288xf32>, vector<288x128xf32>, vector<32x128xf32> -> vector<32x128xf32>
    %c32_113 = arith.constant 32 : index
    %c0_114 = arith.constant 0 : index
    %282 = vector.load %arg8[%c32_113, %c0_114] : memref<160x1xf32, #tpu.memory_space<vmem>>, vector<32x1xf32>
    %283 = vector.broadcast %282 : vector<32x1xf32> to vector<32x128xf32>
    %284 = arith.addf %281, %283 : vector<32x128xf32>
    %cst_115 = arith.constant 0.000000e+00 : f32
    %285 = vector.broadcast %cst_115 : f32 to vector<32x128xf32>
    %286 = arith.maximumf %284, %285 : vector<32x128xf32>
    %287 = arith.addf %286, %195 : vector<32x128xf32>
    %288 = vector.extract_strided_slice %38 {offsets = [64, 0], sizes = [32, 128], strides = [1, 1]} : vector<160x128xf32> to vector<32x128xf32>
    %289 = arith.addf %287, %288 : vector<32x128xf32>
    %cst_116 = arith.constant dense<0.000000e+00> : vector<128xf32>
    %290 = vector.multi_reduction <add>, %289, %cst_116 [0] : vector<32x128xf32> to vector<128xf32>
    %291 = vector.shape_cast %290 : vector<128xf32> to vector<1x128xf32>
    %cst_117 = arith.constant 3.200000e+01 : f32
    %292 = vector.broadcast %cst_117 : f32 to vector<1x128xf32>
    %293 = arith.divf %291, %292 : vector<1x128xf32>
    %294 = vector.broadcast %293 : vector<1x128xf32> to vector<32x128xf32>
    %295 = arith.subf %289, %294 : vector<32x128xf32>
    %296 = arith.mulf %295, %295 : vector<32x128xf32>
    %cst_118 = arith.constant dense<0.000000e+00> : vector<128xf32>
    %297 = vector.multi_reduction <add>, %296, %cst_118 [0] : vector<32x128xf32> to vector<128xf32>
    %298 = vector.shape_cast %297 : vector<128xf32> to vector<1x128xf32>
    %cst_119 = arith.constant 3.200000e+01 : f32
    %299 = vector.broadcast %cst_119 : f32 to vector<1x128xf32>
    %300 = arith.divf %298, %299 : vector<1x128xf32>
    %301 = vector.broadcast %293 : vector<1x128xf32> to vector<32x128xf32>
    %302 = arith.subf %289, %301 : vector<32x128xf32>
    %cst_120 = arith.constant 9.99999974E-6 : f32
    %303 = vector.broadcast %cst_120 : f32 to vector<1x128xf32>
    %304 = arith.addf %300, %303 : vector<1x128xf32>
    %305 = math.rsqrt %304 : vector<1x128xf32>
    %306 = vector.broadcast %305 : vector<1x128xf32> to vector<32x128xf32>
    %307 = arith.mulf %302, %306 : vector<32x128xf32>
    %c64 = arith.constant 64 : index
    %c0_121 = arith.constant 0 : index
    %308 = vector.load %arg11[%c64, %c0_121] : memref<160x1xf32, #tpu.memory_space<vmem>>, vector<32x1xf32>
    %309 = vector.broadcast %308 : vector<32x1xf32> to vector<32x128xf32>
    %310 = arith.mulf %307, %309 : vector<32x128xf32>
    %c64_122 = arith.constant 64 : index
    %c0_123 = arith.constant 0 : index
    %311 = vector.load %arg12[%c64_122, %c0_123] : memref<160x1xf32, #tpu.memory_space<vmem>>, vector<32x1xf32>
    %312 = vector.broadcast %311 : vector<32x1xf32> to vector<32x128xf32>
    %313 = arith.addf %310, %312 : vector<32x128xf32>
    %c16_i32 = arith.constant 16 : i32
    %314 = tpu.dynamic_rotate %313 by %c16_i32 dim 1 : vector<32x128xf32>, i32 -> vector<32x128xf32>
    %c16_i32_124 = arith.constant 16 : i32
    %315 = vector.broadcast %c16_i32_124 : i32 to vector<1x128xi32>
    %316 = arith.cmpi sge, %16, %315 : vector<1x128xi32>
    %cst_125 = arith.constant 0.000000e+00 : f32
    %317 = vector.shape_cast %316 : vector<1x128xi1> to vector<1x128xi1>
    %318 = vector.broadcast %317 : vector<1x128xi1> to vector<32x128xi1>
    %319 = vector.broadcast %cst_125 : f32 to vector<32x128xf32>
    %320 = arith.select %318, %314, %319 : vector<32x128xi1>, vector<32x128xf32>
    %c12_i32 = arith.constant 12 : i32
    %321 = tpu.dynamic_rotate %313 by %c12_i32 dim 1 : vector<32x128xf32>, i32 -> vector<32x128xf32>
    %c12_i32_126 = arith.constant 12 : i32
    %322 = vector.broadcast %c12_i32_126 : i32 to vector<1x128xi32>
    %323 = arith.cmpi sge, %16, %322 : vector<1x128xi32>
    %cst_127 = arith.constant 0.000000e+00 : f32
    %324 = vector.shape_cast %323 : vector<1x128xi1> to vector<1x128xi1>
    %325 = vector.broadcast %324 : vector<1x128xi1> to vector<32x128xi1>
    %326 = vector.broadcast %cst_127 : f32 to vector<32x128xf32>
    %327 = arith.select %325, %321, %326 : vector<32x128xi1>, vector<32x128xf32>
    %c8_i32 = arith.constant 8 : i32
    %328 = tpu.dynamic_rotate %313 by %c8_i32 dim 1 : vector<32x128xf32>, i32 -> vector<32x128xf32>
    %c8_i32_128 = arith.constant 8 : i32
    %329 = vector.broadcast %c8_i32_128 : i32 to vector<1x128xi32>
    %330 = arith.cmpi sge, %16, %329 : vector<1x128xi32>
    %cst_129 = arith.constant 0.000000e+00 : f32
    %331 = vector.shape_cast %330 : vector<1x128xi1> to vector<1x128xi1>
    %332 = vector.broadcast %331 : vector<1x128xi1> to vector<32x128xi1>
    %333 = vector.broadcast %cst_129 : f32 to vector<32x128xf32>
    %334 = arith.select %332, %328, %333 : vector<32x128xi1>, vector<32x128xf32>
    %c4_i32_130 = arith.constant 4 : i32
    %335 = tpu.dynamic_rotate %313 by %c4_i32_130 dim 1 : vector<32x128xf32>, i32 -> vector<32x128xf32>
    %c4_i32_131 = arith.constant 4 : i32
    %336 = vector.broadcast %c4_i32_131 : i32 to vector<1x128xi32>
    %337 = arith.cmpi sge, %16, %336 : vector<1x128xi32>
    %cst_132 = arith.constant 0.000000e+00 : f32
    %338 = vector.shape_cast %337 : vector<1x128xi1> to vector<1x128xi1>
    %339 = vector.broadcast %338 : vector<1x128xi1> to vector<32x128xi1>
    %340 = vector.broadcast %cst_132 : f32 to vector<32x128xf32>
    %341 = arith.select %339, %335, %340 : vector<32x128xi1>, vector<32x128xf32>
    %c124_i32_133 = arith.constant 124 : i32
    %342 = tpu.dynamic_rotate %313 by %c124_i32_133 dim 1 : vector<32x128xf32>, i32 -> vector<32x128xf32>
    %c60_i32_134 = arith.constant 60 : i32
    %343 = vector.broadcast %c60_i32_134 : i32 to vector<1x128xi32>
    %344 = arith.cmpi slt, %16, %343 : vector<1x128xi32>
    %cst_135 = arith.constant 0.000000e+00 : f32
    %345 = vector.shape_cast %344 : vector<1x128xi1> to vector<1x128xi1>
    %346 = vector.broadcast %345 : vector<1x128xi1> to vector<32x128xi1>
    %347 = vector.broadcast %cst_135 : f32 to vector<32x128xf32>
    %348 = arith.select %346, %342, %347 : vector<32x128xi1>, vector<32x128xf32>
    %c120_i32 = arith.constant 120 : i32
    %349 = tpu.dynamic_rotate %313 by %c120_i32 dim 1 : vector<32x128xf32>, i32 -> vector<32x128xf32>
    %c56_i32 = arith.constant 56 : i32
    %350 = vector.broadcast %c56_i32 : i32 to vector<1x128xi32>
    %351 = arith.cmpi slt, %16, %350 : vector<1x128xi32>
    %cst_136 = arith.constant 0.000000e+00 : f32
    %352 = vector.shape_cast %351 : vector<1x128xi1> to vector<1x128xi1>
    %353 = vector.broadcast %352 : vector<1x128xi1> to vector<32x128xi1>
    %354 = vector.broadcast %cst_136 : f32 to vector<32x128xf32>
    %355 = arith.select %353, %349, %354 : vector<32x128xi1>, vector<32x128xf32>
    %c116_i32 = arith.constant 116 : i32
    %356 = tpu.dynamic_rotate %313 by %c116_i32 dim 1 : vector<32x128xf32>, i32 -> vector<32x128xf32>
    %c52_i32 = arith.constant 52 : i32
    %357 = vector.broadcast %c52_i32 : i32 to vector<1x128xi32>
    %358 = arith.cmpi slt, %16, %357 : vector<1x128xi32>
    %cst_137 = arith.constant 0.000000e+00 : f32
    %359 = vector.shape_cast %358 : vector<1x128xi1> to vector<1x128xi1>
    %360 = vector.broadcast %359 : vector<1x128xi1> to vector<32x128xi1>
    %361 = vector.broadcast %cst_137 : f32 to vector<32x128xf32>
    %362 = arith.select %360, %356, %361 : vector<32x128xi1>, vector<32x128xf32>
    %c112_i32 = arith.constant 112 : i32
    %363 = tpu.dynamic_rotate %313 by %c112_i32 dim 1 : vector<32x128xf32>, i32 -> vector<32x128xf32>
    %c48_i32 = arith.constant 48 : i32
    %364 = vector.broadcast %c48_i32 : i32 to vector<1x128xi32>
    %365 = arith.cmpi slt, %16, %364 : vector<1x128xi32>
    %cst_138 = arith.constant 0.000000e+00 : f32
    %366 = vector.shape_cast %365 : vector<1x128xi1> to vector<1x128xi1>
    %367 = vector.broadcast %366 : vector<1x128xi1> to vector<32x128xi1>
    %368 = vector.broadcast %cst_138 : f32 to vector<32x128xf32>
    %369 = arith.select %367, %363, %368 : vector<32x128xi1>, vector<32x128xf32>
    %370 = tpu.concatenate %320, %327, %334, %341, %313, %348, %355, %362, %369 in 0 : vector<32x128xf32>, vector<32x128xf32>, vector<32x128xf32>, vector<32x128xf32>, vector<32x128xf32>, vector<32x128xf32>, vector<32x128xf32>, vector<32x128xf32>, vector<32x128xf32> -> vector<288x128xf32>
    %c2 = arith.constant 2 : index
    %c0_139 = arith.constant 0 : index
    %c0_140 = arith.constant 0 : index
    %371 = vector.load %arg7[%c2, %c0_139, %c0_140] : memref<5x32x288xf32, #tpu.memory_space<vmem>>, vector<1x32x288xf32>
    %372 = vector.shape_cast %371 : vector<1x32x288xf32> to vector<32x288xf32>
    %cst_141 = arith.constant dense<0.000000e+00> : vector<32x128xf32>
    %373 = tpu.matmul %372, %370, %cst_141 {dimension_numbers = #tpu.dot_dimension_numbers<[1], [0], [0], [1], [0, 0, 1, 1], [], []>} : vector<32x288xf32>, vector<288x128xf32>, vector<32x128xf32> -> vector<32x128xf32>
    %c64_142 = arith.constant 64 : index
    %c0_143 = arith.constant 0 : index
    %374 = vector.load %arg8[%c64_142, %c0_143] : memref<160x1xf32, #tpu.memory_space<vmem>>, vector<32x1xf32>
    %375 = vector.broadcast %374 : vector<32x1xf32> to vector<32x128xf32>
    %376 = arith.addf %373, %375 : vector<32x128xf32>
    %cst_144 = arith.constant 0.000000e+00 : f32
    %377 = vector.broadcast %cst_144 : f32 to vector<32x128xf32>
    %378 = arith.maximumf %376, %377 : vector<32x128xf32>
    %379 = arith.addf %378, %287 : vector<32x128xf32>
    %380 = vector.extract_strided_slice %38 {offsets = [96, 0], sizes = [32, 128], strides = [1, 1]} : vector<160x128xf32> to vector<32x128xf32>
    %381 = arith.addf %379, %380 : vector<32x128xf32>
    %cst_145 = arith.constant dense<0.000000e+00> : vector<128xf32>
    %382 = vector.multi_reduction <add>, %381, %cst_145 [0] : vector<32x128xf32> to vector<128xf32>
    %383 = vector.shape_cast %382 : vector<128xf32> to vector<1x128xf32>
    %cst_146 = arith.constant 3.200000e+01 : f32
    %384 = vector.broadcast %cst_146 : f32 to vector<1x128xf32>
    %385 = arith.divf %383, %384 : vector<1x128xf32>
    %386 = vector.broadcast %385 : vector<1x128xf32> to vector<32x128xf32>
    %387 = arith.subf %381, %386 : vector<32x128xf32>
    %388 = arith.mulf %387, %387 : vector<32x128xf32>
    %cst_147 = arith.constant dense<0.000000e+00> : vector<128xf32>
    %389 = vector.multi_reduction <add>, %388, %cst_147 [0] : vector<32x128xf32> to vector<128xf32>
    %390 = vector.shape_cast %389 : vector<128xf32> to vector<1x128xf32>
    %cst_148 = arith.constant 3.200000e+01 : f32
    %391 = vector.broadcast %cst_148 : f32 to vector<1x128xf32>
    %392 = arith.divf %390, %391 : vector<1x128xf32>
    %393 = vector.broadcast %385 : vector<1x128xf32> to vector<32x128xf32>
    %394 = arith.subf %381, %393 : vector<32x128xf32>
    %cst_149 = arith.constant 9.99999974E-6 : f32
    %395 = vector.broadcast %cst_149 : f32 to vector<1x128xf32>
    %396 = arith.addf %392, %395 : vector<1x128xf32>
    %397 = math.rsqrt %396 : vector<1x128xf32>
    %398 = vector.broadcast %397 : vector<1x128xf32> to vector<32x128xf32>
    %399 = arith.mulf %394, %398 : vector<32x128xf32>
    %c96 = arith.constant 96 : index
    %c0_150 = arith.constant 0 : index
    %400 = vector.load %arg11[%c96, %c0_150] : memref<160x1xf32, #tpu.memory_space<vmem>>, vector<32x1xf32>
    %401 = vector.broadcast %400 : vector<32x1xf32> to vector<32x128xf32>
    %402 = arith.mulf %399, %401 : vector<32x128xf32>
    %c96_151 = arith.constant 96 : index
    %c0_152 = arith.constant 0 : index
    %403 = vector.load %arg12[%c96_151, %c0_152] : memref<160x1xf32, #tpu.memory_space<vmem>>, vector<32x1xf32>
    %404 = vector.broadcast %403 : vector<32x1xf32> to vector<32x128xf32>
    %405 = arith.addf %402, %404 : vector<32x128xf32>
    %cst_153 = arith.constant 0.000000e+00 : f32
    %406 = vector.broadcast %cst_153 : f32 to vector<32x128xf32>
    %c48_i32_154 = arith.constant 48 : i32
    %407 = tpu.dynamic_rotate %405 by %c48_i32_154 dim 1 : vector<32x128xf32>, i32 -> vector<32x128xf32>
    %c48_i32_155 = arith.constant 48 : i32
    %408 = vector.broadcast %c48_i32_155 : i32 to vector<1x128xi32>
    %409 = arith.cmpi sge, %16, %408 : vector<1x128xi32>
    %cst_156 = arith.constant 0.000000e+00 : f32
    %410 = vector.shape_cast %409 : vector<1x128xi1> to vector<1x128xi1>
    %411 = vector.broadcast %410 : vector<1x128xi1> to vector<32x128xi1>
    %412 = vector.broadcast %cst_156 : f32 to vector<32x128xf32>
    %413 = arith.select %411, %407, %412 : vector<32x128xi1>, vector<32x128xf32>
    %c32_i32 = arith.constant 32 : i32
    %414 = tpu.dynamic_rotate %405 by %c32_i32 dim 1 : vector<32x128xf32>, i32 -> vector<32x128xf32>
    %c32_i32_157 = arith.constant 32 : i32
    %415 = vector.broadcast %c32_i32_157 : i32 to vector<1x128xi32>
    %416 = arith.cmpi sge, %16, %415 : vector<1x128xi32>
    %cst_158 = arith.constant 0.000000e+00 : f32
    %417 = vector.shape_cast %416 : vector<1x128xi1> to vector<1x128xi1>
    %418 = vector.broadcast %417 : vector<1x128xi1> to vector<32x128xi1>
    %419 = vector.broadcast %cst_158 : f32 to vector<32x128xf32>
    %420 = arith.select %418, %414, %419 : vector<32x128xi1>, vector<32x128xf32>
    %c16_i32_159 = arith.constant 16 : i32
    %421 = tpu.dynamic_rotate %405 by %c16_i32_159 dim 1 : vector<32x128xf32>, i32 -> vector<32x128xf32>
    %c16_i32_160 = arith.constant 16 : i32
    %422 = vector.broadcast %c16_i32_160 : i32 to vector<1x128xi32>
    %423 = arith.cmpi sge, %16, %422 : vector<1x128xi32>
    %cst_161 = arith.constant 0.000000e+00 : f32
    %424 = vector.shape_cast %423 : vector<1x128xi1> to vector<1x128xi1>
    %425 = vector.broadcast %424 : vector<1x128xi1> to vector<32x128xi1>
    %426 = vector.broadcast %cst_161 : f32 to vector<32x128xf32>
    %427 = arith.select %425, %421, %426 : vector<32x128xi1>, vector<32x128xf32>
    %c112_i32_162 = arith.constant 112 : i32
    %428 = tpu.dynamic_rotate %405 by %c112_i32_162 dim 1 : vector<32x128xf32>, i32 -> vector<32x128xf32>
    %c48_i32_163 = arith.constant 48 : i32
    %429 = vector.broadcast %c48_i32_163 : i32 to vector<1x128xi32>
    %430 = arith.cmpi slt, %16, %429 : vector<1x128xi32>
    %cst_164 = arith.constant 0.000000e+00 : f32
    %431 = vector.shape_cast %430 : vector<1x128xi1> to vector<1x128xi1>
    %432 = vector.broadcast %431 : vector<1x128xi1> to vector<32x128xi1>
    %433 = vector.broadcast %cst_164 : f32 to vector<32x128xf32>
    %434 = arith.select %432, %428, %433 : vector<32x128xi1>, vector<32x128xf32>
    %c96_i32 = arith.constant 96 : i32
    %435 = tpu.dynamic_rotate %405 by %c96_i32 dim 1 : vector<32x128xf32>, i32 -> vector<32x128xf32>
    %c32_i32_165 = arith.constant 32 : i32
    %436 = vector.broadcast %c32_i32_165 : i32 to vector<1x128xi32>
    %437 = arith.cmpi slt, %16, %436 : vector<1x128xi32>
    %cst_166 = arith.constant 0.000000e+00 : f32
    %438 = vector.shape_cast %437 : vector<1x128xi1> to vector<1x128xi1>
    %439 = vector.broadcast %438 : vector<1x128xi1> to vector<32x128xi1>
    %440 = vector.broadcast %cst_166 : f32 to vector<32x128xf32>
    %441 = arith.select %439, %435, %440 : vector<32x128xi1>, vector<32x128xf32>
    %c80_i32 = arith.constant 80 : i32
    %442 = tpu.dynamic_rotate %405 by %c80_i32 dim 1 : vector<32x128xf32>, i32 -> vector<32x128xf32>
    %c16_i32_167 = arith.constant 16 : i32
    %443 = vector.broadcast %c16_i32_167 : i32 to vector<1x128xi32>
    %444 = arith.cmpi slt, %16, %443 : vector<1x128xi32>
    %cst_168 = arith.constant 0.000000e+00 : f32
    %445 = vector.shape_cast %444 : vector<1x128xi1> to vector<1x128xi1>
    %446 = vector.broadcast %445 : vector<1x128xi1> to vector<32x128xi1>
    %447 = vector.broadcast %cst_168 : f32 to vector<32x128xf32>
    %448 = arith.select %446, %442, %447 : vector<32x128xi1>, vector<32x128xf32>
    %cst_169 = arith.constant 0.000000e+00 : f32
    %449 = vector.broadcast %cst_169 : f32 to vector<32x128xf32>
    %450 = tpu.concatenate %406, %413, %420, %427, %405, %434, %441, %448, %449 in 0 : vector<32x128xf32>, vector<32x128xf32>, vector<32x128xf32>, vector<32x128xf32>, vector<32x128xf32>, vector<32x128xf32>, vector<32x128xf32>, vector<32x128xf32>, vector<32x128xf32> -> vector<288x128xf32>
    %c3 = arith.constant 3 : index
    %c0_170 = arith.constant 0 : index
    %c0_171 = arith.constant 0 : index
    %451 = vector.load %arg7[%c3, %c0_170, %c0_171] : memref<5x32x288xf32, #tpu.memory_space<vmem>>, vector<1x32x288xf32>
    %452 = vector.shape_cast %451 : vector<1x32x288xf32> to vector<32x288xf32>
    %cst_172 = arith.constant dense<0.000000e+00> : vector<32x128xf32>
    %453 = tpu.matmul %452, %450, %cst_172 {dimension_numbers = #tpu.dot_dimension_numbers<[1], [0], [0], [1], [0, 0, 1, 1], [], []>} : vector<32x288xf32>, vector<288x128xf32>, vector<32x128xf32> -> vector<32x128xf32>
    %c96_173 = arith.constant 96 : index
    %c0_174 = arith.constant 0 : index
    %454 = vector.load %arg8[%c96_173, %c0_174] : memref<160x1xf32, #tpu.memory_space<vmem>>, vector<32x1xf32>
    %455 = vector.broadcast %454 : vector<32x1xf32> to vector<32x128xf32>
    %456 = arith.addf %453, %455 : vector<32x128xf32>
    %cst_175 = arith.constant 0.000000e+00 : f32
    %457 = vector.broadcast %cst_175 : f32 to vector<32x128xf32>
    %458 = arith.maximumf %456, %457 : vector<32x128xf32>
    %459 = arith.addf %458, %379 : vector<32x128xf32>
    %460 = vector.extract_strided_slice %38 {offsets = [128, 0], sizes = [32, 128], strides = [1, 1]} : vector<160x128xf32> to vector<32x128xf32>
    %461 = arith.addf %459, %460 : vector<32x128xf32>
    %cst_176 = arith.constant dense<0.000000e+00> : vector<128xf32>
    %462 = vector.multi_reduction <add>, %461, %cst_176 [0] : vector<32x128xf32> to vector<128xf32>
    %463 = vector.shape_cast %462 : vector<128xf32> to vector<1x128xf32>
    %cst_177 = arith.constant 3.200000e+01 : f32
    %464 = vector.broadcast %cst_177 : f32 to vector<1x128xf32>
    %465 = arith.divf %463, %464 : vector<1x128xf32>
    %466 = vector.broadcast %465 : vector<1x128xf32> to vector<32x128xf32>
    %467 = arith.subf %461, %466 : vector<32x128xf32>
    %468 = arith.mulf %467, %467 : vector<32x128xf32>
    %cst_178 = arith.constant dense<0.000000e+00> : vector<128xf32>
    %469 = vector.multi_reduction <add>, %468, %cst_178 [0] : vector<32x128xf32> to vector<128xf32>
    %470 = vector.shape_cast %469 : vector<128xf32> to vector<1x128xf32>
    %cst_179 = arith.constant 3.200000e+01 : f32
    %471 = vector.broadcast %cst_179 : f32 to vector<1x128xf32>
    %472 = arith.divf %470, %471 : vector<1x128xf32>
    %473 = vector.broadcast %465 : vector<1x128xf32> to vector<32x128xf32>
    %474 = arith.subf %461, %473 : vector<32x128xf32>
    %cst_180 = arith.constant 9.99999974E-6 : f32
    %475 = vector.broadcast %cst_180 : f32 to vector<1x128xf32>
    %476 = arith.addf %472, %475 : vector<1x128xf32>
    %477 = math.rsqrt %476 : vector<1x128xf32>
    %478 = vector.broadcast %477 : vector<1x128xf32> to vector<32x128xf32>
    %479 = arith.mulf %474, %478 : vector<32x128xf32>
    %c128 = arith.constant 128 : index
    %c0_181 = arith.constant 0 : index
    %480 = vector.load %arg11[%c128, %c0_181] : memref<160x1xf32, #tpu.memory_space<vmem>>, vector<32x1xf32>
    %481 = vector.broadcast %480 : vector<32x1xf32> to vector<32x128xf32>
    %482 = arith.mulf %479, %481 : vector<32x128xf32>
    %c128_182 = arith.constant 128 : index
    %c0_183 = arith.constant 0 : index
    %483 = vector.load %arg12[%c128_182, %c0_183] : memref<160x1xf32, #tpu.memory_space<vmem>>, vector<32x1xf32>
    %484 = vector.broadcast %483 : vector<32x1xf32> to vector<32x128xf32>
    %485 = arith.addf %482, %484 : vector<32x128xf32>
    %cst_184 = arith.constant 0.000000e+00 : f32
    %486 = vector.broadcast %cst_184 : f32 to vector<32x128xf32>
    %cst_185 = arith.constant 0.000000e+00 : f32
    %487 = vector.broadcast %cst_185 : f32 to vector<32x128xf32>
    %cst_186 = arith.constant 0.000000e+00 : f32
    %488 = vector.broadcast %cst_186 : f32 to vector<32x128xf32>
    %cst_187 = arith.constant 0.000000e+00 : f32
    %489 = vector.broadcast %cst_187 : f32 to vector<32x128xf32>
    %cst_188 = arith.constant 0.000000e+00 : f32
    %490 = vector.broadcast %cst_188 : f32 to vector<32x128xf32>
    %cst_189 = arith.constant 0.000000e+00 : f32
    %491 = vector.broadcast %cst_189 : f32 to vector<32x128xf32>
    %cst_190 = arith.constant 0.000000e+00 : f32
    %492 = vector.broadcast %cst_190 : f32 to vector<32x128xf32>
    %cst_191 = arith.constant 0.000000e+00 : f32
    %493 = vector.broadcast %cst_191 : f32 to vector<32x128xf32>
    %494 = tpu.concatenate %486, %487, %488, %489, %485, %490, %491, %492, %493 in 0 : vector<32x128xf32>, vector<32x128xf32>, vector<32x128xf32>, vector<32x128xf32>, vector<32x128xf32>, vector<32x128xf32>, vector<32x128xf32>, vector<32x128xf32>, vector<32x128xf32> -> vector<288x128xf32>
    %c4 = arith.constant 4 : index
    %c0_192 = arith.constant 0 : index
    %c0_193 = arith.constant 0 : index
    %495 = vector.load %arg7[%c4, %c0_192, %c0_193] : memref<5x32x288xf32, #tpu.memory_space<vmem>>, vector<1x32x288xf32>
    %496 = vector.shape_cast %495 : vector<1x32x288xf32> to vector<32x288xf32>
    %cst_194 = arith.constant dense<0.000000e+00> : vector<32x128xf32>
    %497 = tpu.matmul %496, %494, %cst_194 {dimension_numbers = #tpu.dot_dimension_numbers<[1], [0], [0], [1], [0, 0, 1, 1], [], []>} : vector<32x288xf32>, vector<288x128xf32>, vector<32x128xf32> -> vector<32x128xf32>
    %c128_195 = arith.constant 128 : index
    %c0_196 = arith.constant 0 : index
    %498 = vector.load %arg8[%c128_195, %c0_196] : memref<160x1xf32, #tpu.memory_space<vmem>>, vector<32x1xf32>
    %499 = vector.broadcast %498 : vector<32x1xf32> to vector<32x128xf32>
    %500 = arith.addf %497, %499 : vector<32x128xf32>
    %cst_197 = arith.constant 0.000000e+00 : f32
    %501 = vector.broadcast %cst_197 : f32 to vector<32x128xf32>
    %502 = arith.maximumf %500, %501 : vector<32x128xf32>
    %503 = arith.addf %502, %459 : vector<32x128xf32>
    %c0_198 = arith.constant 0 : index
    %c0_199 = arith.constant 0 : index
    %504 = vector.load %arg13[%c0_198, %c0_199] : memref<32x32xf32, #tpu.memory_space<vmem>>, vector<32x32xf32>
    %cst_200 = arith.constant dense<0.000000e+00> : vector<32x128xf32>
    %505 = tpu.matmul %504, %503, %cst_200 {dimension_numbers = #tpu.dot_dimension_numbers<[1], [0], [0], [1], [0, 0, 1, 1], [], []>} : vector<32x32xf32>, vector<32x128xf32>, vector<32x128xf32> -> vector<32x128xf32>
    %c0_201 = arith.constant 0 : index
    %c0_202 = arith.constant 0 : index
    %506 = vector.load %arg14[%c0_201, %c0_202] : memref<32x1xf32, #tpu.memory_space<vmem>>, vector<32x1xf32>
    %507 = vector.broadcast %506 : vector<32x1xf32> to vector<32x128xf32>
    %508 = arith.addf %505, %507 : vector<32x128xf32>
    %cst_203 = arith.constant 0.000000e+00 : f32
    %509 = vector.broadcast %cst_203 : f32 to vector<32x128xf32>
    %510 = arith.maximumf %508, %509 : vector<32x128xf32>
    %c0_204 = arith.constant 0 : index
    %c0_205 = arith.constant 0 : index
    %511 = vector.load %arg15[%c0_204, %c0_205] : memref<4x32xf32, #tpu.memory_space<vmem>>, vector<4x32xf32>
    %cst_206 = arith.constant dense<0.000000e+00> : vector<4x128xf32>
    %512 = tpu.matmul %511, %510, %cst_206 {dimension_numbers = #tpu.dot_dimension_numbers<[1], [0], [0], [1], [0, 0, 1, 1], [], []>} : vector<4x32xf32>, vector<32x128xf32>, vector<4x128xf32> -> vector<4x128xf32>
    %c0_207 = arith.constant 0 : index
    %c0_208 = arith.constant 0 : index
    %513 = vector.load %arg16[%c0_207, %c0_208] : memref<4x1xf32, #tpu.memory_space<vmem>>, vector<4x1xf32>
    %514 = vector.broadcast %513 : vector<4x1xf32> to vector<4x128xf32>
    %515 = arith.addf %512, %514 : vector<4x128xf32>
    %c0_209 = arith.constant 0 : index
    %c0_210 = arith.constant 0 : index
    %516 = vector.load %arg17[%c0_209, %c0_210] : memref<4x128xf32, #tpu.memory_space<vmem>>, vector<4x128xf32>
    tpu.vector_store %arg17[%c0_209, %c0_210], %515 {strides = array<i32>} : memref<4x128xf32, #tpu.memory_space<vmem>>, vector<4x128xf32>,
    return
  }
}

</mosaic_0001>

<llo_original>
// kernel: tpu_custom_call.1
$region0: #{tpu_custom_call.1}
  #allocation0 [shape = 'u32[]', space=smem, size = 0x4, offset = 0x4, fixed_abs, tag = 'smem constant byte address 0x4 - core index']
  #allocation1 [shape = 'u32[144,128]{1,0:T(1,128)}', space=vmem, size = 0x12000, scoped, tag = 'internal scratch']
  %s0 = inlined_call_operand.vmem [shape: f32[1,128], index: 0, kind: input, shape index: {}]
  %s1 = inlined_call_operand.vmem [shape: f32[8,128], index: 1, kind: input, shape index: {}]
  %s2 = inlined_call_operand.vmem [shape: f32[16,1], index: 2, kind: input, shape index: {}]
  %s3 = inlined_call_operand.vmem [shape: f32[32,32], index: 3, kind: input, shape index: {}]
  %s4 = inlined_call_operand.vmem [shape: f32[32,1], index: 4, kind: input, shape index: {}]
  %s5 = inlined_call_operand.vmem [shape: f32[32,72], index: 5, kind: input, shape index: {}]
  %s6 = inlined_call_operand.vmem [shape: f32[32,1], index: 6, kind: input, shape index: {}]
  %s7 = inlined_call_operand.vmem [shape: f32[5,32,288], index: 7, kind: input, shape index: {}]
  %s8 = inlined_call_operand.vmem [shape: f32[160,1], index: 8, kind: input, shape index: {}]
  %s9 = inlined_call_operand.vmem [shape: f32[160,32], index: 9, kind: input, shape index: {}]
  %s10 = inlined_call_operand.vmem [shape: f32[160,1], index: 10, kind: input, shape index: {}]
  %s11 = inlined_call_operand.vmem [shape: f32[160,1], index: 11, kind: input, shape index: {}]
  %s12 = inlined_call_operand.vmem [shape: f32[160,1], index: 12, kind: input, shape index: {}]
  %s13 = inlined_call_operand.vmem [shape: f32[32,32], index: 13, kind: input, shape index: {}]
  %s14 = inlined_call_operand.vmem [shape: f32[32,1], index: 14, kind: input, shape index: {}]
  %s15 = inlined_call_operand.vmem [shape: f32[4,32], index: 15, kind: input, shape index: {}]
  %s16 = inlined_call_operand.vmem [shape: f32[4,1], index: 16, kind: input, shape index: {}]
  %s17 = inlined_call_operand.hbm [shape: f32[4,128], index: 17, kind: output, shape index: {}]
  %s18 = sld [smem:[#allocation0]]
  $region78: #{tpu_custom_call.1} parent=0
    _
  %s20 = ssub.s32 1, %s18
  %s21 = scalar_select 0, %s20, %s18
  $region1: #{tpu_custom_call.1} parent=0
    #allocation2 [shape = 'u8[2048]{0}', space=vmem, size = 0x800, scoped, tag = 'output window, operand 0, single buffered']
    #allocation3 [shape = 's32[1]{0}', space=sflag, size = 0x4, scoped, tag = 'scoped memory for tpu_custom_call.1']
    %22 = vsyncpa [#allocation3], 0
    // Predicated region
    $region2: #{tpu_custom_call.1} parent=1 // pred_check
      _
    $region3: #{tpu_custom_call.1} parent=1 // pred_check_branch
      %24 = sbr.rel (0) target = $region5
    $region4: #{tpu_custom_call.1} parent=1 // pred_region
      _
    $region5: #{tpu_custom_call.1} parent=1 // pred_fallthru
      _
    // Predicated region
    $region6: #{tpu_custom_call.1} parent=1 // pred_check
      _
    $region7: #{tpu_custom_call.1} parent=1 // pred_check_branch
      %26 = sbr.rel (0) target = $region9
    $region8: #{tpu_custom_call.1} parent=1 // pred_region
      _
    $region9: #{tpu_custom_call.1} parent=1 // pred_fallthru
      _
    // Predicated region
    $region10: #{tpu_custom_call.1} parent=1 // pred_check
      _
    $region11: #{tpu_custom_call.1} parent=1 // pred_check_branch
      %28 = sbr.rel (0) target = $region13
    $region12: #{tpu_custom_call.1} parent=1 // pred_region
      _
    $region13: #{tpu_custom_call.1} parent=1 // pred_fallthru
      _
    // Predicated region
    $region14: #{tpu_custom_call.1} parent=1 // pred_check
      _
    $region15: #{tpu_custom_call.1} parent=1 // pred_check_branch
      %30 = sbr.rel (0) target = $region17
    $region16: #{tpu_custom_call.1} parent=1 // pred_region
      _
    $region17: #{tpu_custom_call.1} parent=1 // pred_fallthru
      _
    // Predicated region
    $region18: #{tpu_custom_call.1} parent=1 // pred_check
      _
    $region19: #{tpu_custom_call.1} parent=1 // pred_check_branch
      %32 = sbr.rel (0) target = $region21
    $region20: #{tpu_custom_call.1} parent=1 // pred_region
      _
    $region21: #{tpu_custom_call.1} parent=1 // pred_fallthru
      _
    // Predicated region
    $region22: #{tpu_custom_call.1} parent=1 // pred_check
      _
    $region23: #{tpu_custom_call.1} parent=1 // pred_check_branch
      %34 = sbr.rel (0) target = $region25
    $region24: #{tpu_custom_call.1} parent=1 // pred_region
      _
    $region25: #{tpu_custom_call.1} parent=1 // pred_fallthru
      _
    // Predicated region
    $region26: #{tpu_custom_call.1} parent=1 // pred_check
      _
    $region27: #{tpu_custom_call.1} parent=1 // pred_check_branch
      %36 = sbr.rel (0) target = $region29
    $region28: #{tpu_custom_call.1} parent=1 // pred_region
      _
    $region29: #{tpu_custom_call.1} parent=1 // pred_fallthru
      _
    // Predicated region
    $region30: #{tpu_custom_call.1} parent=1 // pred_check
      _
    $region31: #{tpu_custom_call.1} parent=1 // pred_check_branch
      %38 = sbr.rel (0) target = $region33
    $region32: #{tpu_custom_call.1} parent=1 // pred_region
      _
    $region33: #{tpu_custom_call.1} parent=1 // pred_fallthru
      _
    // Predicated region
    $region34: #{tpu_custom_call.1} parent=1 // pred_check
      _
    $region35: #{tpu_custom_call.1} parent=1 // pred_check_branch
      %40 = sbr.rel (0) target = $region37
    $region36: #{tpu_custom_call.1} parent=1 // pred_region
      _
    $region37: #{tpu_custom_call.1} parent=1 // pred_fallthru
      _
    // Predicated region
    $region38: #{tpu_custom_call.1} parent=1 // pred_check
      _
    $region39: #{tpu_custom_call.1} parent=1 // pred_check_branch
      %42 = sbr.rel (0) target = $region41
    $region40: #{tpu_custom_call.1} parent=1 // pred_region
      _
    $region41: #{tpu_custom_call.1} parent=1 // pred_fallthru
      _
    // Predicated region
    $region42: #{tpu_custom_call.1} parent=1 // pred_check
      _
    $region43: #{tpu_custom_call.1} parent=1 // pred_check_branch
      %44 = sbr.rel (0) target = $region45
    $region44: #{tpu_custom_call.1} parent=1 // pred_region
      _
    $region45: #{tpu_custom_call.1} parent=1 // pred_fallthru
      _
    // Predicated region
    $region46: #{tpu_custom_call.1} parent=1 // pred_check
      _
    $region47: #{tpu_custom_call.1} parent=1 // pred_check_branch
      %46 = sbr.rel (0) target = $region49
    $region48: #{tpu_custom_call.1} parent=1 // pred_region
      _
    $region49: #{tpu_custom_call.1} parent=1 // pred_fallthru
      _
    // Predicated region
    $region50: #{tpu_custom_call.1} parent=1 // pred_check
      _
    $region51: #{tpu_custom_call.1} parent=1 // pred_check_branch
      %48 = sbr.rel (0) target = $region53
    $region52: #{tpu_custom_call.1} parent=1 // pred_region
      _
    $region53: #{tpu_custom_call.1} parent=1 // pred_fallthru
      _
    // Predicated region
    $region54: #{tpu_custom_call.1} parent=1 // pred_check
      _
    $region55: #{tpu_custom_call.1} parent=1 // pred_check_branch
      %50 = sbr.rel (0) target = $region57
    $region56: #{tpu_custom_call.1} parent=1 // pred_region
      _
    $region57: #{tpu_custom_call.1} parent=1 // pred_fallthru
      _
    // Predicated region
    $region58: #{tpu_custom_call.1} parent=1 // pred_check
      _
    $region59: #{tpu_custom_call.1} parent=1 // pred_check_branch
      %52 = sbr.rel (0) target = $region61
    $region60: #{tpu_custom_call.1} parent=1 // pred_region
      _
    $region61: #{tpu_custom_call.1} parent=1 // pred_fallthru
      _
    // Predicated region
    $region62: #{tpu_custom_call.1} parent=1 // pred_check
      _
    $region63: #{tpu_custom_call.1} parent=1 // pred_check_branch
      %54 = sbr.rel (0) target = $region65
    $region64: #{tpu_custom_call.1} parent=1 // pred_region
      _
    $region65: #{tpu_custom_call.1} parent=1 // pred_fallthru
      _
    // Predicated region
    $region66: #{tpu_custom_call.1} parent=1 // pred_check
      _
    $region67: #{tpu_custom_call.1} parent=1 // pred_check_branch
      %56 = sbr.rel (0) target = $region69
    $region68: #{tpu_custom_call.1} parent=1 // pred_region
      _
    $region69: #{tpu_custom_call.1} parent=1 // pred_fallthru
      _
    %v57 = vlaneseq
    %v58 = vand.u32 %v57, 127
    %vm59 = vcmp.lt.s32.totalorder %v58, 0
    %v60 = vsub.s32 0, %v58
    %v61 = vsel %vm59, %v60, %v58
    %v62 = vshrl.u32 %v61, 6
    %v63 = vand.u32 %v61, 63
    %v64 = vsub.s32 0, %v63
    %v65 = vsel %vm59, %v64, %v63
    %vm66 = vcmp.ne.s32.totalorder %v65, 0
    %vm67 = vcmp.lt.s32.totalorder %v65, 0
    %vm68 = vmand %vm67, %vm66
    %v69 = vadd.s32 %v65, 64
    %v70 = vsel %vm68, %v69, %v65
    %v71 = vld [vmem:[%s2] sm:$0xff]
    %v72 = vld [vmem:[%s2 + $0x8] sm:$0xff]
    %v73 = vld [vmem:[%s0] sm:$0x1]
    %75 = vset.pattern.permute.xlu0 0
    %76 = vperm.xlu0 %75, %v71
    %v77 = vpop.permute.xlu0 %76
    %80 = vset.pattern.permute.xlu0 0
    %81 = vperm.xlu0 %80, %v72
    %v82 = vpop.permute.xlu0 %81
    %v85 = vlaneseq
    %v86 = vshrl.u32 %v85, 7
    %v87 = vsub.s32 0, %v86
    %v88 = vrot.slane %v73, %v87
    %v90 = vmul.f32 %v77, %v88
    %v91 = vmul.f32 %v82, %v88
    %v92 = vmul.f32 %v90, 6.2831855
    %v93 = vmul.f32 %v91, 6.2831855
    %v94 = vand.u32 2147483647, %v92
    %vm95 = vcmp.le.f32.partialorder %v94, 0.7853982
    %vm96 = vcmp.lt.s32.totalorder %v92, 0
    %v97 = vand.u32 %v92, 2139095040
    %v98 = vshrl.u32 %v97, 23
    %v99 = vsub.s32 %v98, 127
    %v100 = vand.u32 2147483647, %v92
    %v101 = vand.u32 %v100, 8388607
    %v102 = vor.u32 %v101, 8388608
    %v103 = vsub.s32 0, %v102
    %v104 = vadd.s32 %v99, 1
    %vm105 = vcmp.gt.s32.totalorder %v104, 0
    %v106 = vsel %vm105, %v104, 0
    %v107 = vshrl.u32 %v106, 5
    %v108 = vand.u32 %v106, 31
    %v109 = vsub.s32 32, %v108
    %v110 = vshrl.u32 683565275, %v109
    %v111 = vshll.u32 683565275, %v108
    %v112 = vshrl.u32 2475754826, %v109
    %v113 = vor.u32 %v111, %v112
    %v114 = vshll.u32 2475754826, %v108
    %v115 = vshrl.u32 2131351028, %v109
    %v116 = vor.u32 %v114, %v115
    %v117 = vshll.u32 2131351028, %v108
    %v118 = vshrl.u32 2102212464, %v109
    %v119 = vor.u32 %v117, %v118
    %v120 = vshll.u32 2102212464, %v108
    %v121 = vshrl.u32 920167782, %v109
    %v122 = vor.u32 %v120, %v121
    %v123 = vshll.u32 920167782, %v108
    %v124 = vshrl.u32 1326507024, %v109
    %v125 = vor.u32 %v123, %v124
    %vm126 = vcmp.lt.s32.totalorder %v107, 1
    %vm127 = vcmp.lt.s32.totalorder %v107, 2
    %vm128 = vcmp.lt.s32.totalorder %v107, 3
    %vm129 = vcmp.lt.s32.totalorder %v107, 4
    %v130 = vsel %vm126, %v110, %v113
    %v131 = vsel %vm129, %v119, 2102212464
    %v132 = vsel %vm128, %v116, %v131
    %v133 = vsel %vm127, %v130, %v132
    %v134 = vsel %vm126, %v113, %v116
    %v135 = vsel %vm129, %v122, 920167782
    %v136 = vsel %vm128, %v119, %v135
    %v137 = vsel %vm127, %v134, %v136
    %v138 = vsel %vm126, %v116, %v119
    %v139 = vsel %vm129, %v125, 1326507024
    %v140 = vsel %vm128, %v122, %v139
    %v141 = vsel %vm127, %v138, %v140
    %v142 = vshll.u32 %v102, 8
    %v143 = vmul.u32.u64.compose %v142, %v141
    %v144 = vextract.low.u32 %v143
    %v145 = vextract.high.u32 %v143
    %v146 = vmul.u32.u64.compose %v142, %v137
    %v147 = vextract.low.u32 %v146
    %v148 = vextract.high.u32 %v146
    %v149 = vmul.u32 %v142, %v133
    %v150 = vadd.s32 %v145, %v147
    %vm151 = vc.u32 %v145, %v147
    %v152 = vadd.s32 %v148, 1
    %v153 = vsel %vm151, %v152, %v148
    %v154 = vadd.s32 %v149, %v153
    %v155 = vadd.s32 %v154, 536870912
    %v156 = vshrl.u32 %v155, 30
    %v157 = vshll.u32 %v156, 30
    %v158 = vsub.s32 %v154, %v157
    %vm159 = vcmp.lt.s32.totalorder %v158, 0
    %v160 = vsub.s32 0, %v158
    %v161 = vsel %vm159, %v160, %v158
    %v162 = vclz %v161
    %v163 = vsub.s32 %v162, 2
    %vm164 = vcmp.gt.s32.totalorder 0, %v163
    %v165 = vsel %vm164, 0, %v163
    %v166 = vsub.s32 32, %v165
    %v167 = vshll.u32 %v158, %v165
    %v168 = vshrl.u32 %v150, %v166
    %v169 = vor.u32 %v167, %v168
    %v170 = vsub.s32 4294967266, %v165
    %v171 = vadd.s32 %v170, 127
    %v172 = vshll.u32 %v171, 23
    %v173 = vor.u32 4788187, %v172
    %v174 = vand.u32 2147483647, %v173
    %v176 = vcvt.s32.f32 %v169
    %v177 = vmul.f32 %v176, %v174
    %v178 = vxor.u32 %v177, 2147483648
    %v179 = vsel %vm96, %v178, %v177
    %v180 = vsub.s32 4, %v156
    %v181 = vsel %vm96, %v180, %v156
    %v182 = vsel %vm95, %v92, %v179
    %v183 = vsel %vm95, 0, %v181
    %v184 = vcosq.f32.pop %v182
    %v185 = vsinq.f32.pop %v182
    %vm186 = vweird.f32 %v92
    %v187 = vadd.s32 %v183, 3
    %v188 = vand.u32 %v187, 3
    %vm189 = vcmp.lt.s32.totalorder %v188, 2
    %vm190 = vcmp.eq.s32.totalorder %v188, 0
    %v191 = vxor.u32 %v185, 2147483648
    %v192 = vsel %vm190, %v184, %v191
    %vm193 = vcmp.eq.s32.totalorder %v188, 2
    %v194 = vxor.u32 %v184, 2147483648
    %v195 = vsel %vm193, %v194, %v185
    %v196 = vsel %vm189, %v192, %v195
    %v197 = vsel %vm186, nan, %v196
    %v198 = vand.u32 2147483647, %v93
    %vm199 = vcmp.le.f32.partialorder %v198, 0.7853982
    %vm200 = vcmp.lt.s32.totalorder %v93, 0
    %v201 = vand.u32 %v93, 2139095040
    %v202 = vshrl.u32 %v201, 23
    %v203 = vsub.s32 %v202, 127
    %v204 = vand.u32 2147483647, %v93
    %v205 = vand.u32 %v204, 8388607
    %v206 = vor.u32 %v205, 8388608
    %v207 = vsub.s32 0, %v206
    %v208 = vadd.s32 %v203, 1
    %vm209 = vcmp.gt.s32.totalorder %v208, 0
    %v210 = vsel %vm209, %v208, 0
    %v211 = vshrl.u32 %v210, 5
    %v212 = vand.u32 %v210, 31
    %v213 = vsub.s32 32, %v212
    %v214 = vshrl.u32 683565275, %v213
    %v215 = vshll.u32 683565275, %v212
    %v216 = vshrl.u32 2475754826, %v213
    %v217 = vor.u32 %v215, %v216
    %v218 = vshll.u32 2475754826, %v212
    %v219 = vshrl.u32 2131351028, %v213
    %v220 = vor.u32 %v218, %v219
    %v221 = vshll.u32 2131351028, %v212
    %v222 = vshrl.u32 2102212464, %v213
    %v223 = vor.u32 %v221, %v222
    %v224 = vshll.u32 2102212464, %v212
    %v225 = vshrl.u32 920167782, %v213
    %v226 = vor.u32 %v224, %v225
    %v227 = vshll.u32 920167782, %v212
    %v228 = vshrl.u32 1326507024, %v213
    %v229 = vor.u32 %v227, %v228
    %vm230 = vcmp.lt.s32.totalorder %v211, 1
    %vm231 = vcmp.lt.s32.totalorder %v211, 2
    %vm232 = vcmp.lt.s32.totalorder %v211, 3
    %vm233 = vcmp.lt.s32.totalorder %v211, 4
    %v234 = vsel %vm230, %v214, %v217
    %v235 = vsel %vm233, %v223, 2102212464
    %v236 = vsel %vm232, %v220, %v235
    %v237 = vsel %vm231, %v234, %v236
    %v238 = vsel %vm230, %v217, %v220
    %v239 = vsel %vm233, %v226, 920167782
    %v240 = vsel %vm232, %v223, %v239
    %v241 = vsel %vm231, %v238, %v240
    %v242 = vsel %vm230, %v220, %v223
    %v243 = vsel %vm233, %v229, 1326507024
    %v244 = vsel %vm232, %v226, %v243
    %v245 = vsel %vm231, %v242, %v244
    %v246 = vshll.u32 %v206, 8
    %v247 = vmul.u32.u64.compose %v246, %v245
    %v248 = vextract.low.u32 %v247
    %v249 = vextract.high.u32 %v247
    %v250 = vmul.u32.u64.compose %v246, %v241
    %v251 = vextract.low.u32 %v250
    %v252 = vextract.high.u32 %v250
    %v253 = vmul.u32 %v246, %v237
    %v254 = vadd.s32 %v249, %v251
    %vm255 = vc.u32 %v249, %v251
    %v256 = vadd.s32 %v252, 1
    %v257 = vsel %vm255, %v256, %v252
    %v258 = vadd.s32 %v253, %v257
    %v259 = vadd.s32 %v258, 536870912
    %v260 = vshrl.u32 %v259, 30
    %v261 = vshll.u32 %v260, 30
    %v262 = vsub.s32 %v258, %v261
    %vm263 = vcmp.lt.s32.totalorder %v262, 0
    %v264 = vsub.s32 0, %v262
    %v265 = vsel %vm263, %v264, %v262
    %v266 = vclz %v265
    %v267 = vsub.s32 %v266, 2
    %vm268 = vcmp.gt.s32.totalorder 0, %v267
    %v269 = vsel %vm268, 0, %v267
    %v270 = vsub.s32 32, %v269
    %v271 = vshll.u32 %v262, %v269
    %v272 = vshrl.u32 %v254, %v270
    %v273 = vor.u32 %v271, %v272
    %v274 = vsub.s32 4294967266, %v269
    %v275 = vadd.s32 %v274, 127
    %v276 = vshll.u32 %v275, 23
    %v277 = vor.u32 4788187, %v276
    %v278 = vand.u32 2147483647, %v277
    %v280 = vcvt.s32.f32 %v273
    %v281 = vmul.f32 %v280, %v278
    %v282 = vxor.u32 %v281, 2147483648
    %v283 = vsel %vm200, %v282, %v281
    %v284 = vsub.s32 4, %v260
    %v285 = vsel %vm200, %v284, %v260
    %v286 = vsel %vm199, %v93, %v283
    %v287 = vsel %vm199, 0, %v285
    %v288 = vcosq.f32.pop %v286
    %v289 = vsinq.f32.pop %v286
    %vm290 = vweird.f32 %v93
    %v291 = vadd.s32 %v287, 3
    %v292 = vand.u32 %v291, 3
    %vm293 = vcmp.lt.s32.totalorder %v292, 2
    %vm294 = vcmp.eq.s32.totalorder %v292, 0
    %v295 = vxor.u32 %v289, 2147483648
    %v296 = vsel %vm294, %v288, %v295
    %vm297 = vcmp.eq.s32.totalorder %v292, 2
    %v298 = vxor.u32 %v288, 2147483648
    %v299 = vsel %vm297, %v298, %v289
    %v300 = vsel %vm293, %v296, %v299
    %v301 = vsel %vm290, nan, %v300
    %v302 = vand.u32 2147483647, %v92
    %vm303 = vcmp.le.f32.partialorder %v302, 0.7853982
    %vm304 = vcmp.lt.s32.totalorder %v92, 0
    %v305 = vand.u32 %v92, 2139095040
    %v306 = vshrl.u32 %v305, 23
    %v307 = vsub.s32 %v306, 127
    %v308 = vand.u32 2147483647, %v92
    %v309 = vand.u32 %v308, 8388607
    %v310 = vor.u32 %v309, 8388608
    %v311 = vsub.s32 0, %v310
    %v312 = vadd.s32 %v307, 1
    %vm313 = vcmp.gt.s32.totalorder %v312, 0
    %v314 = vsel %vm313, %v312, 0
    %v315 = vshrl.u32 %v314, 5
    %v316 = vand.u32 %v314, 31
    %v317 = vsub.s32 32, %v316
    %v318 = vshrl.u32 683565275, %v317
    %v319 = vshll.u32 683565275, %v316
    %v320 = vshrl.u32 2475754826, %v317
    %v321 = vor.u32 %v319, %v320
    %v322 = vshll.u32 2475754826, %v316
    %v323 = vshrl.u32 2131351028, %v317
    %v324 = vor.u32 %v322, %v323
    %v325 = vshll.u32 2131351028, %v316
    %v326 = vshrl.u32 2102212464, %v317
    %v327 = vor.u32 %v325, %v326
    %v328 = vshll.u32 2102212464, %v316
    %v329 = vshrl.u32 920167782, %v317
    %v330 = vor.u32 %v328, %v329
    %v331 = vshll.u32 920167782, %v316
    %v332 = vshrl.u32 1326507024, %v317
    %v333 = vor.u32 %v331, %v332
    %vm334 = vcmp.lt.s32.totalorder %v315, 1
    %vm335 = vcmp.lt.s32.totalorder %v315, 2
    %vm336 = vcmp.lt.s32.totalorder %v315, 3
    %vm337 = vcmp.lt.s32.totalorder %v315, 4
    %v338 = vsel %vm334, %v318, %v321
    %v339 = vsel %vm337, %v327, 2102212464
    %v340 = vsel %vm336, %v324, %v339
    %v341 = vsel %vm335, %v338, %v340
    %v342 = vsel %vm334, %v321, %v324
    %v343 = vsel %vm337, %v330, 920167782
    %v344 = vsel %vm336, %v327, %v343
    %v345 = vsel %vm335, %v342, %v344
    %v346 = vsel %vm334, %v324, %v327
    %v347 = vsel %vm337, %v333, 1326507024
    %v348 = vsel %vm336, %v330, %v347
    %v349 = vsel %vm335, %v346, %v348
    %v350 = vshll.u32 %v310, 8
    %v351 = vmul.u32.u64.compose %v350, %v349
    %v352 = vextract.low.u32 %v351
    %v353 = vextract.high.u32 %v351
    %v354 = vmul.u32.u64.compose %v350, %v345
    %v355 = vextract.low.u32 %v354
    %v356 = vextract.high.u32 %v354
    %v357 = vmul.u32 %v350, %v341
    %v358 = vadd.s32 %v353, %v355
    %vm359 = vc.u32 %v353, %v355
    %v360 = vadd.s32 %v356, 1
    %v361 = vsel %vm359, %v360, %v356
    %v362 = vadd.s32 %v357, %v361
    %v363 = vadd.s32 %v362, 536870912
    %v364 = vshrl.u32 %v363, 30
    %v365 = vshll.u32 %v364, 30
    %v366 = vsub.s32 %v362, %v365
    %vm367 = vcmp.lt.s32.totalorder %v366, 0
    %v368 = vsub.s32 0, %v366
    %v369 = vsel %vm367, %v368, %v366
    %v370 = vclz %v369
    %v371 = vsub.s32 %v370, 2
    %vm372 = vcmp.gt.s32.totalorder 0, %v371
    %v373 = vsel %vm372, 0, %v371
    %v374 = vsub.s32 32, %v373
    %v375 = vshll.u32 %v366, %v373
    %v376 = vshrl.u32 %v358, %v374
    %v377 = vor.u32 %v375, %v376
    %v378 = vsub.s32 4294967266, %v373
    %v379 = vadd.s32 %v378, 127
    %v380 = vshll.u32 %v379, 23
    %v381 = vor.u32 4788187, %v380
    %v382 = vand.u32 2147483647, %v381
    %v384 = vcvt.s32.f32 %v377
    %v385 = vmul.f32 %v384, %v382
    %v386 = vxor.u32 %v385, 2147483648
    %v387 = vsel %vm304, %v386, %v385
    %v388 = vsub.s32 4, %v364
    %v389 = vsel %vm304, %v388, %v364
    %v390 = vsel %vm303, %v92, %v387
    %v391 = vsel %vm303, 0, %v389
    %v392 = vcosq.f32.pop %v390
    %v393 = vsinq.f32.pop %v390
    %vm394 = vweird.f32 %v92
    %v395 = vand.u32 %v391, 3
    %vm396 = vcmp.lt.s32.totalorder %v395, 2
    %vm397 = vcmp.eq.s32.totalorder %v395, 0
    %v398 = vxor.u32 %v393, 2147483648
    %v399 = vsel %vm397, %v392, %v398
    %vm400 = vcmp.eq.s32.totalorder %v395, 2
    %v401 = vxor.u32 %v392, 2147483648
    %v402 = vsel %vm400, %v401, %v393
    %v403 = vsel %vm396, %v399, %v402
    %v404 = vsel %vm394, nan, %v403
    %v405 = vand.u32 2147483647, %v93
    %vm406 = vcmp.le.f32.partialorder %v405, 0.7853982
    %vm407 = vcmp.lt.s32.totalorder %v93, 0
    %v408 = vand.u32 %v93, 2139095040
    %v409 = vshrl.u32 %v408, 23
    %v410 = vsub.s32 %v409, 127
    %v411 = vand.u32 2147483647, %v93
    %v412 = vand.u32 %v411, 8388607
    %v413 = vor.u32 %v412, 8388608
    %v414 = vsub.s32 0, %v413
    %v415 = vadd.s32 %v410, 1
    %vm416 = vcmp.gt.s32.totalorder %v415, 0
    %v417 = vsel %vm416, %v415, 0
    %v418 = vshrl.u32 %v417, 5
    %v419 = vand.u32 %v417, 31
    %v420 = vsub.s32 32, %v419
    %v421 = vshrl.u32 683565275, %v420
    %v422 = vshll.u32 683565275, %v419
    %v423 = vshrl.u32 2475754826, %v420
    %v424 = vor.u32 %v422, %v423
    %v425 = vshll.u32 2475754826, %v419
    %v426 = vshrl.u32 2131351028, %v420
    %v427 = vor.u32 %v425, %v426
    %v428 = vshll.u32 2131351028, %v419
    %v429 = vshrl.u32 2102212464, %v420
    %v430 = vor.u32 %v428, %v429
    %v431 = vshll.u32 2102212464, %v419
    %v432 = vshrl.u32 920167782, %v420
    %v433 = vor.u32 %v431, %v432
    %v434 = vshll.u32 920167782, %v419
    %v435 = vshrl.u32 1326507024, %v420
    %v436 = vor.u32 %v434, %v435
    %vm437 = vcmp.lt.s32.totalorder %v418, 1
    %vm438 = vcmp.lt.s32.totalorder %v418, 2
    %vm439 = vcmp.lt.s32.totalorder %v418, 3
    %vm440 = vcmp.lt.s32.totalorder %v418, 4
    %v441 = vsel %vm437, %v421, %v424
    %v442 = vsel %vm440, %v430, 2102212464
    %v443 = vsel %vm439, %v427, %v442
    %v444 = vsel %vm438, %v441, %v443
    %v445 = vsel %vm437, %v424, %v427
    %v446 = vsel %vm440, %v433, 920167782
    %v447 = vsel %vm439, %v430, %v446
    %v448 = vsel %vm438, %v445, %v447
    %v449 = vsel %vm437, %v427, %v430
    %v450 = vsel %vm440, %v436, 1326507024
    %v451 = vsel %vm439, %v433, %v450
    %v452 = vsel %vm438, %v449, %v451
    %v453 = vshll.u32 %v413, 8
    %v454 = vmul.u32.u64.compose %v453, %v452
    %v455 = vextract.low.u32 %v454
    %v456 = vextract.high.u32 %v454
    %v457 = vmul.u32.u64.compose %v453, %v448
    %v458 = vextract.low.u32 %v457
    %v459 = vextract.high.u32 %v457
    %v460 = vmul.u32 %v453, %v444
    %v461 = vadd.s32 %v456, %v458
    %vm462 = vc.u32 %v456, %v458
    %v463 = vadd.s32 %v459, 1
    %v464 = vsel %vm462, %v463, %v459
    %v465 = vadd.s32 %v460, %v464
    %v466 = vadd.s32 %v465, 536870912
    %v467 = vshrl.u32 %v466, 30
    %v468 = vshll.u32 %v467, 30
    %v469 = vsub.s32 %v465, %v468
    %vm470 = vcmp.lt.s32.totalorder %v469, 0
    %v471 = vsub.s32 0, %v469
    %v472 = vsel %vm470, %v471, %v469
    %v473 = vclz %v472
    %v474 = vsub.s32 %v473, 2
    %vm475 = vcmp.gt.s32.totalorder 0, %v474
    %v476 = vsel %vm475, 0, %v474
    %v477 = vsub.s32 32, %v476
    %v478 = vshll.u32 %v469, %v476
    %v479 = vshrl.u32 %v461, %v477
    %v480 = vor.u32 %v478, %v479
    %v481 = vsub.s32 4294967266, %v476
    %v482 = vadd.s32 %v481, 127
    %v483 = vshll.u32 %v482, 23
    %v484 = vor.u32 4788187, %v483
    %v485 = vand.u32 2147483647, %v484
    %v487 = vcvt.s32.f32 %v480
    %v488 = vmul.f32 %v487, %v485
    %v489 = vxor.u32 %v488, 2147483648
    %v490 = vsel %vm407, %v489, %v488
    %v491 = vsub.s32 4, %v467
    %v492 = vsel %vm407, %v491, %v467
    %v493 = vsel %vm406, %v93, %v490
    %v494 = vsel %vm406, 0, %v492
    %v495 = vcosq.f32.pop %v493
    %v496 = vsinq.f32.pop %v493
    %vm497 = vweird.f32 %v93
    %v498 = vand.u32 %v494, 3
    %vm499 = vcmp.lt.s32.totalorder %v498, 2
    %vm500 = vcmp.eq.s32.totalorder %v498, 0
    %v501 = vxor.u32 %v496, 2147483648
    %v502 = vsel %vm500, %v495, %v501
    %vm503 = vcmp.eq.s32.totalorder %v498, 2
    %v504 = vxor.u32 %v495, 2147483648
    %v505 = vsel %vm503, %v504, %v496
    %v506 = vsel %vm499, %v502, %v505
    %v507 = vsel %vm497, nan, %v506
    %v508 = vld [vmem:[%s3] sm:$0xff]
    %v509 = vld [vmem:[%s3 + $0x8] sm:$0xff]
    %v510 = vld [vmem:[%s3 + $0x10] sm:$0xff]
    %v511 = vld [vmem:[%s3 + $0x18] sm:$0xff]
    %v512 = vld [vmem:[%s4] sm:$0xff]
    %v513 = vld [vmem:[%s4 + $0x8] sm:$0xff]
    %v514 = vld [vmem:[%s4 + $0x10] sm:$0xff]
    %v515 = vld [vmem:[%s4 + $0x18] sm:$0xff]
    %517 = vset.pattern.permute.xlu0 0
    %518 = vperm.xlu0 %517, %v512
    %v519 = vpop.permute.xlu0 %518
    %522 = vset.pattern.permute.xlu0 0
    %523 = vperm.xlu0 %522, %v513
    %v524 = vpop.permute.xlu0 %523
    %527 = vset.pattern.permute.xlu0 0
    %528 = vperm.xlu0 %527, %v514
    %v529 = vpop.permute.xlu0 %528
    %532 = vset.pattern.permute.xlu0 0
    %533 = vperm.xlu0 %532, %v515
    %v534 = vpop.permute.xlu0 %533
    %vm536 = vcmask 261120
    %v538 = vsel %vm536, %v508, 0
    %v541 = vsel %vm536, %v509, 0
    %v544 = vsel %vm536, %v510, 0
    %v547 = vsel %vm536, %v511, 0
    %549 = vmatprep.subr.mxu0 0.0
    %550 = vmatpush1.msra.mxu0 %v197
    %551 = vmatprep.subr.mxu0 0.0
    %552 = vmatpush1.msra.mxu0 %v301
    %553 = vmatprep.subr.mxu0 0.0
    %554 = vmatpush1.msra.mxu0 %v404
    %555 = vmatprep.subr.mxu0 0.0
    %556 = vmatpush1.msra.mxu0 %v507
    %557 = vmatprep.subr.mxu0 0.0
    %558 = vmatpush1.msra.mxu0 0.0
    %559 = vmatprep.subr.mxu0 0.0
    %560 = vmatpush1.msra.mxu0 0.0
    %561 = vmatprep.subr.mxu0 0.0
    %562 = vmatpush1.msra.mxu0 0.0
    %563 = vmatprep.subr.mxu0 0.0
    %564 = vmatpush1.msra.mxu0 0.0
    %565 = vmatprep.subr.mxu0 0.0
    %566 = vmatpush1.msra.mxu0 0.0
    %567 = vmatprep.subr.mxu0 0.0
    %568 = vmatpush1.msra.mxu0 0.0
    %569 = vmatprep.subr.mxu0 0.0
    %570 = vmatpush1.msra.mxu0 0.0
    %571 = vmatprep.subr.mxu0 0.0
    %572 = vmatpush1.msra.mxu0 0.0
    %573 = vmatprep.subr.mxu0 0.0
    %574 = vmatpush1.msra.mxu0 0.0
    %575 = vmatprep.subr.mxu0 0.0
    %576 = vmatpush1.msra.mxu0 0.0
    %577 = vmatprep.subr.mxu0 0.0
    %578 = vmatpush1.msra.mxu0 0.0
    %579 = vmatprep.subr.mxu0 0.0
    %580 = vmatpush1.msra.mxu0 0.0
    %581 = vmatprep.subr.mxu0 0.0
    %582 = vmatpush1.msra.mxu0 0.0
    %583 = vmatprep.subr.mxu0 0.0
    %584 = vmatpush1.msra.mxu0 0.0
    %585 = vmatprep.subr.mxu0 0.0
    %586 = vmatpush1.msra.mxu0 0.0
    %587 = vmatprep.subr.mxu0 0.0
    %588 = vmatpush1.msra.mxu0 0.0
    %589 = vmatprep.subr.mxu0 0.0
    %590 = vmatpush1.msra.mxu0 0.0
    %591 = vmatprep.subr.mxu0 0.0
    %592 = vmatpush1.msra.mxu0 0.0
    %593 = vmatprep.subr.mxu0 0.0
    %594 = vmatpush1.msra.mxu0 0.0
    %595 = vmatprep.subr.mxu0 0.0
    %596 = vmatpush1.msra.mxu0 0.0
    %597 = vmatprep.subr.mxu0 0.0
    %598 = vmatpush1.msra.mxu0 0.0
    %599 = vmatprep.subr.mxu0 0.0
    %600 = vmatpush1.msra.mxu0 0.0
    %601 = vmatprep.subr.mxu0 0.0
    %602 = vmatpush1.msra.mxu0 0.0
    %603 = vmatprep.subr.mxu0 0.0
    %604 = vmatpush1.msra.mxu0 0.0
    %605 = vmatprep.subr.mxu0 0.0
    %606 = vmatpush1.msra.mxu0 0.0
    %607 = vmatprep.subr.mxu0 0.0
    %608 = vmatpush1.msra.mxu0 0.0
    %609 = vmatprep.subr.mxu0 0.0
    %610 = vmatpush1.msra.mxu0 0.0
    %611 = vmatprep.subr.mxu0 0.0
    %612 = vmatpush1.msra.mxu0 0.0
    %613 = vmatprep.mubr.f32.mxu0 0.0
    %614 = vmatmul.mubr.f32.gmra.mrb[0].mxu0 %v538
    %v615 = vpop.f32.mrb[0].mxu0
    %v616 = vadd.f32 %v519, %v615
    %v617 = vpop.f32.mrb[0].mxu0
    %618 = vmatprep.mubr.f32.mxu0 0.0
    %619 = vmatmul.mubr.f32.gmra.mrb[0].mxu0 %v541
    %v620 = vpop.f32.mrb[0].mxu0
    %v621 = vadd.f32 %v524, %v620
    %v622 = vpop.f32.mrb[0].mxu0
    %623 = vmatprep.mubr.f32.mxu0 0.0
    %624 = vmatmul.mubr.f32.gmra.mrb[0].mxu0 %v544
    %v625 = vpop.f32.mrb[0].mxu0
    %v626 = vadd.f32 %v529, %v625
    %v627 = vpop.f32.mrb[0].mxu0
    %628 = vmatprep.mubr.f32.mxu0 0.0
    %629 = vmatmul.mubr.f32.gmra.mrb[0].mxu0 %v547
    %v630 = vpop.f32.mrb[0].mxu0
    %v631 = vadd.f32 %v534, %v630
    %v632 = vpop.f32.mrb[0].mxu0
    %633 = vdwg.mxu0
    %v634 = vmax.f32 %v616, 0.0
    %v635 = vmax.f32 %v621, 0.0
    %v636 = vmax.f32 %v626, 0.0
    %v637 = vmax.f32 %v631, 0.0
    %v638 = vld [vmem:[%s9] sm:$0xff]
    %v639 = vld [vmem:[%s9 + $0x8] sm:$0xff]
    %v640 = vld [vmem:[%s9 + $0x10] sm:$0xff]
    %v641 = vld [vmem:[%s9 + $0x18] sm:$0xff]
    %v642 = vld [vmem:[%s9 + $0x20] sm:$0xff]
    %v643 = vld [vmem:[%s9 + $0x28] sm:$0xff]
    %v644 = vld [vmem:[%s9 + $0x30] sm:$0xff]
    %v645 = vld [vmem:[%s9 + $0x38] sm:$0xff]
    %v646 = vld [vmem:[%s9 + $0x40] sm:$0xff]
    %v647 = vld [vmem:[%s9 + $0x48] sm:$0xff]
    %v648 = vld [vmem:[%s9 + $0x50] sm:$0xff]
    %v649 = vld [vmem:[%s9 + $0x58] sm:$0xff]
    %v650 = vld [vmem:[%s9 + $0x60] sm:$0xff]
    %v651 = vld [vmem:[%s9 + $0x68] sm:$0xff]
    %v652 = vld [vmem:[%s9 + $0x70] sm:$0xff]
    %v653 = vld [vmem:[%s9 + $0x78] sm:$0xff]
    %v654 = vld [vmem:[%s9 + $0x80] sm:$0xff]
    %v655 = vld [vmem:[%s9 + $0x88] sm:$0xff]
    %v656 = vld [vmem:[%s9 + $0x90] sm:$0xff]
    %v657 = vld [vmem:[%s9 + $0x98] sm:$0xff]
    %v658 = vld [vmem:[%s10] sm:$0xff]
    %v659 = vld [vmem:[%s10 + $0x8] sm:$0xff]
    %v660 = vld [vmem:[%s10 + $0x10] sm:$0xff]
    %v661 = vld [vmem:[%s10 + $0x18] sm:$0xff]
    %v662 = vld [vmem:[%s10 + $0x20] sm:$0xff]
    %v663 = vld [vmem:[%s10 + $0x28] sm:$0xff]
    %v664 = vld [vmem:[%s10 + $0x30] sm:$0xff]
    %v665 = vld [vmem:[%s10 + $0x38] sm:$0xff]
    %v666 = vld [vmem:[%s10 + $0x40] sm:$0xff]
    %v667 = vld [vmem:[%s10 + $0x48] sm:$0xff]
    %v668 = vld [vmem:[%s10 + $0x50] sm:$0xff]
    %v669 = vld [vmem:[%s10 + $0x58] sm:$0xff]
    %v670 = vld [vmem:[%s10 + $0x60] sm:$0xff]
    %v671 = vld [vmem:[%s10 + $0x68] sm:$0xff]
    %v672 = vld [vmem:[%s10 + $0x70] sm:$0xff]
    %v673 = vld [vmem:[%s10 + $0x78] sm:$0xff]
    %v674 = vld [vmem:[%s10 + $0x80] sm:$0xff]
    %v675 = vld [vmem:[%s10 + $0x88] sm:$0xff]
    %v676 = vld [vmem:[%s10 + $0x90] sm:$0xff]
    %v677 = vld [vmem:[%s10 + $0x98] sm:$0xff]
    %679 = vset.pattern.permute.xlu0 0
    %680 = vperm.xlu0 %679, %v658
    %v681 = vpop.permute.xlu0 %680
    %684 = vset.pattern.permute.xlu0 0
    %685 = vperm.xlu0 %684, %v659
    %v686 = vpop.permute.xlu0 %685
    %689 = vset.pattern.permute.xlu0 0
    %690 = vperm.xlu0 %689, %v660
    %v691 = vpop.permute.xlu0 %690
    %694 = vset.pattern.permute.xlu0 0
    %695 = vperm.xlu0 %694, %v661
    %v696 = vpop.permute.xlu0 %695
    %699 = vset.pattern.permute.xlu0 0
    %700 = vperm.xlu0 %699, %v662
    %v701 = vpop.permute.xlu0 %700
    %704 = vset.pattern.permute.xlu0 0
    %705 = vperm.xlu0 %704, %v663
    %v706 = vpop.permute.xlu0 %705
    %709 = vset.pattern.permute.xlu0 0
    %710 = vperm.xlu0 %709, %v664
    %v711 = vpop.permute.xlu0 %710
    %714 = vset.pattern.permute.xlu0 0
    %715 = vperm.xlu0 %714, %v665
    %v716 = vpop.permute.xlu0 %715
    %719 = vset.pattern.permute.xlu0 0
    %720 = vperm.xlu0 %719, %v666
    %v721 = vpop.permute.xlu0 %720
    %724 = vset.pattern.permute.xlu0 0
    %725 = vperm.xlu0 %724, %v667
    %v726 = vpop.permute.xlu0 %725
    %729 = vset.pattern.permute.xlu0 0
    %730 = vperm.xlu0 %729, %v668
    %v731 = vpop.permute.xlu0 %730
    %734 = vset.pattern.permute.xlu0 0
    %735 = vperm.xlu0 %734, %v669
    %v736 = vpop.permute.xlu0 %735
    %739 = vset.pattern.permute.xlu0 0
    %740 = vperm.xlu0 %739, %v670
    %v741 = vpop.permute.xlu0 %740
    %744 = vset.pattern.permute.xlu0 0
    %745 = vperm.xlu0 %744, %v671
    %v746 = vpop.permute.xlu0 %745
    %749 = vset.pattern.permute.xlu0 0
    %750 = vperm.xlu0 %749, %v672
    %v751 = vpop.permute.xlu0 %750
    %754 = vset.pattern.permute.xlu0 0
    %755 = vperm.xlu0 %754, %v673
    %v756 = vpop.permute.xlu0 %755
    %759 = vset.pattern.permute.xlu0 0
    %760 = vperm.xlu0 %759, %v674
    %v761 = vpop.permute.xlu0 %760
    %764 = vset.pattern.permute.xlu0 0
    %765 = vperm.xlu0 %764, %v675
    %v766 = vpop.permute.xlu0 %765
    %769 = vset.pattern.permute.xlu0 0
    %770 = vperm.xlu0 %769, %v676
    %v771 = vpop.permute.xlu0 %770
    %774 = vset.pattern.permute.xlu0 0
    %775 = vperm.xlu0 %774, %v677
    %v776 = vpop.permute.xlu0 %775
    %v779 = vsel %vm536, %v638, 0
    %v782 = vsel %vm536, %v639, 0
    %v785 = vsel %vm536, %v640, 0
    %v788 = vsel %vm536, %v641, 0
    %v791 = vsel %vm536, %v642, 0
    %v794 = vsel %vm536, %v643, 0
    %v797 = vsel %vm536, %v644, 0
    %v800 = vsel %vm536, %v645, 0
    %v803 = vsel %vm536, %v646, 0
    %v806 = vsel %vm536, %v647, 0
    %v809 = vsel %vm536, %v648, 0
    %v812 = vsel %vm536, %v649, 0
    %v815 = vsel %vm536, %v650, 0
    %v818 = vsel %vm536, %v651, 0
    %v821 = vsel %vm536, %v652, 0
    %v824 = vsel %vm536, %v653, 0
    %v827 = vsel %vm536, %v654, 0
    %v830 = vsel %vm536, %v655, 0
    %v833 = vsel %vm536, %v656, 0
    %v836 = vsel %vm536, %v657, 0
    %838 = vmatprep.subr.mxu0 0.0
    %839 = vmatpush1.msra.mxu0 %v634
    %840 = vmatprep.subr.mxu0 0.0
    %841 = vmatpush1.msra.mxu0 %v635
    %842 = vmatprep.subr.mxu0 0.0
    %843 = vmatpush1.msra.mxu0 %v636
    %844 = vmatprep.subr.mxu0 0.0
    %845 = vmatpush1.msra.mxu0 %v637
    %846 = vmatprep.subr.mxu0 0.0
    %847 = vmatpush1.msra.mxu0 0.0
    %848 = vmatprep.subr.mxu0 0.0
    %849 = vmatpush1.msra.mxu0 0.0
    %850 = vmatprep.subr.mxu0 0.0
    %851 = vmatpush1.msra.mxu0 0.0
    %852 = vmatprep.subr.mxu0 0.0
    %853 = vmatpush1.msra.mxu0 0.0
    %854 = vmatprep.subr.mxu0 0.0
    %855 = vmatpush1.msra.mxu0 0.0
    %856 = vmatprep.subr.mxu0 0.0
    %857 = vmatpush1.msra.mxu0 0.0
    %858 = vmatprep.subr.mxu0 0.0
    %859 = vmatpush1.msra.mxu0 0.0
    %860 = vmatprep.subr.mxu0 0.0
    %861 = vmatpush1.msra.mxu0 0.0
    %862 = vmatprep.subr.mxu0 0.0
    %863 = vmatpush1.msra.mxu0 0.0
    %864 = vmatprep.subr.mxu0 0.0
    %865 = vmatpush1.msra.mxu0 0.0
    %866 = vmatprep.subr.mxu0 0.0
    %867 = vmatpush1.msra.mxu0 0.0
    %868 = vmatprep.subr.mxu0 0.0
    %869 = vmatpush1.msra.mxu0 0.0
    %870 = vmatprep.subr.mxu0 0.0
    %871 = vmatpush1.msra.mxu0 0.0
    %872 = vmatprep.subr.mxu0 0.0
    %873 = vmatpush1.msra.mxu0 0.0
    %874 = vmatprep.subr.mxu0 0.0
    %875 = vmatpush1.msra.mxu0 0.0
    %876 = vmatprep.subr.mxu0 0.0
    %877 = vmatpush1.msra.mxu0 0.0
    %878 = vmatprep.subr.mxu0 0.0
    %879 = vmatpush1.msra.mxu0 0.0
    %880 = vmatprep.subr.mxu0 0.0
    %881 = vmatpush1.msra.mxu0 0.0
    %882 = vmatprep.subr.mxu0 0.0
    %883 = vmatpush1.msra.mxu0 0.0
    %884 = vmatprep.subr.mxu0 0.0
    %885 = vmatpush1.msra.mxu0 0.0
    %886 = vmatprep.subr.mxu0 0.0
    %887 = vmatpush1.msra.mxu0 0.0
    %888 = vmatprep.subr.mxu0 0.0
    %889 = vmatpush1.msra.mxu0 0.0
    %890 = vmatprep.subr.mxu0 0.0
    %891 = vmatpush1.msra.mxu0 0.0
    %892 = vmatprep.subr.mxu0 0.0
    %893 = vmatpush1.msra.mxu0 0.0
    %894 = vmatprep.subr.mxu0 0.0
    %895 = vmatpush1.msra.mxu0 0.0
    %896 = vmatprep.subr.mxu0 0.0
    %897 = vmatpush1.msra.mxu0 0.0
    %898 = vmatprep.subr.mxu0 0.0
    %899 = vmatpush1.msra.mxu0 0.0
    %900 = vmatprep.subr.mxu0 0.0
    %901 = vmatpush1.msra.mxu0 0.0
    %902 = vmatprep.mubr.f32.mxu0 0.0
    %903 = vmatmul.mubr.f32.gmra.mrb[0].mxu0 %v779
    %v904 = vpop.f32.mrb[0].mxu0
    %v905 = vadd.f32 %v681, %v904
    %v906 = vpop.f32.mrb[0].mxu0
    %907 = vmatprep.mubr.f32.mxu0 0.0
    %908 = vmatmul.mubr.f32.gmra.mrb[0].mxu0 %v782
    %v909 = vpop.f32.mrb[0].mxu0
    %v910 = vadd.f32 %v686, %v909
    %v911 = vpop.f32.mrb[0].mxu0
    %912 = vmatprep.mubr.f32.mxu0 0.0
    %913 = vmatmul.mubr.f32.gmra.mrb[0].mxu0 %v785
    %v914 = vpop.f32.mrb[0].mxu0
    %v915 = vadd.f32 %v691, %v914
    %v916 = vpop.f32.mrb[0].mxu0
    %917 = vmatprep.mubr.f32.mxu0 0.0
    %918 = vmatmul.mubr.f32.gmra.mrb[0].mxu0 %v788
    %v919 = vpop.f32.mrb[0].mxu0
    %v920 = vadd.f32 %v696, %v919
    %v921 = vpop.f32.mrb[0].mxu0
    %922 = vmatprep.mubr.f32.mxu0 0.0
    %923 = vmatmul.mubr.f32.gmra.mrb[0].mxu0 %v791
    %v924 = vpop.f32.mrb[0].mxu0
    %v925 = vadd.f32 %v701, %v924
    %v926 = vpop.f32.mrb[0].mxu0
    %927 = vmatprep.mubr.f32.mxu0 0.0
    %928 = vmatmul.mubr.f32.gmra.mrb[0].mxu0 %v794
    %v929 = vpop.f32.mrb[0].mxu0
    %v930 = vadd.f32 %v706, %v929
    %v931 = vpop.f32.mrb[0].mxu0
    %932 = vmatprep.mubr.f32.mxu0 0.0
    %933 = vmatmul.mubr.f32.gmra.mrb[0].mxu0 %v797
    %v934 = vpop.f32.mrb[0].mxu0
    %v935 = vadd.f32 %v711, %v934
    %v936 = vpop.f32.mrb[0].mxu0
    %937 = vmatprep.mubr.f32.mxu0 0.0
    %938 = vmatmul.mubr.f32.gmra.mrb[0].mxu0 %v800
    %v939 = vpop.f32.mrb[0].mxu0
    %v940 = vadd.f32 %v716, %v939
    %v941 = vpop.f32.mrb[0].mxu0
    %942 = vmatprep.mubr.f32.mxu0 0.0
    %943 = vmatmul.mubr.f32.gmra.mrb[0].mxu0 %v803
    %v944 = vpop.f32.mrb[0].mxu0
    %v945 = vadd.f32 %v721, %v944
    %v946 = vpop.f32.mrb[0].mxu0
    %947 = vmatprep.mubr.f32.mxu0 0.0
    %948 = vmatmul.mubr.f32.gmra.mrb[0].mxu0 %v806
    %v949 = vpop.f32.mrb[0].mxu0
    %v950 = vadd.f32 %v726, %v949
    %v951 = vpop.f32.mrb[0].mxu0
    %952 = vmatprep.mubr.f32.mxu0 0.0
    %953 = vmatmul.mubr.f32.gmra.mrb[0].mxu0 %v809
    %v954 = vpop.f32.mrb[0].mxu0
    %v955 = vadd.f32 %v731, %v954
    %v956 = vpop.f32.mrb[0].mxu0
    %957 = vmatprep.mubr.f32.mxu0 0.0
    %958 = vmatmul.mubr.f32.gmra.mrb[0].mxu0 %v812
    %v959 = vpop.f32.mrb[0].mxu0
    %v960 = vadd.f32 %v736, %v959
    %v961 = vpop.f32.mrb[0].mxu0
    %962 = vmatprep.mubr.f32.mxu0 0.0
    %963 = vmatmul.mubr.f32.gmra.mrb[0].mxu0 %v815
    %v964 = vpop.f32.mrb[0].mxu0
    %v965 = vadd.f32 %v741, %v964
    %v966 = vpop.f32.mrb[0].mxu0
    %967 = vmatprep.mubr.f32.mxu0 0.0
    %968 = vmatmul.mubr.f32.gmra.mrb[0].mxu0 %v818
    %v969 = vpop.f32.mrb[0].mxu0
    %v970 = vadd.f32 %v746, %v969
    %v971 = vpop.f32.mrb[0].mxu0
    %972 = vmatprep.mubr.f32.mxu0 0.0
    %973 = vmatmul.mubr.f32.gmra.mrb[0].mxu0 %v821
    %v974 = vpop.f32.mrb[0].mxu0
    %v975 = vadd.f32 %v751, %v974
    %v976 = vpop.f32.mrb[0].mxu0
    %977 = vmatprep.mubr.f32.mxu0 0.0
    %978 = vmatmul.mubr.f32.gmra.mrb[0].mxu0 %v824
    %v979 = vpop.f32.mrb[0].mxu0
    %v980 = vadd.f32 %v756, %v979
    %v981 = vpop.f32.mrb[0].mxu0
    %982 = vmatprep.mubr.f32.mxu0 0.0
    %983 = vmatmul.mubr.f32.gmra.mrb[0].mxu0 %v827
    %v984 = vpop.f32.mrb[0].mxu0
    %v985 = vadd.f32 %v761, %v984
    %v986 = vpop.f32.mrb[0].mxu0
    %987 = vmatprep.mubr.f32.mxu0 0.0
    %988 = vmatmul.mubr.f32.gmra.mrb[0].mxu0 %v830
    %v989 = vpop.f32.mrb[0].mxu0
    %v990 = vadd.f32 %v766, %v989
    %v991 = vpop.f32.mrb[0].mxu0
    %992 = vmatprep.mubr.f32.mxu0 0.0
    %993 = vmatmul.mubr.f32.gmra.mrb[0].mxu0 %v833
    %v994 = vpop.f32.mrb[0].mxu0
    %v995 = vadd.f32 %v771, %v994
    %v996 = vpop.f32.mrb[0].mxu0
    %997 = vmatprep.mubr.f32.mxu0 0.0
    %998 = vmatmul.mubr.f32.gmra.mrb[0].mxu0 %v836
    %v999 = vpop.f32.mrb[0].mxu0
    %v1000 = vadd.f32 %v776, %v999
    %v1001 = vpop.f32.mrb[0].mxu0
    %1002 = vdwg.mxu0
    %v1003 = vld [vmem:[%s1] sm:$0xff]
    %1004 = vrot.lane.b32.xlu0 %v1003, 4
    %v1005 = vpop.permute.xlu0 %1004
    %vm1006 = vcmp.ge.s32.totalorder %v70, 4
    %v1007 = vsel %vm1006, 1, 0
    %vm1008 = vcmp.eq.s32.totalorder %v1007, 1
    %v1009 = vsel %vm1008, %v1005, 0.0
    %1010 = vrot.lane.b32.xlu0 %v1003, 3
    %v1011 = vpop.permute.xlu0 %1010
    %vm1012 = vcmp.ge.s32.totalorder %v70, 3
    %v1013 = vsel %vm1012, 1, 0
    %vm1014 = vcmp.eq.s32.totalorder %v1013, 1
    %v1015 = vsel %vm1014, %v1011, 0.0
    %1016 = vrot.lane.b32.xlu0 %v1003, 2
    %v1017 = vpop.permute.xlu0 %1016
    %vm1018 = vcmp.ge.s32.totalorder %v70, 2
    %v1019 = vsel %vm1018, 1, 0
    %vm1020 = vcmp.eq.s32.totalorder %v1019, 1
    %v1021 = vsel %vm1020, %v1017, 0.0
    %1022 = vrot.lane.b32.xlu0 %v1003, 1
    %v1023 = vpop.permute.xlu0 %1022
    %vm1024 = vcmp.ge.s32.totalorder %v70, 1
    %v1025 = vsel %vm1024, 1, 0
    %vm1026 = vcmp.eq.s32.totalorder %v1025, 1
    %v1027 = vsel %vm1026, %v1023, 0.0
    %1028 = vrot.lane.b32.xlu0 %v1003, 127
    %v1029 = vpop.permute.xlu0 %1028
    %vm1030 = vcmp.lt.s32.totalorder %v70, 63
    %v1031 = vsel %vm1030, 1, 0
    %vm1032 = vcmp.eq.s32.totalorder %v1031, 1
    %v1033 = vsel %vm1032, %v1029, 0.0
    %1034 = vrot.lane.b32.xlu0 %v1003, 126
    %v1035 = vpop.permute.xlu0 %1034
    %vm1036 = vcmp.lt.s32.totalorder %v70, 62
    %v1037 = vsel %vm1036, 1, 0
    %vm1038 = vcmp.eq.s32.totalorder %v1037, 1
    %v1039 = vsel %vm1038, %v1035, 0.0
    %1040 = vrot.lane.b32.xlu0 %v1003, 125
    %v1041 = vpop.permute.xlu0 %1040
    %vm1042 = vcmp.lt.s32.totalorder %v70, 61
    %v1043 = vsel %vm1042, 1, 0
    %vm1044 = vcmp.eq.s32.totalorder %v1043, 1
    %v1045 = vsel %vm1044, %v1041, 0.0
    %1046 = vrot.lane.b32.xlu0 %v1003, 124
    %v1047 = vpop.permute.xlu0 %1046
    %vm1048 = vcmp.lt.s32.totalorder %v70, 60
    %v1049 = vsel %vm1048, 1, 0
    %vm1050 = vcmp.eq.s32.totalorder %v1049, 1
    %v1051 = vsel %vm1050, %v1047, 0.0
    %v1052 = vld [vmem:[%s5] sm:$0xff]
    %v1053 = vld [vmem:[%s5 + $0x8] sm:$0xff]
    %v1054 = vld [vmem:[%s5 + $0x10] sm:$0xff]
    %v1055 = vld [vmem:[%s5 + $0x18] sm:$0xff]
    %v1056 = vld [vmem:[%s6] sm:$0xff]
    %v1057 = vld [vmem:[%s6 + $0x8] sm:$0xff]
    %v1058 = vld [vmem:[%s6 + $0x10] sm:$0xff]
    %v1059 = vld [vmem:[%s6 + $0x18] sm:$0xff]
    %1061 = vset.pattern.permute.xlu0 0
    %1062 = vperm.xlu0 %1061, %v1056
    %v1063 = vpop.permute.xlu0 %1062
    %1066 = vset.pattern.permute.xlu0 0
    %1067 = vperm.xlu0 %1066, %v1057
    %v1068 = vpop.permute.xlu0 %1067
    %1071 = vset.pattern.permute.xlu0 0
    %1072 = vperm.xlu0 %1071, %v1058
    %v1073 = vpop.permute.xlu0 %1072
    %1076 = vset.pattern.permute.xlu0 0
    %1077 = vperm.xlu0 %1076, %v1059
    %v1078 = vpop.permute.xlu0 %1077
    %vm1080 = vcmask 588800
    %v1082 = vsel %vm1080, %v1052, 0
    %v1085 = vsel %vm1080, %v1053, 0
    %v1088 = vsel %vm1080, %v1054, 0
    %v1091 = vsel %vm1080, %v1055, 0
    %1093 = vmatprep.subr.mxu0 0.0
    %1094 = vmatpush1.msra.mxu0 %v1009
    %1095 = vmatprep.subr.mxu0 0.0
    %1096 = vmatpush1.msra.mxu0 %v1015
    %1097 = vmatprep.subr.mxu0 0.0
    %1098 = vmatpush1.msra.mxu0 %v1021
    %1099 = vmatprep.subr.mxu0 0.0
    %1100 = vmatpush1.msra.mxu0 %v1027
    %1101 = vmatprep.subr.mxu0 0.0
    %1102 = vmatpush1.msra.mxu0 %v1003
    %1103 = vmatprep.subr.mxu0 0.0
    %1104 = vmatpush1.msra.mxu0 %v1033
    %1105 = vmatprep.subr.mxu0 0.0
    %1106 = vmatpush1.msra.mxu0 %v1039
    %1107 = vmatprep.subr.mxu0 0.0
    %1108 = vmatpush1.msra.mxu0 %v1045
    %1109 = vmatprep.subr.mxu0 0.0
    %1110 = vmatpush1.msra.mxu0 %v1051
    %1111 = vmatprep.subr.mxu0 0.0
    %1112 = vmatpush1.msra.mxu0 0.0
    %1113 = vmatprep.subr.mxu0 0.0
    %1114 = vmatpush1.msra.mxu0 0.0
    %1115 = vmatprep.subr.mxu0 0.0
    %1116 = vmatpush1.msra.mxu0 0.0
    %1117 = vmatprep.subr.mxu0 0.0
    %1118 = vmatpush1.msra.mxu0 0.0
    %1119 = vmatprep.subr.mxu0 0.0
    %1120 = vmatpush1.msra.mxu0 0.0
    %1121 = vmatprep.subr.mxu0 0.0
    %1122 = vmatpush1.msra.mxu0 0.0
    %1123 = vmatprep.subr.mxu0 0.0
    %1124 = vmatpush1.msra.mxu0 0.0
    %1125 = vmatprep.subr.mxu0 0.0
    %1126 = vmatpush1.msra.mxu0 0.0
    %1127 = vmatprep.subr.mxu0 0.0
    %1128 = vmatpush1.msra.mxu0 0.0
    %1129 = vmatprep.subr.mxu0 0.0
    %1130 = vmatpush1.msra.mxu0 0.0
    %1131 = vmatprep.subr.mxu0 0.0
    %1132 = vmatpush1.msra.mxu0 0.0
    %1133 = vmatprep.subr.mxu0 0.0
    %1134 = vmatpush1.msra.mxu0 0.0
    %1135 = vmatprep.subr.mxu0 0.0
    %1136 = vmatpush1.msra.mxu0 0.0
    %1137 = vmatprep.subr.mxu0 0.0
    %1138 = vmatpush1.msra.mxu0 0.0
    %1139 = vmatprep.subr.mxu0 0.0
    %1140 = vmatpush1.msra.mxu0 0.0
    %1141 = vmatprep.subr.mxu0 0.0
    %1142 = vmatpush1.msra.mxu0 0.0
    %1143 = vmatprep.subr.mxu0 0.0
    %1144 = vmatpush1.msra.mxu0 0.0
    %1145 = vmatprep.subr.mxu0 0.0
    %1146 = vmatpush1.msra.mxu0 0.0
    %1147 = vmatprep.subr.mxu0 0.0
    %1148 = vmatpush1.msra.mxu0 0.0
    %1149 = vmatprep.subr.mxu0 0.0
    %1150 = vmatpush1.msra.mxu0 0.0
    %1151 = vmatprep.subr.mxu0 0.0
    %1152 = vmatpush1.msra.mxu0 0.0
    %1153 = vmatprep.subr.mxu0 0.0
    %1154 = vmatpush1.msra.mxu0 0.0
    %1155 = vmatprep.subr.mxu0 0.0
    %1156 = vmatpush1.msra.mxu0 0.0
    %1157 = vmatprep.mubr.f32.mxu0 0.0
    %1158 = vmatmul.mubr.f32.gmra.mrb[0].mxu0 %v1082
    %v1159 = vpop.f32.mrb[0].mxu0
    %v1160 = vadd.f32 %v1063, %v1159
    %v1161 = vpop.f32.mrb[0].mxu0
    %1162 = vmatprep.mubr.f32.mxu0 0.0
    %1163 = vmatmul.mubr.f32.gmra.mrb[0].mxu0 %v1085
    %v1164 = vpop.f32.mrb[0].mxu0
    %v1165 = vadd.f32 %v1068, %v1164
    %v1166 = vpop.f32.mrb[0].mxu0
    %1167 = vmatprep.mubr.f32.mxu0 0.0
    %1168 = vmatmul.mubr.f32.gmra.mrb[0].mxu0 %v1088
    %v1169 = vpop.f32.mrb[0].mxu0
    %v1170 = vadd.f32 %v1073, %v1169
    %v1171 = vpop.f32.mrb[0].mxu0
    %1172 = vmatprep.mubr.f32.mxu0 0.0
    %1173 = vmatmul.mubr.f32.gmra.mrb[0].mxu0 %v1091
    %v1174 = vpop.f32.mrb[0].mxu0
    %v1175 = vadd.f32 %v1078, %v1174
    %v1176 = vpop.f32.mrb[0].mxu0
    %1177 = vdwg.mxu0
    %v1178 = vmax.f32 %v1160, 0.0
    %v1179 = vmax.f32 %v1165, 0.0
    %v1180 = vmax.f32 %v1170, 0.0
    %v1181 = vmax.f32 %v1175, 0.0
    %v1182 = vadd.f32 %v1178, %v905
    %v1183 = vadd.f32 %v1179, %v910
    %v1184 = vadd.f32 %v1180, %v915
    %v1185 = vadd.f32 %v1181, %v920
    %v1186 = vadd.f32 %v1182, %v1183
    %v1187 = vadd.f32 %v1186, %v1184
    %v1188 = vadd.f32 %v1187, %v1185
    %v1189 = vrot.slane %v1188, 4
    %v1190 = vadd.f32 %v1188, %v1189
    %v1191 = vrot.slane %v1190, 2
    %v1192 = vadd.f32 %v1190, %v1191
    %v1193 = vrot.slane %v1192, 1
    %v1194 = vadd.f32 %v1192, %v1193
    %v1195 = vrcp.pop 32.0
    %v1196 = vmul.f32 %v1194, %v1195
    %v1197 = vsub.f32 %v1182, %v1196
    %v1198 = vsub.f32 %v1183, %v1196
    %v1199 = vsub.f32 %v1184, %v1196
    %v1200 = vsub.f32 %v1185, %v1196
    %v1201 = vmul.f32 %v1197, %v1197
    %v1202 = vmul.f32 %v1198, %v1198
    %v1203 = vmul.f32 %v1199, %v1199
    %v1204 = vmul.f32 %v1200, %v1200
    %v1205 = vadd.f32 %v1201, %v1202
    %v1206 = vadd.f32 %v1205, %v1203
    %v1207 = vadd.f32 %v1206, %v1204
    %v1208 = vrot.slane %v1207, 4
    %v1209 = vadd.f32 %v1207, %v1208
    %v1210 = vrot.slane %v1209, 2
    %v1211 = vadd.f32 %v1209, %v1210
    %v1212 = vrot.slane %v1211, 1
    %v1213 = vadd.f32 %v1211, %v1212
    %v1214 = vmul.f32 %v1213, %v1195
    %v1215 = vadd.f32 %v1214, 1e-05
    %v1216 = vrsqrt.pop %v1215
    %v1217 = vmul.f32 %v1197, %v1216
    %v1218 = vmul.f32 %v1198, %v1216
    %v1219 = vmul.f32 %v1199, %v1216
    %v1220 = vmul.f32 %v1200, %v1216
    %v1221 = vld [vmem:[%s11] sm:$0xff]
    %v1222 = vld [vmem:[%s11 + $0x8] sm:$0xff]
    %v1223 = vld [vmem:[%s11 + $0x10] sm:$0xff]
    %v1224 = vld [vmem:[%s11 + $0x18] sm:$0xff]
    %1226 = vset.pattern.permute.xlu0 0
    %1227 = vperm.xlu0 %1226, %v1221
    %v1228 = vpop.permute.xlu0 %1227
    %1231 = vset.pattern.permute.xlu0 0
    %1232 = vperm.xlu0 %1231, %v1222
    %v1233 = vpop.permute.xlu0 %1232
    %1236 = vset.pattern.permute.xlu0 0
    %1237 = vperm.xlu0 %1236, %v1223
    %v1238 = vpop.permute.xlu0 %1237
    %1241 = vset.pattern.permute.xlu0 0
    %1242 = vperm.xlu0 %1241, %v1224
    %v1243 = vpop.permute.xlu0 %1242
    %v1245 = vmul.f32 %v1217, %v1228
    %v1246 = vmul.f32 %v1218, %v1233
    %v1247 = vmul.f32 %v1219, %v1238
    %v1248 = vmul.f32 %v1220, %v1243
    %v1249 = vld [vmem:[%s12] sm:$0xff]
    %v1250 = vld [vmem:[%s12 + $0x8] sm:$0xff]
    %v1251 = vld [vmem:[%s12 + $0x10] sm:$0xff]
    %v1252 = vld [vmem:[%s12 + $0x18] sm:$0xff]
    %1254 = vset.pattern.permute.xlu0 0
    %1255 = vperm.xlu0 %1254, %v1249
    %v1256 = vpop.permute.xlu0 %1255
    %1259 = vset.pattern.permute.xlu0 0
    %1260 = vperm.xlu0 %1259, %v1250
    %v1261 = vpop.permute.xlu0 %1260
    %1264 = vset.pattern.permute.xlu0 0
    %1265 = vperm.xlu0 %1264, %v1251
    %v1266 = vpop.permute.xlu0 %1265
    %1269 = vset.pattern.permute.xlu0 0
    %1270 = vperm.xlu0 %1269, %v1252
    %v1271 = vpop.permute.xlu0 %1270
    %v1273 = vadd.f32 %v1245, %v1256
    %v1274 = vadd.f32 %v1246, %v1261
    %v1275 = vadd.f32 %v1247, %v1266
    %v1276 = vadd.f32 %v1248, %v1271
    %1277 = vrot.lane.b32.xlu0 %v1273, 4
    %v1278 = vpop.permute.xlu0 %1277
    %1279 = vrot.lane.b32.xlu0 %v1274, 4
    %v1280 = vpop.permute.xlu0 %1279
    %1281 = vrot.lane.b32.xlu0 %v1275, 4
    %v1282 = vpop.permute.xlu0 %1281
    %1283 = vrot.lane.b32.xlu0 %v1276, 4
    %v1284 = vpop.permute.xlu0 %1283
    %v1285 = vsel %vm1008, %v1278, 0.0
    %v1286 = vsel %vm1008, %v1280, 0.0
    %v1287 = vsel %vm1008, %v1282, 0.0
    %v1288 = vsel %vm1008, %v1284, 0.0
    %1289 = vrot.lane.b32.xlu0 %v1273, 3
    %v1290 = vpop.permute.xlu0 %1289
    %1291 = vrot.lane.b32.xlu0 %v1274, 3
    %v1292 = vpop.permute.xlu0 %1291
    %1293 = vrot.lane.b32.xlu0 %v1275, 3
    %v1294 = vpop.permute.xlu0 %1293
    %1295 = vrot.lane.b32.xlu0 %v1276, 3
    %v1296 = vpop.permute.xlu0 %1295
    %v1297 = vsel %vm1014, %v1290, 0.0
    %v1298 = vsel %vm1014, %v1292, 0.0
    %v1299 = vsel %vm1014, %v1294, 0.0
    %v1300 = vsel %vm1014, %v1296, 0.0
    %1301 = vrot.lane.b32.xlu0 %v1273, 2
    %v1302 = vpop.permute.xlu0 %1301
    %1303 = vrot.lane.b32.xlu0 %v1274, 2
    %v1304 = vpop.permute.xlu0 %1303
    %1305 = vrot.lane.b32.xlu0 %v1275, 2
    %v1306 = vpop.permute.xlu0 %1305
    %1307 = vrot.lane.b32.xlu0 %v1276, 2
    %v1308 = vpop.permute.xlu0 %1307
    %v1309 = vsel %vm1020, %v1302, 0.0
    %v1310 = vsel %vm1020, %v1304, 0.0
    %v1311 = vsel %vm1020, %v1306, 0.0
    %v1312 = vsel %vm1020, %v1308, 0.0
    %1313 = vrot.lane.b32.xlu0 %v1273, 1
    %v1314 = vpop.permute.xlu0 %1313
    %1315 = vrot.lane.b32.xlu0 %v1274, 1
    %v1316 = vpop.permute.xlu0 %1315
    %1317 = vrot.lane.b32.xlu0 %v1275, 1
    %v1318 = vpop.permute.xlu0 %1317
    %1319 = vrot.lane.b32.xlu0 %v1276, 1
    %v1320 = vpop.permute.xlu0 %1319
    %v1321 = vsel %vm1026, %v1314, 0.0
    %v1322 = vsel %vm1026, %v1316, 0.0
    %v1323 = vsel %vm1026, %v1318, 0.0
    %v1324 = vsel %vm1026, %v1320, 0.0
    %1325 = vrot.lane.b32.xlu0 %v1273, 127
    %v1326 = vpop.permute.xlu0 %1325
    %1327 = vrot.lane.b32.xlu0 %v1274, 127
    %v1328 = vpop.permute.xlu0 %1327
    %1329 = vrot.lane.b32.xlu0 %v1275, 127
    %v1330 = vpop.permute.xlu0 %1329
    %1331 = vrot.lane.b32.xlu0 %v1276, 127
    %v1332 = vpop.permute.xlu0 %1331
    %v1333 = vsel %vm1032, %v1326, 0.0
    %v1334 = vsel %vm1032, %v1328, 0.0
    %v1335 = vsel %vm1032, %v1330, 0.0
    %v1336 = vsel %vm1032, %v1332, 0.0
    %1337 = vrot.lane.b32.xlu0 %v1273, 126
    %v1338 = vpop.permute.xlu0 %1337
    %1339 = vrot.lane.b32.xlu0 %v1274, 126
    %v1340 = vpop.permute.xlu0 %1339
    %1341 = vrot.lane.b32.xlu0 %v1275, 126
    %v1342 = vpop.permute.xlu0 %1341
    %1343 = vrot.lane.b32.xlu0 %v1276, 126
    %v1344 = vpop.permute.xlu0 %1343
    %v1345 = vsel %vm1038, %v1338, 0.0
    %v1346 = vsel %vm1038, %v1340, 0.0
    %v1347 = vsel %vm1038, %v1342, 0.0
    %v1348 = vsel %vm1038, %v1344, 0.0
    %1349 = vrot.lane.b32.xlu0 %v1273, 125
    %v1350 = vpop.permute.xlu0 %1349
    %1351 = vrot.lane.b32.xlu0 %v1274, 125
    %v1352 = vpop.permute.xlu0 %1351
    %1353 = vrot.lane.b32.xlu0 %v1275, 125
    %v1354 = vpop.permute.xlu0 %1353
    %1355 = vrot.lane.b32.xlu0 %v1276, 125
    %v1356 = vpop.permute.xlu0 %1355
    %v1357 = vsel %vm1044, %v1350, 0.0
    %v1358 = vsel %vm1044, %v1352, 0.0
    %v1359 = vsel %vm1044, %v1354, 0.0
    %v1360 = vsel %vm1044, %v1356, 0.0
    %1361 = vrot.lane.b32.xlu0 %v1273, 124
    %v1362 = vpop.permute.xlu0 %1361
    %1363 = vrot.lane.b32.xlu0 %v1274, 124
    %v1364 = vpop.permute.xlu0 %1363
    %1365 = vrot.lane.b32.xlu0 %v1275, 124
    %v1366 = vpop.permute.xlu0 %1365
    %1367 = vrot.lane.b32.xlu0 %v1276, 124
    %v1368 = vpop.permute.xlu0 %1367
    %v1369 = vsel %vm1050, %v1362, 0.0
    %v1370 = vsel %vm1050, %v1364, 0.0
    %v1371 = vsel %vm1050, %v1366, 0.0
    %v1372 = vsel %vm1050, %v1368, 0.0
    %v1373 = vld [vmem:[%s7] sm:$0xff]
    %v1374 = vld [vmem:[%s7 + $0x8] sm:$0xff]
    %v1375 = vld [vmem:[%s7 + $0x10] sm:$0xff]
    %v1376 = vld [vmem:[%s7 + $0x18] sm:$0xff]
    %v1377 = vld [vmem:[%s7 + $0x20] sm:$0xff]
    %v1378 = vld [vmem:[%s7 + $0x28] sm:$0xff]
    %v1379 = vld [vmem:[%s7 + $0x30] sm:$0xff]
    %v1380 = vld [vmem:[%s7 + $0x38] sm:$0xff]
    %v1381 = vld [vmem:[%s7 + $0x40] sm:$0xff]
    %v1382 = vld [vmem:[%s7 + $0x48] sm:$0xff]
    %v1383 = vld [vmem:[%s7 + $0x50] sm:$0xff]
    %v1384 = vld [vmem:[%s7 + $0x58] sm:$0xff]
    %v1385 = vld [vmem:[%s8] sm:$0xff]
    %v1386 = vld [vmem:[%s8 + $0x8] sm:$0xff]
    %v1387 = vld [vmem:[%s8 + $0x10] sm:$0xff]
    %v1388 = vld [vmem:[%s8 + $0x18] sm:$0xff]
    %1390 = vset.pattern.permute.xlu0 0
    %1391 = vperm.xlu0 %1390, %v1385
    %v1392 = vpop.permute.xlu0 %1391
    %1395 = vset.pattern.permute.xlu0 0
    %1396 = vperm.xlu0 %1395, %v1386
    %v1397 = vpop.permute.xlu0 %1396
    %1400 = vset.pattern.permute.xlu0 0
    %1401 = vperm.xlu0 %1400, %v1387
    %v1402 = vpop.permute.xlu0 %1401
    %1405 = vset.pattern.permute.xlu0 0
    %1406 = vperm.xlu0 %1405, %v1388
    %v1407 = vpop.permute.xlu0 %1406
    %v1410 = vsel %vm536, %v1375, 0
    %v1413 = vsel %vm536, %v1378, 0
    %v1416 = vsel %vm536, %v1381, 0
    %v1419 = vsel %vm536, %v1384, 0
    %1421 = vmatprep.subr.mxu0 0.0
    %1422 = vmatpush1.msra.mxu0 %v1285
    %1423 = vmatprep.subr.mxu0 0.0
    %1424 = vmatpush1.msra.mxu0 %v1286
    %1425 = vmatprep.subr.mxu0 0.0
    %1426 = vmatpush1.msra.mxu0 %v1287
    %1427 = vmatprep.subr.mxu0 0.0
    %1428 = vmatpush1.msra.mxu0 %v1288
    %1429 = vmatprep.subr.mxu0 0.0
    %1430 = vmatpush1.msra.mxu0 %v1297
    %1431 = vmatprep.subr.mxu0 0.0
    %1432 = vmatpush1.msra.mxu0 %v1298
    %1433 = vmatprep.subr.mxu0 0.0
    %1434 = vmatpush1.msra.mxu0 %v1299
    %1435 = vmatprep.subr.mxu0 0.0
    %1436 = vmatpush1.msra.mxu0 %v1300
    %1437 = vmatprep.subr.mxu0 0.0
    %1438 = vmatpush1.msra.mxu0 %v1309
    %1439 = vmatprep.subr.mxu0 0.0
    %1440 = vmatpush1.msra.mxu0 %v1310
    %1441 = vmatprep.subr.mxu0 0.0
    %1442 = vmatpush1.msra.mxu0 %v1311
    %1443 = vmatprep.subr.mxu0 0.0
    %1444 = vmatpush1.msra.mxu0 %v1312
    %1445 = vmatprep.subr.mxu0 0.0
    %1446 = vmatpush1.msra.mxu0 %v1321
    %1447 = vmatprep.subr.mxu0 0.0
    %1448 = vmatpush1.msra.mxu0 %v1322
    %1449 = vmatprep.subr.mxu0 0.0
    %1450 = vmatpush1.msra.mxu0 %v1323
    %1451 = vmatprep.subr.mxu0 0.0
    %1452 = vmatpush1.msra.mxu0 %v1324
    %1453 = vmatprep.subr.mxu0 0.0
    %1454 = vmatpush1.msra.mxu0 %v1273
    %1455 = vmatprep.subr.mxu0 0.0
    %1456 = vmatpush1.msra.mxu0 %v1274
    %1457 = vmatprep.subr.mxu0 0.0
    %1458 = vmatpush1.msra.mxu0 %v1275
    %1459 = vmatprep.subr.mxu0 0.0
    %1460 = vmatpush1.msra.mxu0 %v1276
    %1461 = vmatprep.subr.mxu0 0.0
    %1462 = vmatpush1.msra.mxu0 %v1333
    %1463 = vmatprep.subr.mxu0 0.0
    %1464 = vmatpush1.msra.mxu0 %v1334
    %1465 = vmatprep.subr.mxu0 0.0
    %1466 = vmatpush1.msra.mxu0 %v1335
    %1467 = vmatprep.subr.mxu0 0.0
    %1468 = vmatpush1.msra.mxu0 %v1336
    %1469 = vmatprep.subr.mxu0 0.0
    %1470 = vmatpush1.msra.mxu0 %v1345
    %1471 = vmatprep.subr.mxu0 0.0
    %1472 = vmatpush1.msra.mxu0 %v1346
    %1473 = vmatprep.subr.mxu0 0.0
    %1474 = vmatpush1.msra.mxu0 %v1347
    %1475 = vmatprep.subr.mxu0 0.0
    %1476 = vmatpush1.msra.mxu0 %v1348
    %1477 = vmatprep.subr.mxu0 0.0
    %1478 = vmatpush1.msra.mxu0 %v1357
    %1479 = vmatprep.subr.mxu0 0.0
    %1480 = vmatpush1.msra.mxu0 %v1358
    %1481 = vmatprep.subr.mxu0 0.0
    %1482 = vmatpush1.msra.mxu0 %v1359
    %1483 = vmatprep.subr.mxu0 0.0
    %1484 = vmatpush1.msra.mxu0 %v1360
    %1485 = vmatprep.mubr.f32.mxu0 %v1374
    %1486 = vmatmul.mubr.f32.gmra.mrb[0].mxu0 %v1373
    %v1487 = vpop.f32.mrb[0].mxu0
    %v1488 = vadd.f32 %v1392, %v1487
    %v1489 = vpop.f32.mrb[0].mxu0
    %1490 = vmatprep.mubr.f32.mxu0 %v1377
    %1491 = vmatmul.mubr.f32.gmra.mrb[0].mxu0 %v1376
    %v1492 = vpop.f32.mrb[0].mxu0
    %v1493 = vadd.f32 %v1397, %v1492
    %v1494 = vpop.f32.mrb[0].mxu0
    %1495 = vmatprep.mubr.f32.mxu0 %v1380
    %1496 = vmatmul.mubr.f32.gmra.mrb[0].mxu0 %v1379
    %v1497 = vpop.f32.mrb[0].mxu0
    %v1498 = vadd.f32 %v1402, %v1497
    %v1499 = vpop.f32.mrb[0].mxu0
    %1500 = vmatprep.mubr.f32.mxu0 %v1383
    %1501 = vmatmul.mubr.f32.gmra.mrb[0].mxu0 %v1382
    %v1502 = vpop.f32.mrb[0].mxu0
    %v1503 = vadd.f32 %v1407, %v1502
    %v1504 = vpop.f32.mrb[0].mxu0
    %1505 = vdwg.mxu0
    %1506 = vmatprep.subr.mxu0 0.0
    %1507 = vmatpush1.msra.mxu0 %v1369
    %1508 = vmatprep.subr.mxu0 0.0
    %1509 = vmatpush1.msra.mxu0 %v1370
    %1510 = vmatprep.subr.mxu0 0.0
    %1511 = vmatpush1.msra.mxu0 %v1371
    %1512 = vmatprep.subr.mxu0 0.0
    %1513 = vmatpush1.msra.mxu0 %v1372
    %1514 = vmatprep.subr.mxu0 0.0
    %1515 = vmatpush1.msra.mxu0 0.0
    %1516 = vmatprep.subr.mxu0 0.0
    %1517 = vmatpush1.msra.mxu0 0.0
    %1518 = vmatprep.subr.mxu0 0.0
    %1519 = vmatpush1.msra.mxu0 0.0
    %1520 = vmatprep.subr.mxu0 0.0
    %1521 = vmatpush1.msra.mxu0 0.0
    %1522 = vmatprep.subr.mxu0 0.0
    %1523 = vmatpush1.msra.mxu0 0.0
    %1524 = vmatprep.subr.mxu0 0.0
    %1525 = vmatpush1.msra.mxu0 0.0
    %1526 = vmatprep.subr.mxu0 0.0
    %1527 = vmatpush1.msra.mxu0 0.0
    %1528 = vmatprep.subr.mxu0 0.0
    %1529 = vmatpush1.msra.mxu0 0.0
    %1530 = vmatprep.subr.mxu0 0.0
    %1531 = vmatpush1.msra.mxu0 0.0
    %1532 = vmatprep.subr.mxu0 0.0
    %1533 = vmatpush1.msra.mxu0 0.0
    %1534 = vmatprep.subr.mxu0 0.0
    %1535 = vmatpush1.msra.mxu0 0.0
    %1536 = vmatprep.subr.mxu0 0.0
    %1537 = vmatpush1.msra.mxu0 0.0
    %1538 = vmatprep.subr.mxu0 0.0
    %1539 = vmatpush1.msra.mxu0 0.0
    %1540 = vmatprep.subr.mxu0 0.0
    %1541 = vmatpush1.msra.mxu0 0.0
    %1542 = vmatprep.subr.mxu0 0.0
    %1543 = vmatpush1.msra.mxu0 0.0
    %1544 = vmatprep.subr.mxu0 0.0
    %1545 = vmatpush1.msra.mxu0 0.0
    %1546 = vmatprep.subr.mxu0 0.0
    %1547 = vmatpush1.msra.mxu0 0.0
    %1548 = vmatprep.subr.mxu0 0.0
    %1549 = vmatpush1.msra.mxu0 0.0
    %1550 = vmatprep.subr.mxu0 0.0
    %1551 = vmatpush1.msra.mxu0 0.0
    %1552 = vmatprep.subr.mxu0 0.0
    %1553 = vmatpush1.msra.mxu0 0.0
    %1554 = vmatprep.subr.mxu0 0.0
    %1555 = vmatpush1.msra.mxu0 0.0
    %1556 = vmatprep.subr.mxu0 0.0
    %1557 = vmatpush1.msra.mxu0 0.0
    %1558 = vmatprep.subr.mxu0 0.0
    %1559 = vmatpush1.msra.mxu0 0.0
    %1560 = vmatprep.subr.mxu0 0.0
    %1561 = vmatpush1.msra.mxu0 0.0
    %1562 = vmatprep.subr.mxu0 0.0
    %1563 = vmatpush1.msra.mxu0 0.0
    %1564 = vmatprep.subr.mxu0 0.0
    %1565 = vmatpush1.msra.mxu0 0.0
    %1566 = vmatprep.subr.mxu0 0.0
    %1567 = vmatpush1.msra.mxu0 0.0
    %1568 = vmatprep.subr.mxu0 0.0
    %1569 = vmatpush1.msra.mxu0 0.0
    %1570 = vmatprep.mubr.f32.mxu0 0.0
    %1571 = vmatmul.mubr.f32.gmra.mrb[0].mxu0 %v1410
    %v1572 = vpop.f32.mrb[0].mxu0
    %v1573 = vadd.f32 %v1488, %v1572
    %v1574 = vpop.f32.mrb[0].mxu0
    %1575 = vmatprep.mubr.f32.mxu0 0.0
    %1576 = vmatmul.mubr.f32.gmra.mrb[0].mxu0 %v1413
    %v1577 = vpop.f32.mrb[0].mxu0
    %v1578 = vadd.f32 %v1493, %v1577
    %v1579 = vpop.f32.mrb[0].mxu0
    %1580 = vmatprep.mubr.f32.mxu0 0.0
    %1581 = vmatmul.mubr.f32.gmra.mrb[0].mxu0 %v1416
    %v1582 = vpop.f32.mrb[0].mxu0
    %v1583 = vadd.f32 %v1498, %v1582
    %v1584 = vpop.f32.mrb[0].mxu0
    %1585 = vmatprep.mubr.f32.mxu0 0.0
    %1586 = vmatmul.mubr.f32.gmra.mrb[0].mxu0 %v1419
    %v1587 = vpop.f32.mrb[0].mxu0
    %v1588 = vadd.f32 %v1503, %v1587
    %v1589 = vpop.f32.mrb[0].mxu0
    %1590 = vdwg.mxu0
    %v1591 = vmax.f32 %v1573, 0.0
    %v1592 = vmax.f32 %v1578, 0.0
    %v1593 = vmax.f32 %v1583, 0.0
    %v1594 = vmax.f32 %v1588, 0.0
    %v1595 = vadd.f32 %v1591, %v1178
    %v1596 = vadd.f32 %v1592, %v1179
    %v1597 = vadd.f32 %v1593, %v1180
    %v1598 = vadd.f32 %v1594, %v1181
    %v1599 = vadd.f32 %v1595, %v925
    %v1600 = vadd.f32 %v1596, %v930
    %v1601 = vadd.f32 %v1597, %v935
    %v1602 = vadd.f32 %v1598, %v940
    %v1603 = vadd.f32 %v1599, %v1600
    %v1604 = vadd.f32 %v1603, %v1601
    %v1605 = vadd.f32 %v1604, %v1602
    %v1606 = vrot.slane %v1605, 4
    %v1607 = vadd.f32 %v1605, %v1606
    %v1608 = vrot.slane %v1607, 2
    %v1609 = vadd.f32 %v1607, %v1608
    %v1610 = vrot.slane %v1609, 1
    %v1611 = vadd.f32 %v1609, %v1610
    %v1612 = vmul.f32 %v1611, %v1195
    %v1613 = vsub.f32 %v1599, %v1612
    %v1614 = vsub.f32 %v1600, %v1612
    %v1615 = vsub.f32 %v1601, %v1612
    %v1616 = vsub.f32 %v1602, %v1612
    %v1617 = vmul.f32 %v1613, %v1613
    %v1618 = vmul.f32 %v1614, %v1614
    %v1619 = vmul.f32 %v1615, %v1615
    %v1620 = vmul.f32 %v1616, %v1616
    %v1621 = vadd.f32 %v1617, %v1618
    %v1622 = vadd.f32 %v1621, %v1619
    %v1623 = vadd.f32 %v1622, %v1620
    %v1624 = vrot.slane %v1623, 4
    %v1625 = vadd.f32 %v1623, %v1624
    %v1626 = vrot.slane %v1625, 2
    %v1627 = vadd.f32 %v1625, %v1626
    %v1628 = vrot.slane %v1627, 1
    %v1629 = vadd.f32 %v1627, %v1628
    %v1630 = vmul.f32 %v1629, %v1195
    %v1631 = vadd.f32 %v1630, 1e-05
    %v1632 = vrsqrt.pop %v1631
    %v1633 = vmul.f32 %v1613, %v1632
    %v1634 = vmul.f32 %v1614, %v1632
    %v1635 = vmul.f32 %v1615, %v1632
    %v1636 = vmul.f32 %v1616, %v1632
    %v1637 = vld [vmem:[%s11 + $0x20] sm:$0xff]
    %v1638 = vld [vmem:[%s11 + $0x28] sm:$0xff]
    %v1639 = vld [vmem:[%s11 + $0x30] sm:$0xff]
    %v1640 = vld [vmem:[%s11 + $0x38] sm:$0xff]
    %1642 = vset.pattern.permute.xlu0 0
    %1643 = vperm.xlu0 %1642, %v1637
    %v1644 = vpop.permute.xlu0 %1643
    %1647 = vset.pattern.permute.xlu0 0
    %1648 = vperm.xlu0 %1647, %v1638
    %v1649 = vpop.permute.xlu0 %1648
    %1652 = vset.pattern.permute.xlu0 0
    %1653 = vperm.xlu0 %1652, %v1639
    %v1654 = vpop.permute.xlu0 %1653
    %1657 = vset.pattern.permute.xlu0 0
    %1658 = vperm.xlu0 %1657, %v1640
    %v1659 = vpop.permute.xlu0 %1658
    %v1661 = vmul.f32 %v1633, %v1644
    %v1662 = vmul.f32 %v1634, %v1649
    %v1663 = vmul.f32 %v1635, %v1654
    %v1664 = vmul.f32 %v1636, %v1659
    %v1665 = vld [vmem:[%s12 + $0x20] sm:$0xff]
    %v1666 = vld [vmem:[%s12 + $0x28] sm:$0xff]
    %v1667 = vld [vmem:[%s12 + $0x30] sm:$0xff]
    %v1668 = vld [vmem:[%s12 + $0x38] sm:$0xff]
    %1670 = vset.pattern.permute.xlu0 0
    %1671 = vperm.xlu0 %1670, %v1665
    %v1672 = vpop.permute.xlu0 %1671
    %1675 = vset.pattern.permute.xlu0 0
    %1676 = vperm.xlu0 %1675, %v1666
    %v1677 = vpop.permute.xlu0 %1676
    %1680 = vset.pattern.permute.xlu0 0
    %1681 = vperm.xlu0 %1680, %v1667
    %v1682 = vpop.permute.xlu0 %1681
    %1685 = vset.pattern.permute.xlu0 0
    %1686 = vperm.xlu0 %1685, %v1668
    %v1687 = vpop.permute.xlu0 %1686
    %v1689 = vadd.f32 %v1661, %v1672
    %v1690 = vadd.f32 %v1662, %v1677
    %v1691 = vadd.f32 %v1663, %v1682
    %v1692 = vadd.f32 %v1664, %v1687
    %1693 = vrot.lane.b32.xlu0 %v1689, 4
    %v1694 = vpop.permute.xlu0 %1693
    %1695 = vrot.lane.b32.xlu0 %v1690, 4
    %v1696 = vpop.permute.xlu0 %1695
    %1697 = vrot.lane.b32.xlu0 %v1691, 4
    %v1698 = vpop.permute.xlu0 %1697
    %1699 = vrot.lane.b32.xlu0 %v1692, 4
    %v1700 = vpop.permute.xlu0 %1699
    %v1701 = vsel %vm1008, %v1694, 0.0
    %v1702 = vsel %vm1008, %v1696, 0.0
    %v1703 = vsel %vm1008, %v1698, 0.0
    %v1704 = vsel %vm1008, %v1700, 0.0
    %1705 = vrot.lane.b32.xlu0 %v1689, 3
    %v1706 = vpop.permute.xlu0 %1705
    %1707 = vrot.lane.b32.xlu0 %v1690, 3
    %v1708 = vpop.permute.xlu0 %1707
    %1709 = vrot.lane.b32.xlu0 %v1691, 3
    %v1710 = vpop.permute.xlu0 %1709
    %1711 = vrot.lane.b32.xlu0 %v1692, 3
    %v1712 = vpop.permute.xlu0 %1711
    %v1713 = vsel %vm1014, %v1706, 0.0
    %v1714 = vsel %vm1014, %v1708, 0.0
    %v1715 = vsel %vm1014, %v1710, 0.0
    %v1716 = vsel %vm1014, %v1712, 0.0
    %1717 = vrot.lane.b32.xlu0 %v1689, 2
    %v1718 = vpop.permute.xlu0 %1717
    %1719 = vrot.lane.b32.xlu0 %v1690, 2
    %v1720 = vpop.permute.xlu0 %1719
    %1721 = vrot.lane.b32.xlu0 %v1691, 2
    %v1722 = vpop.permute.xlu0 %1721
    %1723 = vrot.lane.b32.xlu0 %v1692, 2
    %v1724 = vpop.permute.xlu0 %1723
    %v1725 = vsel %vm1020, %v1718, 0.0
    %v1726 = vsel %vm1020, %v1720, 0.0
    %v1727 = vsel %vm1020, %v1722, 0.0
    %v1728 = vsel %vm1020, %v1724, 0.0
    %1729 = vrot.lane.b32.xlu0 %v1689, 1
    %v1730 = vpop.permute.xlu0 %1729
    %1731 = vrot.lane.b32.xlu0 %v1690, 1
    %v1732 = vpop.permute.xlu0 %1731
    %1733 = vrot.lane.b32.xlu0 %v1691, 1
    %v1734 = vpop.permute.xlu0 %1733
    %1735 = vrot.lane.b32.xlu0 %v1692, 1
    %v1736 = vpop.permute.xlu0 %1735
    %v1737 = vsel %vm1026, %v1730, 0.0
    %v1738 = vsel %vm1026, %v1732, 0.0
    %v1739 = vsel %vm1026, %v1734, 0.0
    %v1740 = vsel %vm1026, %v1736, 0.0
    %1741 = vrot.lane.b32.xlu0 %v1689, 127
    %v1742 = vpop.permute.xlu0 %1741
    %1743 = vrot.lane.b32.xlu0 %v1690, 127
    %v1744 = vpop.permute.xlu0 %1743
    %1745 = vrot.lane.b32.xlu0 %v1691, 127
    %v1746 = vpop.permute.xlu0 %1745
    %1747 = vrot.lane.b32.xlu0 %v1692, 127
    %v1748 = vpop.permute.xlu0 %1747
    %v1749 = vsel %vm1032, %v1742, 0.0
    %v1750 = vsel %vm1032, %v1744, 0.0
    %v1751 = vsel %vm1032, %v1746, 0.0
    %v1752 = vsel %vm1032, %v1748, 0.0
    %1753 = vrot.lane.b32.xlu0 %v1689, 126
    %v1754 = vpop.permute.xlu0 %1753
    %1755 = vrot.lane.b32.xlu0 %v1690, 126
    %v1756 = vpop.permute.xlu0 %1755
    %1757 = vrot.lane.b32.xlu0 %v1691, 126
    %v1758 = vpop.permute.xlu0 %1757
    %1759 = vrot.lane.b32.xlu0 %v1692, 126
    %v1760 = vpop.permute.xlu0 %1759
    %v1761 = vsel %vm1038, %v1754, 0.0
    %v1762 = vsel %vm1038, %v1756, 0.0
    %v1763 = vsel %vm1038, %v1758, 0.0
    %v1764 = vsel %vm1038, %v1760, 0.0
    %1765 = vrot.lane.b32.xlu0 %v1689, 125
    %v1766 = vpop.permute.xlu0 %1765
    %1767 = vrot.lane.b32.xlu0 %v1690, 125
    %v1768 = vpop.permute.xlu0 %1767
    %1769 = vrot.lane.b32.xlu0 %v1691, 125
    %v1770 = vpop.permute.xlu0 %1769
    %1771 = vrot.lane.b32.xlu0 %v1692, 125
    %v1772 = vpop.permute.xlu0 %1771
    %v1773 = vsel %vm1044, %v1766, 0.0
    %v1774 = vsel %vm1044, %v1768, 0.0
    %v1775 = vsel %vm1044, %v1770, 0.0
    %v1776 = vsel %vm1044, %v1772, 0.0
    %1777 = vrot.lane.b32.xlu0 %v1689, 124
    %v1778 = vpop.permute.xlu0 %1777
    %1779 = vrot.lane.b32.xlu0 %v1690, 124
    %v1780 = vpop.permute.xlu0 %1779
    %1781 = vrot.lane.b32.xlu0 %v1691, 124
    %v1782 = vpop.permute.xlu0 %1781
    %1783 = vrot.lane.b32.xlu0 %v1692, 124
    %v1784 = vpop.permute.xlu0 %1783
    %v1785 = vsel %vm1050, %v1778, 0.0
    %v1786 = vsel %vm1050, %v1780, 0.0
    %v1787 = vsel %vm1050, %v1782, 0.0
    %v1788 = vsel %vm1050, %v1784, 0.0
    %s1789 = scalar_lea.vmem %s7, 96
    %v1790 = vld [vmem:[%s1789] sm:$0xff]
    %v1791 = vld [vmem:[%s1789 + $0x8] sm:$0xff]
    %v1792 = vld [vmem:[%s1789 + $0x10] sm:$0xff]
    %v1793 = vld [vmem:[%s1789 + $0x18] sm:$0xff]
    %v1794 = vld [vmem:[%s1789 + $0x20] sm:$0xff]
    %v1795 = vld [vmem:[%s1789 + $0x28] sm:$0xff]
    %v1796 = vld [vmem:[%s1789 + $0x30] sm:$0xff]
    %v1797 = vld [vmem:[%s1789 + $0x38] sm:$0xff]
    %v1798 = vld [vmem:[%s1789 + $0x40] sm:$0xff]
    %v1799 = vld [vmem:[%s1789 + $0x48] sm:$0xff]
    %v1800 = vld [vmem:[%s1789 + $0x50] sm:$0xff]
    %v1801 = vld [vmem:[%s1789 + $0x58] sm:$0xff]
    %v1802 = vld [vmem:[%s8 + $0x20] sm:$0xff]
    %v1803 = vld [vmem:[%s8 + $0x28] sm:$0xff]
    %v1804 = vld [vmem:[%s8 + $0x30] sm:$0xff]
    %v1805 = vld [vmem:[%s8 + $0x38] sm:$0xff]
    %1807 = vset.pattern.permute.xlu0 0
    %1808 = vperm.xlu0 %1807, %v1802
    %v1809 = vpop.permute.xlu0 %1808
    %1812 = vset.pattern.permute.xlu0 0
    %1813 = vperm.xlu0 %1812, %v1803
    %v1814 = vpop.permute.xlu0 %1813
    %1817 = vset.pattern.permute.xlu0 0
    %1818 = vperm.xlu0 %1817, %v1804
    %v1819 = vpop.permute.xlu0 %1818
    %1822 = vset.pattern.permute.xlu0 0
    %1823 = vperm.xlu0 %1822, %v1805
    %v1824 = vpop.permute.xlu0 %1823
    %v1827 = vsel %vm536, %v1792, 0
    %v1830 = vsel %vm536, %v1795, 0
    %v1833 = vsel %vm536, %v1798, 0
    %v1836 = vsel %vm536, %v1801, 0
    %1838 = vmatprep.subr.mxu0 0.0
    %1839 = vmatpush1.msra.mxu0 %v1701
    %1840 = vmatprep.subr.mxu0 0.0
    %1841 = vmatpush1.msra.mxu0 %v1702
    %1842 = vmatprep.subr.mxu0 0.0
    %1843 = vmatpush1.msra.mxu0 %v1703
    %1844 = vmatprep.subr.mxu0 0.0
    %1845 = vmatpush1.msra.mxu0 %v1704
    %1846 = vmatprep.subr.mxu0 0.0
    %1847 = vmatpush1.msra.mxu0 %v1713
    %1848 = vmatprep.subr.mxu0 0.0
    %1849 = vmatpush1.msra.mxu0 %v1714
    %1850 = vmatprep.subr.mxu0 0.0
    %1851 = vmatpush1.msra.mxu0 %v1715
    %1852 = vmatprep.subr.mxu0 0.0
    %1853 = vmatpush1.msra.mxu0 %v1716
    %1854 = vmatprep.subr.mxu0 0.0
    %1855 = vmatpush1.msra.mxu0 %v1725
    %1856 = vmatprep.subr.mxu0 0.0
    %1857 = vmatpush1.msra.mxu0 %v1726
    %1858 = vmatprep.subr.mxu0 0.0
    %1859 = vmatpush1.msra.mxu0 %v1727
    %1860 = vmatprep.subr.mxu0 0.0
    %1861 = vmatpush1.msra.mxu0 %v1728
    %1862 = vmatprep.subr.mxu0 0.0
    %1863 = vmatpush1.msra.mxu0 %v1737
    %1864 = vmatprep.subr.mxu0 0.0
    %1865 = vmatpush1.msra.mxu0 %v1738
    %1866 = vmatprep.subr.mxu0 0.0
    %1867 = vmatpush1.msra.mxu0 %v1739
    %1868 = vmatprep.subr.mxu0 0.0
    %1869 = vmatpush1.msra.mxu0 %v1740
    %1870 = vmatprep.subr.mxu0 0.0
    %1871 = vmatpush1.msra.mxu0 %v1689
    %1872 = vmatprep.subr.mxu0 0.0
    %1873 = vmatpush1.msra.mxu0 %v1690
    %1874 = vmatprep.subr.mxu0 0.0
    %1875 = vmatpush1.msra.mxu0 %v1691
    %1876 = vmatprep.subr.mxu0 0.0
    %1877 = vmatpush1.msra.mxu0 %v1692
    %1878 = vmatprep.subr.mxu0 0.0
    %1879 = vmatpush1.msra.mxu0 %v1749
    %1880 = vmatprep.subr.mxu0 0.0
    %1881 = vmatpush1.msra.mxu0 %v1750
    %1882 = vmatprep.subr.mxu0 0.0
    %1883 = vmatpush1.msra.mxu0 %v1751
    %1884 = vmatprep.subr.mxu0 0.0
    %1885 = vmatpush1.msra.mxu0 %v1752
    %1886 = vmatprep.subr.mxu0 0.0
    %1887 = vmatpush1.msra.mxu0 %v1761
    %1888 = vmatprep.subr.mxu0 0.0
    %1889 = vmatpush1.msra.mxu0 %v1762
    %1890 = vmatprep.subr.mxu0 0.0
    %1891 = vmatpush1.msra.mxu0 %v1763
    %1892 = vmatprep.subr.mxu0 0.0
    %1893 = vmatpush1.msra.mxu0 %v1764
    %1894 = vmatprep.subr.mxu0 0.0
    %1895 = vmatpush1.msra.mxu0 %v1773
    %1896 = vmatprep.subr.mxu0 0.0
    %1897 = vmatpush1.msra.mxu0 %v1774
    %1898 = vmatprep.subr.mxu0 0.0
    %1899 = vmatpush1.msra.mxu0 %v1775
    %1900 = vmatprep.subr.mxu0 0.0
    %1901 = vmatpush1.msra.mxu0 %v1776
    %1902 = vmatprep.mubr.f32.mxu0 %v1791
    %1903 = vmatmul.mubr.f32.gmra.mrb[0].mxu0 %v1790
    %v1904 = vpop.f32.mrb[0].mxu0
    %v1905 = vadd.f32 %v1809, %v1904
    %v1906 = vpop.f32.mrb[0].mxu0
    %1907 = vmatprep.mubr.f32.mxu0 %v1794
    %1908 = vmatmul.mubr.f32.gmra.mrb[0].mxu0 %v1793
    %v1909 = vpop.f32.mrb[0].mxu0
    %v1910 = vadd.f32 %v1814, %v1909
    %v1911 = vpop.f32.mrb[0].mxu0
    %1912 = vmatprep.mubr.f32.mxu0 %v1797
    %1913 = vmatmul.mubr.f32.gmra.mrb[0].mxu0 %v1796
    %v1914 = vpop.f32.mrb[0].mxu0
    %v1915 = vadd.f32 %v1819, %v1914
    %v1916 = vpop.f32.mrb[0].mxu0
    %1917 = vmatprep.mubr.f32.mxu0 %v1800
    %1918 = vmatmul.mubr.f32.gmra.mrb[0].mxu0 %v1799
    %v1919 = vpop.f32.mrb[0].mxu0
    %v1920 = vadd.f32 %v1824, %v1919
    %v1921 = vpop.f32.mrb[0].mxu0
    %1922 = vdwg.mxu0
    %1923 = vmatprep.subr.mxu0 0.0
    %1924 = vmatpush1.msra.mxu0 %v1785
    %1925 = vmatprep.subr.mxu0 0.0
    %1926 = vmatpush1.msra.mxu0 %v1786
    %1927 = vmatprep.subr.mxu0 0.0
    %1928 = vmatpush1.msra.mxu0 %v1787
    %1929 = vmatprep.subr.mxu0 0.0
    %1930 = vmatpush1.msra.mxu0 %v1788
    %1931 = vmatprep.subr.mxu0 0.0
    %1932 = vmatpush1.msra.mxu0 0.0
    %1933 = vmatprep.subr.mxu0 0.0
    %1934 = vmatpush1.msra.mxu0 0.0
    %1935 = vmatprep.subr.mxu0 0.0
    %1936 = vmatpush1.msra.mxu0 0.0
    %1937 = vmatprep.subr.mxu0 0.0
    %1938 = vmatpush1.msra.mxu0 0.0
    %1939 = vmatprep.subr.mxu0 0.0
    %1940 = vmatpush1.msra.mxu0 0.0
    %1941 = vmatprep.subr.mxu0 0.0
    %1942 = vmatpush1.msra.mxu0 0.0
    %1943 = vmatprep.subr.mxu0 0.0
    %1944 = vmatpush1.msra.mxu0 0.0
    %1945 = vmatprep.subr.mxu0 0.0
    %1946 = vmatpush1.msra.mxu0 0.0
    %1947 = vmatprep.subr.mxu0 0.0
    %1948 = vmatpush1.msra.mxu0 0.0
    %1949 = vmatprep.subr.mxu0 0.0
    %1950 = vmatpush1.msra.mxu0 0.0
    %1951 = vmatprep.subr.mxu0 0.0
    %1952 = vmatpush1.msra.mxu0 0.0
    %1953 = vmatprep.subr.mxu0 0.0
    %1954 = vmatpush1.msra.mxu0 0.0
    %1955 = vmatprep.subr.mxu0 0.0
    %1956 = vmatpush1.msra.mxu0 0.0
    %1957 = vmatprep.subr.mxu0 0.0
    %1958 = vmatpush1.msra.mxu0 0.0
    %1959 = vmatprep.subr.mxu0 0.0
    %1960 = vmatpush1.msra.mxu0 0.0
    %1961 = vmatprep.subr.mxu0 0.0
    %1962 = vmatpush1.msra.mxu0 0.0
    %1963 = vmatprep.subr.mxu0 0.0
    %1964 = vmatpush1.msra.mxu0 0.0
    %1965 = vmatprep.subr.mxu0 0.0
    %1966 = vmatpush1.msra.mxu0 0.0
    %1967 = vmatprep.subr.mxu0 0.0
    %1968 = vmatpush1.msra.mxu0 0.0
    %1969 = vmatprep.subr.mxu0 0.0
    %1970 = vmatpush1.msra.mxu0 0.0
    %1971 = vmatprep.subr.mxu0 0.0
    %1972 = vmatpush1.msra.mxu0 0.0
    %1973 = vmatprep.subr.mxu0 0.0
    %1974 = vmatpush1.msra.mxu0 0.0
    %1975 = vmatprep.subr.mxu0 0.0
    %1976 = vmatpush1.msra.mxu0 0.0
    %1977 = vmatprep.subr.mxu0 0.0
    %1978 = vmatpush1.msra.mxu0 0.0
    %1979 = vmatprep.subr.mxu0 0.0
    %1980 = vmatpush1.msra.mxu0 0.0
    %1981 = vmatprep.subr.mxu0 0.0
    %1982 = vmatpush1.msra.mxu0 0.0
    %1983 = vmatprep.subr.mxu0 0.0
    %1984 = vmatpush1.msra.mxu0 0.0
    %1985 = vmatprep.subr.mxu0 0.0
    %1986 = vmatpush1.msra.mxu0 0.0
    %1987 = vmatprep.mubr.f32.mxu0 0.0
    %1988 = vmatmul.mubr.f32.gmra.mrb[0].mxu0 %v1827
    %v1989 = vpop.f32.mrb[0].mxu0
    %v1990 = vadd.f32 %v1905, %v1989
    %v1991 = vpop.f32.mrb[0].mxu0
    %1992 = vmatprep.mubr.f32.mxu0 0.0
    %1993 = vmatmul.mubr.f32.gmra.mrb[0].mxu0 %v1830
    %v1994 = vpop.f32.mrb[0].mxu0
    %v1995 = vadd.f32 %v1910, %v1994
    %v1996 = vpop.f32.mrb[0].mxu0
    %1997 = vmatprep.mubr.f32.mxu0 0.0
    %1998 = vmatmul.mubr.f32.gmra.mrb[0].mxu0 %v1833
    %v1999 = vpop.f32.mrb[0].mxu0
    %v2000 = vadd.f32 %v1915, %v1999
    %v2001 = vpop.f32.mrb[0].mxu0
    %2002 = vmatprep.mubr.f32.mxu0 0.0
    %2003 = vmatmul.mubr.f32.gmra.mrb[0].mxu0 %v1836
    %v2004 = vpop.f32.mrb[0].mxu0
    %v2005 = vadd.f32 %v1920, %v2004
    %v2006 = vpop.f32.mrb[0].mxu0
    %2007 = vdwg.mxu0
    %v2008 = vmax.f32 %v1990, 0.0
    %v2009 = vmax.f32 %v1995, 0.0
    %v2010 = vmax.f32 %v2000, 0.0
    %v2011 = vmax.f32 %v2005, 0.0
    %v2012 = vadd.f32 %v2008, %v1595
    %v2013 = vadd.f32 %v2009, %v1596
    %v2014 = vadd.f32 %v2010, %v1597
    %v2015 = vadd.f32 %v2011, %v1598
    %v2016 = vadd.f32 %v2012, %v945
    %v2017 = vadd.f32 %v2013, %v950
    %v2018 = vadd.f32 %v2014, %v955
    %v2019 = vadd.f32 %v2015, %v960
    %v2020 = vadd.f32 %v2016, %v2017
    %v2021 = vadd.f32 %v2020, %v2018
    %v2022 = vadd.f32 %v2021, %v2019
    %v2023 = vrot.slane %v2022, 4
    %v2024 = vadd.f32 %v2022, %v2023
    %v2025 = vrot.slane %v2024, 2
    %v2026 = vadd.f32 %v2024, %v2025
    %v2027 = vrot.slane %v2026, 1
    %v2028 = vadd.f32 %v2026, %v2027
    %v2029 = vmul.f32 %v2028, %v1195
    %v2030 = vsub.f32 %v2016, %v2029
    %v2031 = vsub.f32 %v2017, %v2029
    %v2032 = vsub.f32 %v2018, %v2029
    %v2033 = vsub.f32 %v2019, %v2029
    %v2034 = vmul.f32 %v2030, %v2030
    %v2035 = vmul.f32 %v2031, %v2031
    %v2036 = vmul.f32 %v2032, %v2032
    %v2037 = vmul.f32 %v2033, %v2033
    %v2038 = vadd.f32 %v2034, %v2035
    %v2039 = vadd.f32 %v2038, %v2036
    %v2040 = vadd.f32 %v2039, %v2037
    %v2041 = vrot.slane %v2040, 4
    %v2042 = vadd.f32 %v2040, %v2041
    %v2043 = vrot.slane %v2042, 2
    %v2044 = vadd.f32 %v2042, %v2043
    %v2045 = vrot.slane %v2044, 1
    %v2046 = vadd.f32 %v2044, %v2045
    %v2047 = vmul.f32 %v2046, %v1195
    %v2048 = vadd.f32 %v2047, 1e-05
    %v2049 = vrsqrt.pop %v2048
    %v2050 = vmul.f32 %v2030, %v2049
    %v2051 = vmul.f32 %v2031, %v2049
    %v2052 = vmul.f32 %v2032, %v2049
    %v2053 = vmul.f32 %v2033, %v2049
    %v2054 = vld [vmem:[%s11 + $0x40] sm:$0xff]
    %v2055 = vld [vmem:[%s11 + $0x48] sm:$0xff]
    %v2056 = vld [vmem:[%s11 + $0x50] sm:$0xff]
    %v2057 = vld [vmem:[%s11 + $0x58] sm:$0xff]
    %2059 = vset.pattern.permute.xlu0 0
    %2060 = vperm.xlu0 %2059, %v2054
    %v2061 = vpop.permute.xlu0 %2060
    %2064 = vset.pattern.permute.xlu0 0
    %2065 = vperm.xlu0 %2064, %v2055
    %v2066 = vpop.permute.xlu0 %2065
    %2069 = vset.pattern.permute.xlu0 0
    %2070 = vperm.xlu0 %2069, %v2056
    %v2071 = vpop.permute.xlu0 %2070
    %2074 = vset.pattern.permute.xlu0 0
    %2075 = vperm.xlu0 %2074, %v2057
    %v2076 = vpop.permute.xlu0 %2075
    %v2078 = vmul.f32 %v2050, %v2061
    %v2079 = vmul.f32 %v2051, %v2066
    %v2080 = vmul.f32 %v2052, %v2071
    %v2081 = vmul.f32 %v2053, %v2076
    %v2082 = vld [vmem:[%s12 + $0x40] sm:$0xff]
    %v2083 = vld [vmem:[%s12 + $0x48] sm:$0xff]
    %v2084 = vld [vmem:[%s12 + $0x50] sm:$0xff]
    %v2085 = vld [vmem:[%s12 + $0x58] sm:$0xff]
    %2087 = vset.pattern.permute.xlu0 0
    %2088 = vperm.xlu0 %2087, %v2082
    %v2089 = vpop.permute.xlu0 %2088
    %2092 = vset.pattern.permute.xlu0 0
    %2093 = vperm.xlu0 %2092, %v2083
    %v2094 = vpop.permute.xlu0 %2093
    %2097 = vset.pattern.permute.xlu0 0
    %2098 = vperm.xlu0 %2097, %v2084
    %v2099 = vpop.permute.xlu0 %2098
    %2102 = vset.pattern.permute.xlu0 0
    %2103 = vperm.xlu0 %2102, %v2085
    %v2104 = vpop.permute.xlu0 %2103
    %v2106 = vadd.f32 %v2078, %v2089
    %v2107 = vadd.f32 %v2079, %v2094
    %v2108 = vadd.f32 %v2080, %v2099
    %v2109 = vadd.f32 %v2081, %v2104
    %2110 = vrot.lane.b32.xlu0 %v2106, 16
    %v2111 = vpop.permute.xlu0 %2110
    %2112 = vrot.lane.b32.xlu0 %v2107, 16
    %v2113 = vpop.permute.xlu0 %2112
    %2114 = vrot.lane.b32.xlu0 %v2108, 16
    %v2115 = vpop.permute.xlu0 %2114
    %2116 = vrot.lane.b32.xlu0 %v2109, 16
    %v2117 = vpop.permute.xlu0 %2116
    %vm2118 = vcmp.ge.s32.totalorder %v70, 16
    %v2119 = vsel %vm2118, 1, 0
    %vm2120 = vcmp.eq.s32.totalorder %v2119, 1
    %v2121 = vsel %vm2120, %v2111, 0.0
    %v2122 = vsel %vm2120, %v2113, 0.0
    %v2123 = vsel %vm2120, %v2115, 0.0
    %v2124 = vsel %vm2120, %v2117, 0.0
    %2125 = vrot.lane.b32.xlu0 %v2106, 12
    %v2126 = vpop.permute.xlu0 %2125
    %2127 = vrot.lane.b32.xlu0 %v2107, 12
    %v2128 = vpop.permute.xlu0 %2127
    %2129 = vrot.lane.b32.xlu0 %v2108, 12
    %v2130 = vpop.permute.xlu0 %2129
    %2131 = vrot.lane.b32.xlu0 %v2109, 12
    %v2132 = vpop.permute.xlu0 %2131
    %vm2133 = vcmp.ge.s32.totalorder %v70, 12
    %v2134 = vsel %vm2133, 1, 0
    %vm2135 = vcmp.eq.s32.totalorder %v2134, 1
    %v2136 = vsel %vm2135, %v2126, 0.0
    %v2137 = vsel %vm2135, %v2128, 0.0
    %v2138 = vsel %vm2135, %v2130, 0.0
    %v2139 = vsel %vm2135, %v2132, 0.0
    %2140 = vrot.lane.b32.xlu0 %v2106, 8
    %v2141 = vpop.permute.xlu0 %2140
    %2142 = vrot.lane.b32.xlu0 %v2107, 8
    %v2143 = vpop.permute.xlu0 %2142
    %2144 = vrot.lane.b32.xlu0 %v2108, 8
    %v2145 = vpop.permute.xlu0 %2144
    %2146 = vrot.lane.b32.xlu0 %v2109, 8
    %v2147 = vpop.permute.xlu0 %2146
    %vm2148 = vcmp.ge.s32.totalorder %v70, 8
    %v2149 = vsel %vm2148, 1, 0
    %vm2150 = vcmp.eq.s32.totalorder %v2149, 1
    %v2151 = vsel %vm2150, %v2141, 0.0
    %v2152 = vsel %vm2150, %v2143, 0.0
    %v2153 = vsel %vm2150, %v2145, 0.0
    %v2154 = vsel %vm2150, %v2147, 0.0
    %2155 = vrot.lane.b32.xlu0 %v2106, 4
    %v2156 = vpop.permute.xlu0 %2155
    %2157 = vrot.lane.b32.xlu0 %v2107, 4
    %v2158 = vpop.permute.xlu0 %2157
    %2159 = vrot.lane.b32.xlu0 %v2108, 4
    %v2160 = vpop.permute.xlu0 %2159
    %2161 = vrot.lane.b32.xlu0 %v2109, 4
    %v2162 = vpop.permute.xlu0 %2161
    %v2163 = vsel %vm1008, %v2156, 0.0
    %v2164 = vsel %vm1008, %v2158, 0.0
    %v2165 = vsel %vm1008, %v2160, 0.0
    %v2166 = vsel %vm1008, %v2162, 0.0
    %2167 = vrot.lane.b32.xlu0 %v2106, 124
    %v2168 = vpop.permute.xlu0 %2167
    %2169 = vrot.lane.b32.xlu0 %v2107, 124
    %v2170 = vpop.permute.xlu0 %2169
    %2171 = vrot.lane.b32.xlu0 %v2108, 124
    %v2172 = vpop.permute.xlu0 %2171
    %2173 = vrot.lane.b32.xlu0 %v2109, 124
    %v2174 = vpop.permute.xlu0 %2173
    %v2175 = vsel %vm1050, %v2168, 0.0
    %v2176 = vsel %vm1050, %v2170, 0.0
    %v2177 = vsel %vm1050, %v2172, 0.0
    %v2178 = vsel %vm1050, %v2174, 0.0
    %2179 = vrot.lane.b32.xlu0 %v2106, 120
    %v2180 = vpop.permute.xlu0 %2179
    %2181 = vrot.lane.b32.xlu0 %v2107, 120
    %v2182 = vpop.permute.xlu0 %2181
    %2183 = vrot.lane.b32.xlu0 %v2108, 120
    %v2184 = vpop.permute.xlu0 %2183
    %2185 = vrot.lane.b32.xlu0 %v2109, 120
    %v2186 = vpop.permute.xlu0 %2185
    %vm2187 = vcmp.lt.s32.totalorder %v70, 56
    %v2188 = vsel %vm2187, 1, 0
    %vm2189 = vcmp.eq.s32.totalorder %v2188, 1
    %v2190 = vsel %vm2189, %v2180, 0.0
    %v2191 = vsel %vm2189, %v2182, 0.0
    %v2192 = vsel %vm2189, %v2184, 0.0
    %v2193 = vsel %vm2189, %v2186, 0.0
    %2194 = vrot.lane.b32.xlu0 %v2106, 116
    %v2195 = vpop.permute.xlu0 %2194
    %2196 = vrot.lane.b32.xlu0 %v2107, 116
    %v2197 = vpop.permute.xlu0 %2196
    %2198 = vrot.lane.b32.xlu0 %v2108, 116
    %v2199 = vpop.permute.xlu0 %2198
    %2200 = vrot.lane.b32.xlu0 %v2109, 116
    %v2201 = vpop.permute.xlu0 %2200
    %vm2202 = vcmp.lt.s32.totalorder %v70, 52
    %v2203 = vsel %vm2202, 1, 0
    %vm2204 = vcmp.eq.s32.totalorder %v2203, 1
    %v2205 = vsel %vm2204, %v2195, 0.0
    %v2206 = vsel %vm2204, %v2197, 0.0
    %v2207 = vsel %vm2204, %v2199, 0.0
    %v2208 = vsel %vm2204, %v2201, 0.0
    %2209 = vrot.lane.b32.xlu0 %v2106, 112
    %v2210 = vpop.permute.xlu0 %2209
    %2211 = vrot.lane.b32.xlu0 %v2107, 112
    %v2212 = vpop.permute.xlu0 %2211
    %2213 = vrot.lane.b32.xlu0 %v2108, 112
    %v2214 = vpop.permute.xlu0 %2213
    %2215 = vrot.lane.b32.xlu0 %v2109, 112
    %v2216 = vpop.permute.xlu0 %2215
    %vm2217 = vcmp.lt.s32.totalorder %v70, 48
    %v2218 = vsel %vm2217, 1, 0
    %vm2219 = vcmp.eq.s32.totalorder %v2218, 1
    %v2220 = vsel %vm2219, %v2210, 0.0
    %v2221 = vsel %vm2219, %v2212, 0.0
    %v2222 = vsel %vm2219, %v2214, 0.0
    %v2223 = vsel %vm2219, %v2216, 0.0
    %s2224 = scalar_lea.vmem %s7, 192
    %v2225 = vld [vmem:[%s2224] sm:$0xff]
    %v2226 = vld [vmem:[%s2224 + $0x8] sm:$0xff]
    %v2227 = vld [vmem:[%s2224 + $0x10] sm:$0xff]
    %v2228 = vld [vmem:[%s2224 + $0x18] sm:$0xff]
    %v2229 = vld [vmem:[%s2224 + $0x20] sm:$0xff]
    %v2230 = vld [vmem:[%s2224 + $0x28] sm:$0xff]
    %v2231 = vld [vmem:[%s2224 + $0x30] sm:$0xff]
    %v2232 = vld [vmem:[%s2224 + $0x38] sm:$0xff]
    %v2233 = vld [vmem:[%s2224 + $0x40] sm:$0xff]
    %v2234 = vld [vmem:[%s2224 + $0x48] sm:$0xff]
    %v2235 = vld [vmem:[%s2224 + $0x50] sm:$0xff]
    %v2236 = vld [vmem:[%s2224 + $0x58] sm:$0xff]
    %v2237 = vld [vmem:[%s8 + $0x40] sm:$0xff]
    %v2238 = vld [vmem:[%s8 + $0x48] sm:$0xff]
    %v2239 = vld [vmem:[%s8 + $0x50] sm:$0xff]
    %v2240 = vld [vmem:[%s8 + $0x58] sm:$0xff]
    %2242 = vset.pattern.permute.xlu0 0
    %2243 = vperm.xlu0 %2242, %v2237
    %v2244 = vpop.permute.xlu0 %2243
    %2247 = vset.pattern.permute.xlu0 0
    %2248 = vperm.xlu0 %2247, %v2238
    %v2249 = vpop.permute.xlu0 %2248
    %2252 = vset.pattern.permute.xlu0 0
    %2253 = vperm.xlu0 %2252, %v2239
    %v2254 = vpop.permute.xlu0 %2253
    %2257 = vset.pattern.permute.xlu0 0
    %2258 = vperm.xlu0 %2257, %v2240
    %v2259 = vpop.permute.xlu0 %2258
    %v2262 = vsel %vm536, %v2227, 0
    %v2265 = vsel %vm536, %v2230, 0
    %v2268 = vsel %vm536, %v2233, 0
    %v2271 = vsel %vm536, %v2236, 0
    %2273 = vmatprep.subr.mxu0 0.0
    %2274 = vmatpush1.msra.mxu0 %v2121
    %2275 = vmatprep.subr.mxu0 0.0
    %2276 = vmatpush1.msra.mxu0 %v2122
    %2277 = vmatprep.subr.mxu0 0.0
    %2278 = vmatpush1.msra.mxu0 %v2123
    %2279 = vmatprep.subr.mxu0 0.0
    %2280 = vmatpush1.msra.mxu0 %v2124
    %2281 = vmatprep.subr.mxu0 0.0
    %2282 = vmatpush1.msra.mxu0 %v2136
    %2283 = vmatprep.subr.mxu0 0.0
    %2284 = vmatpush1.msra.mxu0 %v2137
    %2285 = vmatprep.subr.mxu0 0.0
    %2286 = vmatpush1.msra.mxu0 %v2138
    %2287 = vmatprep.subr.mxu0 0.0
    %2288 = vmatpush1.msra.mxu0 %v2139
    %2289 = vmatprep.subr.mxu0 0.0
    %2290 = vmatpush1.msra.mxu0 %v2151
    %2291 = vmatprep.subr.mxu0 0.0
    %2292 = vmatpush1.msra.mxu0 %v2152
    %2293 = vmatprep.subr.mxu0 0.0
    %2294 = vmatpush1.msra.mxu0 %v2153
    %2295 = vmatprep.subr.mxu0 0.0
    %2296 = vmatpush1.msra.mxu0 %v2154
    %2297 = vmatprep.subr.mxu0 0.0
    %2298 = vmatpush1.msra.mxu0 %v2163
    %2299 = vmatprep.subr.mxu0 0.0
    %2300 = vmatpush1.msra.mxu0 %v2164
    %2301 = vmatprep.subr.mxu0 0.0
    %2302 = vmatpush1.msra.mxu0 %v2165
    %2303 = vmatprep.subr.mxu0 0.0
    %2304 = vmatpush1.msra.mxu0 %v2166
    %2305 = vmatprep.subr.mxu0 0.0
    %2306 = vmatpush1.msra.mxu0 %v2106
    %2307 = vmatprep.subr.mxu0 0.0
    %2308 = vmatpush1.msra.mxu0 %v2107
    %2309 = vmatprep.subr.mxu0 0.0
    %2310 = vmatpush1.msra.mxu0 %v2108
    %2311 = vmatprep.subr.mxu0 0.0
    %2312 = vmatpush1.msra.mxu0 %v2109
    %2313 = vmatprep.subr.mxu0 0.0
    %2314 = vmatpush1.msra.mxu0 %v2175
    %2315 = vmatprep.subr.mxu0 0.0
    %2316 = vmatpush1.msra.mxu0 %v2176
    %2317 = vmatprep.subr.mxu0 0.0
    %2318 = vmatpush1.msra.mxu0 %v2177
    %2319 = vmatprep.subr.mxu0 0.0
    %2320 = vmatpush1.msra.mxu0 %v2178
    %2321 = vmatprep.subr.mxu0 0.0
    %2322 = vmatpush1.msra.mxu0 %v2190
    %2323 = vmatprep.subr.mxu0 0.0
    %2324 = vmatpush1.msra.mxu0 %v2191
    %2325 = vmatprep.subr.mxu0 0.0
    %2326 = vmatpush1.msra.mxu0 %v2192
    %2327 = vmatprep.subr.mxu0 0.0
    %2328 = vmatpush1.msra.mxu0 %v2193
    %2329 = vmatprep.subr.mxu0 0.0
    %2330 = vmatpush1.msra.mxu0 %v2205
    %2331 = vmatprep.subr.mxu0 0.0
    %2332 = vmatpush1.msra.mxu0 %v2206
    %2333 = vmatprep.subr.mxu0 0.0
    %2334 = vmatpush1.msra.mxu0 %v2207
    %2335 = vmatprep.subr.mxu0 0.0
    %2336 = vmatpush1.msra.mxu0 %v2208
    %2337 = vmatprep.mubr.f32.mxu0 %v2226
    %2338 = vmatmul.mubr.f32.gmra.mrb[0].mxu0 %v2225
    %v2339 = vpop.f32.mrb[0].mxu0
    %v2340 = vadd.f32 %v2244, %v2339
    %v2341 = vpop.f32.mrb[0].mxu0
    %2342 = vmatprep.mubr.f32.mxu0 %v2229
    %2343 = vmatmul.mubr.f32.gmra.mrb[0].mxu0 %v2228
    %v2344 = vpop.f32.mrb[0].mxu0
    %v2345 = vadd.f32 %v2249, %v2344
    %v2346 = vpop.f32.mrb[0].mxu0
    %2347 = vmatprep.mubr.f32.mxu0 %v2232
    %2348 = vmatmul.mubr.f32.gmra.mrb[0].mxu0 %v2231
    %v2349 = vpop.f32.mrb[0].mxu0
    %v2350 = vadd.f32 %v2254, %v2349
    %v2351 = vpop.f32.mrb[0].mxu0
    %2352 = vmatprep.mubr.f32.mxu0 %v2235
    %2353 = vmatmul.mubr.f32.gmra.mrb[0].mxu0 %v2234
    %v2354 = vpop.f32.mrb[0].mxu0
    %v2355 = vadd.f32 %v2259, %v2354
    %v2356 = vpop.f32.mrb[0].mxu0
    %2357 = vdwg.mxu0
    %2358 = vmatprep.subr.mxu0 0.0
    %2359 = vmatpush1.msra.mxu0 %v2220
    %2360 = vmatprep.subr.mxu0 0.0
    %2361 = vmatpush1.msra.mxu0 %v2221
    %2362 = vmatprep.subr.mxu0 0.0
    %2363 = vmatpush1.msra.mxu0 %v2222
    %2364 = vmatprep.subr.mxu0 0.0
    %2365 = vmatpush1.msra.mxu0 %v2223
    %2366 = vmatprep.subr.mxu0 0.0
    %2367 = vmatpush1.msra.mxu0 0.0
    %2368 = vmatprep.subr.mxu0 0.0
    %2369 = vmatpush1.msra.mxu0 0.0
    %2370 = vmatprep.subr.mxu0 0.0
    %2371 = vmatpush1.msra.mxu0 0.0
    %2372 = vmatprep.subr.mxu0 0.0
    %2373 = vmatpush1.msra.mxu0 0.0
    %2374 = vmatprep.subr.mxu0 0.0
    %2375 = vmatpush1.msra.mxu0 0.0
    %2376 = vmatprep.subr.mxu0 0.0
    %2377 = vmatpush1.msra.mxu0 0.0
    %2378 = vmatprep.subr.mxu0 0.0
    %2379 = vmatpush1.msra.mxu0 0.0
    %2380 = vmatprep.subr.mxu0 0.0
    %2381 = vmatpush1.msra.mxu0 0.0
    %2382 = vmatprep.subr.mxu0 0.0
    %2383 = vmatpush1.msra.mxu0 0.0
    %2384 = vmatprep.subr.mxu0 0.0
    %2385 = vmatpush1.msra.mxu0 0.0
    %2386 = vmatprep.subr.mxu0 0.0
    %2387 = vmatpush1.msra.mxu0 0.0
    %2388 = vmatprep.subr.mxu0 0.0
    %2389 = vmatpush1.msra.mxu0 0.0
    %2390 = vmatprep.subr.mxu0 0.0
    %2391 = vmatpush1.msra.mxu0 0.0
    %2392 = vmatprep.subr.mxu0 0.0
    %2393 = vmatpush1.msra.mxu0 0.0
    %2394 = vmatprep.subr.mxu0 0.0
    %2395 = vmatpush1.msra.mxu0 0.0
    %2396 = vmatprep.subr.mxu0 0.0
    %2397 = vmatpush1.msra.mxu0 0.0
    %2398 = vmatprep.subr.mxu0 0.0
    %2399 = vmatpush1.msra.mxu0 0.0
    %2400 = vmatprep.subr.mxu0 0.0
    %2401 = vmatpush1.msra.mxu0 0.0
    %2402 = vmatprep.subr.mxu0 0.0
    %2403 = vmatpush1.msra.mxu0 0.0
    %2404 = vmatprep.subr.mxu0 0.0
    %2405 = vmatpush1.msra.mxu0 0.0
    %2406 = vmatprep.subr.mxu0 0.0
    %2407 = vmatpush1.msra.mxu0 0.0
    %2408 = vmatprep.subr.mxu0 0.0
    %2409 = vmatpush1.msra.mxu0 0.0
    %2410 = vmatprep.subr.mxu0 0.0
    %2411 = vmatpush1.msra.mxu0 0.0
    %2412 = vmatprep.subr.mxu0 0.0
    %2413 = vmatpush1.msra.mxu0 0.0
    %2414 = vmatprep.subr.mxu0 0.0
    %2415 = vmatpush1.msra.mxu0 0.0
    %2416 = vmatprep.subr.mxu0 0.0
    %2417 = vmatpush1.msra.mxu0 0.0
    %2418 = vmatprep.subr.mxu0 0.0
    %2419 = vmatpush1.msra.mxu0 0.0
    %2420 = vmatprep.subr.mxu0 0.0
    %2421 = vmatpush1.msra.mxu0 0.0
    %2422 = vmatprep.mubr.f32.mxu0 0.0
    %2423 = vmatmul.mubr.f32.gmra.mrb[0].mxu0 %v2262
    %v2424 = vpop.f32.mrb[0].mxu0
    %v2425 = vadd.f32 %v2340, %v2424
    %v2426 = vpop.f32.mrb[0].mxu0
    %2427 = vmatprep.mubr.f32.mxu0 0.0
    %2428 = vmatmul.mubr.f32.gmra.mrb[0].mxu0 %v2265
    %v2429 = vpop.f32.mrb[0].mxu0
    %v2430 = vadd.f32 %v2345, %v2429
    %v2431 = vpop.f32.mrb[0].mxu0
    %2432 = vmatprep.mubr.f32.mxu0 0.0
    %2433 = vmatmul.mubr.f32.gmra.mrb[0].mxu0 %v2268
    %v2434 = vpop.f32.mrb[0].mxu0
    %v2435 = vadd.f32 %v2350, %v2434
    %v2436 = vpop.f32.mrb[0].mxu0
    %2437 = vmatprep.mubr.f32.mxu0 0.0
    %2438 = vmatmul.mubr.f32.gmra.mrb[0].mxu0 %v2271
    %v2439 = vpop.f32.mrb[0].mxu0
    %v2440 = vadd.f32 %v2355, %v2439
    %v2441 = vpop.f32.mrb[0].mxu0
    %2442 = vdwg.mxu0
    %v2443 = vmax.f32 %v2425, 0.0
    %v2444 = vmax.f32 %v2430, 0.0
    %v2445 = vmax.f32 %v2435, 0.0
    %v2446 = vmax.f32 %v2440, 0.0
    %v2447 = vadd.f32 %v2443, %v2012
    %v2448 = vadd.f32 %v2444, %v2013
    %v2449 = vadd.f32 %v2445, %v2014
    %v2450 = vadd.f32 %v2446, %v2015
    %v2451 = vadd.f32 %v2447, %v965
    %v2452 = vadd.f32 %v2448, %v970
    %v2453 = vadd.f32 %v2449, %v975
    %v2454 = vadd.f32 %v2450, %v980
    %v2455 = vadd.f32 %v2451, %v2452
    %v2456 = vadd.f32 %v2455, %v2453
    %v2457 = vadd.f32 %v2456, %v2454
    %v2458 = vrot.slane %v2457, 4
    %v2459 = vadd.f32 %v2457, %v2458
    %v2460 = vrot.slane %v2459, 2
    %v2461 = vadd.f32 %v2459, %v2460
    %v2462 = vrot.slane %v2461, 1
    %v2463 = vadd.f32 %v2461, %v2462
    %v2464 = vmul.f32 %v2463, %v1195
    %v2465 = vsub.f32 %v2451, %v2464
    %v2466 = vsub.f32 %v2452, %v2464
    %v2467 = vsub.f32 %v2453, %v2464
    %v2468 = vsub.f32 %v2454, %v2464
    %v2469 = vmul.f32 %v2465, %v2465
    %v2470 = vmul.f32 %v2466, %v2466
    %v2471 = vmul.f32 %v2467, %v2467
    %v2472 = vmul.f32 %v2468, %v2468
    %v2473 = vadd.f32 %v2469, %v2470
    %v2474 = vadd.f32 %v2473, %v2471
    %v2475 = vadd.f32 %v2474, %v2472
    %v2476 = vrot.slane %v2475, 4
    %v2477 = vadd.f32 %v2475, %v2476
    %v2478 = vrot.slane %v2477, 2
    %v2479 = vadd.f32 %v2477, %v2478
    %v2480 = vrot.slane %v2479, 1
    %v2481 = vadd.f32 %v2479, %v2480
    %v2482 = vmul.f32 %v2481, %v1195
    %v2483 = vadd.f32 %v2482, 1e-05
    %v2484 = vrsqrt.pop %v2483
    %v2485 = vmul.f32 %v2465, %v2484
    %v2486 = vmul.f32 %v2466, %v2484
    %v2487 = vmul.f32 %v2467, %v2484
    %v2488 = vmul.f32 %v2468, %v2484
    %v2489 = vld [vmem:[%s11 + $0x60] sm:$0xff]
    %v2490 = vld [vmem:[%s11 + $0x68] sm:$0xff]
    %v2491 = vld [vmem:[%s11 + $0x70] sm:$0xff]
    %v2492 = vld [vmem:[%s11 + $0x78] sm:$0xff]
    %2494 = vset.pattern.permute.xlu0 0
    %2495 = vperm.xlu0 %2494, %v2489
    %v2496 = vpop.permute.xlu0 %2495
    %2499 = vset.pattern.permute.xlu0 0
    %2500 = vperm.xlu0 %2499, %v2490
    %v2501 = vpop.permute.xlu0 %2500
    %2504 = vset.pattern.permute.xlu0 0
    %2505 = vperm.xlu0 %2504, %v2491
    %v2506 = vpop.permute.xlu0 %2505
    %2509 = vset.pattern.permute.xlu0 0
    %2510 = vperm.xlu0 %2509, %v2492
    %v2511 = vpop.permute.xlu0 %2510
    %v2513 = vmul.f32 %v2485, %v2496
    %v2514 = vmul.f32 %v2486, %v2501
    %v2515 = vmul.f32 %v2487, %v2506
    %v2516 = vmul.f32 %v2488, %v2511
    %v2517 = vld [vmem:[%s12 + $0x60] sm:$0xff]
    %v2518 = vld [vmem:[%s12 + $0x68] sm:$0xff]
    %v2519 = vld [vmem:[%s12 + $0x70] sm:$0xff]
    %v2520 = vld [vmem:[%s12 + $0x78] sm:$0xff]
    %2522 = vset.pattern.permute.xlu0 0
    %2523 = vperm.xlu0 %2522, %v2517
    %v2524 = vpop.permute.xlu0 %2523
    %2527 = vset.pattern.permute.xlu0 0
    %2528 = vperm.xlu0 %2527, %v2518
    %v2529 = vpop.permute.xlu0 %2528
    %2532 = vset.pattern.permute.xlu0 0
    %2533 = vperm.xlu0 %2532, %v2519
    %v2534 = vpop.permute.xlu0 %2533
    %2537 = vset.pattern.permute.xlu0 0
    %2538 = vperm.xlu0 %2537, %v2520
    %v2539 = vpop.permute.xlu0 %2538
    %v2541 = vadd.f32 %v2513, %v2524
    %v2542 = vadd.f32 %v2514, %v2529
    %v2543 = vadd.f32 %v2515, %v2534
    %v2544 = vadd.f32 %v2516, %v2539
    %2545 = vrot.lane.b32.xlu0 %v2541, 48
    %v2546 = vpop.permute.xlu0 %2545
    %2547 = vrot.lane.b32.xlu0 %v2542, 48
    %v2548 = vpop.permute.xlu0 %2547
    %2549 = vrot.lane.b32.xlu0 %v2543, 48
    %v2550 = vpop.permute.xlu0 %2549
    %2551 = vrot.lane.b32.xlu0 %v2544, 48
    %v2552 = vpop.permute.xlu0 %2551
    %vm2553 = vcmp.ge.s32.totalorder %v70, 48
    %v2554 = vsel %vm2553, 1, 0
    %vm2555 = vcmp.eq.s32.totalorder %v2554, 1
    %v2556 = vsel %vm2555, %v2546, 0.0
    %v2557 = vsel %vm2555, %v2548, 0.0
    %v2558 = vsel %vm2555, %v2550, 0.0
    %v2559 = vsel %vm2555, %v2552, 0.0
    %2560 = vrot.lane.b32.xlu0 %v2541, 32
    %v2561 = vpop.permute.xlu0 %2560
    %2562 = vrot.lane.b32.xlu0 %v2542, 32
    %v2563 = vpop.permute.xlu0 %2562
    %2564 = vrot.lane.b32.xlu0 %v2543, 32
    %v2565 = vpop.permute.xlu0 %2564
    %2566 = vrot.lane.b32.xlu0 %v2544, 32
    %v2567 = vpop.permute.xlu0 %2566
    %vm2568 = vcmp.ge.s32.totalorder %v70, 32
    %v2569 = vsel %vm2568, 1, 0
    %vm2570 = vcmp.eq.s32.totalorder %v2569, 1
    %v2571 = vsel %vm2570, %v2561, 0.0
    %v2572 = vsel %vm2570, %v2563, 0.0
    %v2573 = vsel %vm2570, %v2565, 0.0
    %v2574 = vsel %vm2570, %v2567, 0.0
    %2575 = vrot.lane.b32.xlu0 %v2541, 16
    %v2576 = vpop.permute.xlu0 %2575
    %2577 = vrot.lane.b32.xlu0 %v2542, 16
    %v2578 = vpop.permute.xlu0 %2577
    %2579 = vrot.lane.b32.xlu0 %v2543, 16
    %v2580 = vpop.permute.xlu0 %2579
    %2581 = vrot.lane.b32.xlu0 %v2544, 16
    %v2582 = vpop.permute.xlu0 %2581
    %v2583 = vsel %vm2120, %v2576, 0.0
    %v2584 = vsel %vm2120, %v2578, 0.0
    %v2585 = vsel %vm2120, %v2580, 0.0
    %v2586 = vsel %vm2120, %v2582, 0.0
    %2587 = vrot.lane.b32.xlu0 %v2541, 112
    %v2588 = vpop.permute.xlu0 %2587
    %2589 = vrot.lane.b32.xlu0 %v2542, 112
    %v2590 = vpop.permute.xlu0 %2589
    %2591 = vrot.lane.b32.xlu0 %v2543, 112
    %v2592 = vpop.permute.xlu0 %2591
    %2593 = vrot.lane.b32.xlu0 %v2544, 112
    %v2594 = vpop.permute.xlu0 %2593
    %v2595 = vsel %vm2219, %v2588, 0.0
    %v2596 = vsel %vm2219, %v2590, 0.0
    %v2597 = vsel %vm2219, %v2592, 0.0
    %v2598 = vsel %vm2219, %v2594, 0.0
    %2599 = vrot.lane.b32.xlu0 %v2541, 96
    %v2600 = vpop.permute.xlu0 %2599
    %2601 = vrot.lane.b32.xlu0 %v2542, 96
    %v2602 = vpop.permute.xlu0 %2601
    %2603 = vrot.lane.b32.xlu0 %v2543, 96
    %v2604 = vpop.permute.xlu0 %2603
    %2605 = vrot.lane.b32.xlu0 %v2544, 96
    %v2606 = vpop.permute.xlu0 %2605
    %vm2607 = vcmp.lt.s32.totalorder %v70, 32
    %v2608 = vsel %vm2607, 1, 0
    %vm2609 = vcmp.eq.s32.totalorder %v2608, 1
    %v2610 = vsel %vm2609, %v2600, 0.0
    %v2611 = vsel %vm2609, %v2602, 0.0
    %v2612 = vsel %vm2609, %v2604, 0.0
    %v2613 = vsel %vm2609, %v2606, 0.0
    %2614 = vrot.lane.b32.xlu0 %v2541, 80
    %v2615 = vpop.permute.xlu0 %2614
    %2616 = vrot.lane.b32.xlu0 %v2542, 80
    %v2617 = vpop.permute.xlu0 %2616
    %2618 = vrot.lane.b32.xlu0 %v2543, 80
    %v2619 = vpop.permute.xlu0 %2618
    %2620 = vrot.lane.b32.xlu0 %v2544, 80
    %v2621 = vpop.permute.xlu0 %2620
    %vm2622 = vcmp.lt.s32.totalorder %v70, 16
    %v2623 = vsel %vm2622, 1, 0
    %vm2624 = vcmp.eq.s32.totalorder %v2623, 1
    %v2625 = vsel %vm2624, %v2615, 0.0
    %v2626 = vsel %vm2624, %v2617, 0.0
    %v2627 = vsel %vm2624, %v2619, 0.0
    %v2628 = vsel %vm2624, %v2621, 0.0
    %s2629 = scalar_lea.vmem %s7, 288
    %v2630 = vld [vmem:[%s2629] sm:$0xff]
    %v2631 = vld [vmem:[%s2629 + $0x8] sm:$0xff]
    %v2632 = vld [vmem:[%s2629 + $0x10] sm:$0xff]
    %v2633 = vld [vmem:[%s2629 + $0x18] sm:$0xff]
    %v2634 = vld [vmem:[%s2629 + $0x20] sm:$0xff]
    %v2635 = vld [vmem:[%s2629 + $0x28] sm:$0xff]
    %v2636 = vld [vmem:[%s2629 + $0x30] sm:$0xff]
    %v2637 = vld [vmem:[%s2629 + $0x38] sm:$0xff]
    %v2638 = vld [vmem:[%s2629 + $0x40] sm:$0xff]
    %v2639 = vld [vmem:[%s2629 + $0x48] sm:$0xff]
    %v2640 = vld [vmem:[%s2629 + $0x50] sm:$0xff]
    %v2641 = vld [vmem:[%s2629 + $0x58] sm:$0xff]
    %v2642 = vld [vmem:[%s8 + $0x60] sm:$0xff]
    %v2643 = vld [vmem:[%s8 + $0x68] sm:$0xff]
    %v2644 = vld [vmem:[%s8 + $0x70] sm:$0xff]
    %v2645 = vld [vmem:[%s8 + $0x78] sm:$0xff]
    %2647 = vset.pattern.permute.xlu0 0
    %2648 = vperm.xlu0 %2647, %v2642
    %v2649 = vpop.permute.xlu0 %2648
    %2652 = vset.pattern.permute.xlu0 0
    %2653 = vperm.xlu0 %2652, %v2643
    %v2654 = vpop.permute.xlu0 %2653
    %2657 = vset.pattern.permute.xlu0 0
    %2658 = vperm.xlu0 %2657, %v2644
    %v2659 = vpop.permute.xlu0 %2658
    %2662 = vset.pattern.permute.xlu0 0
    %2663 = vperm.xlu0 %2662, %v2645
    %v2664 = vpop.permute.xlu0 %2663
    %v2667 = vsel %vm536, %v2632, 0
    %v2670 = vsel %vm536, %v2635, 0
    %v2673 = vsel %vm536, %v2638, 0
    %v2676 = vsel %vm536, %v2641, 0
    %2678 = vmatprep.subr.mxu0 0.0
    %2679 = vmatpush1.msra.mxu0 0.0
    %2680 = vmatprep.subr.mxu0 0.0
    %2681 = vmatpush1.msra.mxu0 0.0
    %2682 = vmatprep.subr.mxu0 0.0
    %2683 = vmatpush1.msra.mxu0 0.0
    %2684 = vmatprep.subr.mxu0 0.0
    %2685 = vmatpush1.msra.mxu0 0.0
    %2686 = vmatprep.subr.mxu0 0.0
    %2687 = vmatpush1.msra.mxu0 %v2556
    %2688 = vmatprep.subr.mxu0 0.0
    %2689 = vmatpush1.msra.mxu0 %v2557
    %2690 = vmatprep.subr.mxu0 0.0
    %2691 = vmatpush1.msra.mxu0 %v2558
    %2692 = vmatprep.subr.mxu0 0.0
    %2693 = vmatpush1.msra.mxu0 %v2559
    %2694 = vmatprep.subr.mxu0 0.0
    %2695 = vmatpush1.msra.mxu0 %v2571
    %2696 = vmatprep.subr.mxu0 0.0
    %2697 = vmatpush1.msra.mxu0 %v2572
    %2698 = vmatprep.subr.mxu0 0.0
    %2699 = vmatpush1.msra.mxu0 %v2573
    %2700 = vmatprep.subr.mxu0 0.0
    %2701 = vmatpush1.msra.mxu0 %v2574
    %2702 = vmatprep.subr.mxu0 0.0
    %2703 = vmatpush1.msra.mxu0 %v2583
    %2704 = vmatprep.subr.mxu0 0.0
    %2705 = vmatpush1.msra.mxu0 %v2584
    %2706 = vmatprep.subr.mxu0 0.0
    %2707 = vmatpush1.msra.mxu0 %v2585
    %2708 = vmatprep.subr.mxu0 0.0
    %2709 = vmatpush1.msra.mxu0 %v2586
    %2710 = vmatprep.subr.mxu0 0.0
    %2711 = vmatpush1.msra.mxu0 %v2541
    %2712 = vmatprep.subr.mxu0 0.0
    %2713 = vmatpush1.msra.mxu0 %v2542
    %2714 = vmatprep.subr.mxu0 0.0
    %2715 = vmatpush1.msra.mxu0 %v2543
    %2716 = vmatprep.subr.mxu0 0.0
    %2717 = vmatpush1.msra.mxu0 %v2544
    %2718 = vmatprep.subr.mxu0 0.0
    %2719 = vmatpush1.msra.mxu0 %v2595
    %2720 = vmatprep.subr.mxu0 0.0
    %2721 = vmatpush1.msra.mxu0 %v2596
    %2722 = vmatprep.subr.mxu0 0.0
    %2723 = vmatpush1.msra.mxu0 %v2597
    %2724 = vmatprep.subr.mxu0 0.0
    %2725 = vmatpush1.msra.mxu0 %v2598
    %2726 = vmatprep.subr.mxu0 0.0
    %2727 = vmatpush1.msra.mxu0 %v2610
    %2728 = vmatprep.subr.mxu0 0.0
    %2729 = vmatpush1.msra.mxu0 %v2611
    %2730 = vmatprep.subr.mxu0 0.0
    %2731 = vmatpush1.msra.mxu0 %v2612
    %2732 = vmatprep.subr.mxu0 0.0
    %2733 = vmatpush1.msra.mxu0 %v2613
    %2734 = vmatprep.subr.mxu0 0.0
    %2735 = vmatpush1.msra.mxu0 %v2625
    %2736 = vmatprep.subr.mxu0 0.0
    %2737 = vmatpush1.msra.mxu0 %v2626
    %2738 = vmatprep.subr.mxu0 0.0
    %2739 = vmatpush1.msra.mxu0 %v2627
    %2740 = vmatprep.subr.mxu0 0.0
    %2741 = vmatpush1.msra.mxu0 %v2628
    %2742 = vmatprep.mubr.f32.mxu0 %v2631
    %2743 = vmatmul.mubr.f32.gmra.mrb[0].mxu0 %v2630
    %v2744 = vpop.f32.mrb[0].mxu0
    %v2745 = vadd.f32 %v2649, %v2744
    %v2746 = vpop.f32.mrb[0].mxu0
    %2747 = vmatprep.mubr.f32.mxu0 %v2634
    %2748 = vmatmul.mubr.f32.gmra.mrb[0].mxu0 %v2633
    %v2749 = vpop.f32.mrb[0].mxu0
    %v2750 = vadd.f32 %v2654, %v2749
    %v2751 = vpop.f32.mrb[0].mxu0
    %2752 = vmatprep.mubr.f32.mxu0 %v2637
    %2753 = vmatmul.mubr.f32.gmra.mrb[0].mxu0 %v2636
    %v2754 = vpop.f32.mrb[0].mxu0
    %v2755 = vadd.f32 %v2659, %v2754
    %v2756 = vpop.f32.mrb[0].mxu0
    %2757 = vmatprep.mubr.f32.mxu0 %v2640
    %2758 = vmatmul.mubr.f32.gmra.mrb[0].mxu0 %v2639
    %v2759 = vpop.f32.mrb[0].mxu0
    %v2760 = vadd.f32 %v2664, %v2759
    %v2761 = vpop.f32.mrb[0].mxu0
    %2762 = vdwg.mxu0
    %2763 = vmatprep.subr.mxu0 0.0
    %2764 = vmatpush1.msra.mxu0 0.0
    %2765 = vmatprep.subr.mxu0 0.0
    %2766 = vmatpush1.msra.mxu0 0.0
    %2767 = vmatprep.subr.mxu0 0.0
    %2768 = vmatpush1.msra.mxu0 0.0
    %2769 = vmatprep.subr.mxu0 0.0
    %2770 = vmatpush1.msra.mxu0 0.0
    %2771 = vmatprep.subr.mxu0 0.0
    %2772 = vmatpush1.msra.mxu0 0.0
    %2773 = vmatprep.subr.mxu0 0.0
    %2774 = vmatpush1.msra.mxu0 0.0
    %2775 = vmatprep.subr.mxu0 0.0
    %2776 = vmatpush1.msra.mxu0 0.0
    %2777 = vmatprep.subr.mxu0 0.0
    %2778 = vmatpush1.msra.mxu0 0.0
    %2779 = vmatprep.subr.mxu0 0.0
    %2780 = vmatpush1.msra.mxu0 0.0
    %2781 = vmatprep.subr.mxu0 0.0
    %2782 = vmatpush1.msra.mxu0 0.0
    %2783 = vmatprep.subr.mxu0 0.0
    %2784 = vmatpush1.msra.mxu0 0.0
    %2785 = vmatprep.subr.mxu0 0.0
    %2786 = vmatpush1.msra.mxu0 0.0
    %2787 = vmatprep.subr.mxu0 0.0
    %2788 = vmatpush1.msra.mxu0 0.0
    %2789 = vmatprep.subr.mxu0 0.0
    %2790 = vmatpush1.msra.mxu0 0.0
    %2791 = vmatprep.subr.mxu0 0.0
    %2792 = vmatpush1.msra.mxu0 0.0
    %2793 = vmatprep.subr.mxu0 0.0
    %2794 = vmatpush1.msra.mxu0 0.0
    %2795 = vmatprep.subr.mxu0 0.0
    %2796 = vmatpush1.msra.mxu0 0.0
    %2797 = vmatprep.subr.mxu0 0.0
    %2798 = vmatpush1.msra.mxu0 0.0
    %2799 = vmatprep.subr.mxu0 0.0
    %2800 = vmatpush1.msra.mxu0 0.0
    %2801 = vmatprep.subr.mxu0 0.0
    %2802 = vmatpush1.msra.mxu0 0.0
    %2803 = vmatprep.subr.mxu0 0.0
    %2804 = vmatpush1.msra.mxu0 0.0
    %2805 = vmatprep.subr.mxu0 0.0
    %2806 = vmatpush1.msra.mxu0 0.0
    %2807 = vmatprep.subr.mxu0 0.0
    %2808 = vmatpush1.msra.mxu0 0.0
    %2809 = vmatprep.subr.mxu0 0.0
    %2810 = vmatpush1.msra.mxu0 0.0
    %2811 = vmatprep.subr.mxu0 0.0
    %2812 = vmatpush1.msra.mxu0 0.0
    %2813 = vmatprep.subr.mxu0 0.0
    %2814 = vmatpush1.msra.mxu0 0.0
    %2815 = vmatprep.subr.mxu0 0.0
    %2816 = vmatpush1.msra.mxu0 0.0
    %2817 = vmatprep.subr.mxu0 0.0
    %2818 = vmatpush1.msra.mxu0 0.0
    %2819 = vmatprep.subr.mxu0 0.0
    %2820 = vmatpush1.msra.mxu0 0.0
    %2821 = vmatprep.subr.mxu0 0.0
    %2822 = vmatpush1.msra.mxu0 0.0
    %2823 = vmatprep.subr.mxu0 0.0
    %2824 = vmatpush1.msra.mxu0 0.0
    %2825 = vmatprep.subr.mxu0 0.0
    %2826 = vmatpush1.msra.mxu0 0.0
    %2827 = vmatprep.mubr.f32.mxu0 0.0
    %2828 = vmatmul.mubr.f32.gmra.mrb[0].mxu0 %v2667
    %v2829 = vpop.f32.mrb[0].mxu0
    %v2830 = vadd.f32 %v2745, %v2829
    %v2831 = vpop.f32.mrb[0].mxu0
    %2832 = vmatprep.mubr.f32.mxu0 0.0
    %2833 = vmatmul.mubr.f32.gmra.mrb[0].mxu0 %v2670
    %v2834 = vpop.f32.mrb[0].mxu0
    %v2835 = vadd.f32 %v2750, %v2834
    %v2836 = vpop.f32.mrb[0].mxu0
    %2837 = vmatprep.mubr.f32.mxu0 0.0
    %2838 = vmatmul.mubr.f32.gmra.mrb[0].mxu0 %v2673
    %v2839 = vpop.f32.mrb[0].mxu0
    %v2840 = vadd.f32 %v2755, %v2839
    %v2841 = vpop.f32.mrb[0].mxu0
    %2842 = vmatprep.mubr.f32.mxu0 0.0
    %2843 = vmatmul.mubr.f32.gmra.mrb[0].mxu0 %v2676
    %v2844 = vpop.f32.mrb[0].mxu0
    %v2845 = vadd.f32 %v2760, %v2844
    %v2846 = vpop.f32.mrb[0].mxu0
    %2847 = vdwg.mxu0
    %v2848 = vmax.f32 %v2830, 0.0
    %v2849 = vmax.f32 %v2835, 0.0
    %v2850 = vmax.f32 %v2840, 0.0
    %v2851 = vmax.f32 %v2845, 0.0
    %v2852 = vadd.f32 %v2848, %v2447
    %v2853 = vadd.f32 %v2849, %v2448
    %v2854 = vadd.f32 %v2850, %v2449
    %v2855 = vadd.f32 %v2851, %v2450
    %v2856 = vadd.f32 %v2852, %v985
    %v2857 = vadd.f32 %v2853, %v990
    %v2858 = vadd.f32 %v2854, %v995
    %v2859 = vadd.f32 %v2855, %v1000
    %v2860 = vadd.f32 %v2856, %v2857
    %v2861 = vadd.f32 %v2860, %v2858
    %v2862 = vadd.f32 %v2861, %v2859
    %v2863 = vrot.slane %v2862, 4
    %v2864 = vadd.f32 %v2862, %v2863
    %v2865 = vrot.slane %v2864, 2
    %v2866 = vadd.f32 %v2864, %v2865
    %v2867 = vrot.slane %v2866, 1
    %v2868 = vadd.f32 %v2866, %v2867
    %v2869 = vmul.f32 %v2868, %v1195
    %v2870 = vsub.f32 %v2856, %v2869
    %v2871 = vsub.f32 %v2857, %v2869
    %v2872 = vsub.f32 %v2858, %v2869
    %v2873 = vsub.f32 %v2859, %v2869
    %v2874 = vmul.f32 %v2870, %v2870
    %v2875 = vmul.f32 %v2871, %v2871
    %v2876 = vmul.f32 %v2872, %v2872
    %v2877 = vmul.f32 %v2873, %v2873
    %v2878 = vadd.f32 %v2874, %v2875
    %v2879 = vadd.f32 %v2878, %v2876
    %v2880 = vadd.f32 %v2879, %v2877
    %v2881 = vrot.slane %v2880, 4
    %v2882 = vadd.f32 %v2880, %v2881
    %v2883 = vrot.slane %v2882, 2
    %v2884 = vadd.f32 %v2882, %v2883
    %v2885 = vrot.slane %v2884, 1
    %v2886 = vadd.f32 %v2884, %v2885
    %v2887 = vmul.f32 %v2886, %v1195
    %v2888 = vadd.f32 %v2887, 1e-05
    %v2889 = vrsqrt.pop %v2888
    %v2890 = vmul.f32 %v2870, %v2889
    %v2891 = vmul.f32 %v2871, %v2889
    %v2892 = vmul.f32 %v2872, %v2889
    %v2893 = vmul.f32 %v2873, %v2889
    %v2894 = vld [vmem:[%s11 + $0x80] sm:$0xff]
    %v2895 = vld [vmem:[%s11 + $0x88] sm:$0xff]
    %v2896 = vld [vmem:[%s11 + $0x90] sm:$0xff]
    %v2897 = vld [vmem:[%s11 + $0x98] sm:$0xff]
    %2899 = vset.pattern.permute.xlu0 0
    %2900 = vperm.xlu0 %2899, %v2894
    %v2901 = vpop.permute.xlu0 %2900
    %2904 = vset.pattern.permute.xlu0 0
    %2905 = vperm.xlu0 %2904, %v2895
    %v2906 = vpop.permute.xlu0 %2905
    %2909 = vset.pattern.permute.xlu0 0
    %2910 = vperm.xlu0 %2909, %v2896
    %v2911 = vpop.permute.xlu0 %2910
    %2914 = vset.pattern.permute.xlu0 0
    %2915 = vperm.xlu0 %2914, %v2897
    %v2916 = vpop.permute.xlu0 %2915
    %v2918 = vmul.f32 %v2890, %v2901
    %v2919 = vmul.f32 %v2891, %v2906
    %v2920 = vmul.f32 %v2892, %v2911
    %v2921 = vmul.f32 %v2893, %v2916
    %v2922 = vld [vmem:[%s12 + $0x80] sm:$0xff]
    %v2923 = vld [vmem:[%s12 + $0x88] sm:$0xff]
    %v2924 = vld [vmem:[%s12 + $0x90] sm:$0xff]
    %v2925 = vld [vmem:[%s12 + $0x98] sm:$0xff]
    %2927 = vset.pattern.permute.xlu0 0
    %2928 = vperm.xlu0 %2927, %v2922
    %v2929 = vpop.permute.xlu0 %2928
    %2932 = vset.pattern.permute.xlu0 0
    %2933 = vperm.xlu0 %2932, %v2923
    %v2934 = vpop.permute.xlu0 %2933
    %2937 = vset.pattern.permute.xlu0 0
    %2938 = vperm.xlu0 %2937, %v2924
    %v2939 = vpop.permute.xlu0 %2938
    %2942 = vset.pattern.permute.xlu0 0
    %2943 = vperm.xlu0 %2942, %v2925
    %v2944 = vpop.permute.xlu0 %2943
    %v2946 = vadd.f32 %v2918, %v2929
    %v2947 = vadd.f32 %v2919, %v2934
    %v2948 = vadd.f32 %v2920, %v2939
    %v2949 = vadd.f32 %v2921, %v2944
    %s2950 = scalar_lea.vmem %s7, 384
    %v2951 = vld [vmem:[%s2950] sm:$0xff]
    %v2952 = vld [vmem:[%s2950 + $0x8] sm:$0xff]
    %v2953 = vld [vmem:[%s2950 + $0x10] sm:$0xff]
    %v2954 = vld [vmem:[%s2950 + $0x18] sm:$0xff]
    %v2955 = vld [vmem:[%s2950 + $0x20] sm:$0xff]
    %v2956 = vld [vmem:[%s2950 + $0x28] sm:$0xff]
    %v2957 = vld [vmem:[%s2950 + $0x30] sm:$0xff]
    %v2958 = vld [vmem:[%s2950 + $0x38] sm:$0xff]
    %v2959 = vld [vmem:[%s2950 + $0x40] sm:$0xff]
    %v2960 = vld [vmem:[%s2950 + $0x48] sm:$0xff]
    %v2961 = vld [vmem:[%s2950 + $0x50] sm:$0xff]
    %v2962 = vld [vmem:[%s2950 + $0x58] sm:$0xff]
    %v2963 = vld [vmem:[%s8 + $0x80] sm:$0xff]
    %v2964 = vld [vmem:[%s8 + $0x88] sm:$0xff]
    %v2965 = vld [vmem:[%s8 + $0x90] sm:$0xff]
    %v2966 = vld [vmem:[%s8 + $0x98] sm:$0xff]
    %2968 = vset.pattern.permute.xlu0 0
    %2969 = vperm.xlu0 %2968, %v2963
    %v2970 = vpop.permute.xlu0 %2969
    %2973 = vset.pattern.permute.xlu0 0
    %2974 = vperm.xlu0 %2973, %v2964
    %v2975 = vpop.permute.xlu0 %2974
    %2978 = vset.pattern.permute.xlu0 0
    %2979 = vperm.xlu0 %2978, %v2965
    %v2980 = vpop.permute.xlu0 %2979
    %2983 = vset.pattern.permute.xlu0 0
    %2984 = vperm.xlu0 %2983, %v2966
    %v2985 = vpop.permute.xlu0 %2984
    %v2988 = vsel %vm536, %v2953, 0
    %v2991 = vsel %vm536, %v2956, 0
    %v2994 = vsel %vm536, %v2959, 0
    %v2997 = vsel %vm536, %v2962, 0
    %2999 = vmatprep.subr.mxu0 0.0
    %3000 = vmatpush1.msra.mxu0 0.0
    %3001 = vmatprep.subr.mxu0 0.0
    %3002 = vmatpush1.msra.mxu0 0.0
    %3003 = vmatprep.subr.mxu0 0.0
    %3004 = vmatpush1.msra.mxu0 0.0
    %3005 = vmatprep.subr.mxu0 0.0
    %3006 = vmatpush1.msra.mxu0 0.0
    %3007 = vmatprep.subr.mxu0 0.0
    %3008 = vmatpush1.msra.mxu0 0.0
    %3009 = vmatprep.subr.mxu0 0.0
    %3010 = vmatpush1.msra.mxu0 0.0
    %3011 = vmatprep.subr.mxu0 0.0
    %3012 = vmatpush1.msra.mxu0 0.0
    %3013 = vmatprep.subr.mxu0 0.0
    %3014 = vmatpush1.msra.mxu0 0.0
    %3015 = vmatprep.subr.mxu0 0.0
    %3016 = vmatpush1.msra.mxu0 0.0
    %3017 = vmatprep.subr.mxu0 0.0
    %3018 = vmatpush1.msra.mxu0 0.0
    %3019 = vmatprep.subr.mxu0 0.0
    %3020 = vmatpush1.msra.mxu0 0.0
    %3021 = vmatprep.subr.mxu0 0.0
    %3022 = vmatpush1.msra.mxu0 0.0
    %3023 = vmatprep.subr.mxu0 0.0
    %3024 = vmatpush1.msra.mxu0 0.0
    %3025 = vmatprep.subr.mxu0 0.0
    %3026 = vmatpush1.msra.mxu0 0.0
    %3027 = vmatprep.subr.mxu0 0.0
    %3028 = vmatpush1.msra.mxu0 0.0
    %3029 = vmatprep.subr.mxu0 0.0
    %3030 = vmatpush1.msra.mxu0 0.0
    %3031 = vmatprep.subr.mxu0 0.0
    %3032 = vmatpush1.msra.mxu0 %v2946
    %3033 = vmatprep.subr.mxu0 0.0
    %3034 = vmatpush1.msra.mxu0 %v2947
    %3035 = vmatprep.subr.mxu0 0.0
    %3036 = vmatpush1.msra.mxu0 %v2948
    %3037 = vmatprep.subr.mxu0 0.0
    %3038 = vmatpush1.msra.mxu0 %v2949
    %3039 = vmatprep.subr.mxu0 0.0
    %3040 = vmatpush1.msra.mxu0 0.0
    %3041 = vmatprep.subr.mxu0 0.0
    %3042 = vmatpush1.msra.mxu0 0.0
    %3043 = vmatprep.subr.mxu0 0.0
    %3044 = vmatpush1.msra.mxu0 0.0
    %3045 = vmatprep.subr.mxu0 0.0
    %3046 = vmatpush1.msra.mxu0 0.0
    %3047 = vmatprep.subr.mxu0 0.0
    %3048 = vmatpush1.msra.mxu0 0.0
    %3049 = vmatprep.subr.mxu0 0.0
    %3050 = vmatpush1.msra.mxu0 0.0
    %3051 = vmatprep.subr.mxu0 0.0
    %3052 = vmatpush1.msra.mxu0 0.0
    %3053 = vmatprep.subr.mxu0 0.0
    %3054 = vmatpush1.msra.mxu0 0.0
    %3055 = vmatprep.subr.mxu0 0.0
    %3056 = vmatpush1.msra.mxu0 0.0
    %3057 = vmatprep.subr.mxu0 0.0
    %3058 = vmatpush1.msra.mxu0 0.0
    %3059 = vmatprep.subr.mxu0 0.0
    %3060 = vmatpush1.msra.mxu0 0.0
    %3061 = vmatprep.subr.mxu0 0.0
    %3062 = vmatpush1.msra.mxu0 0.0
    %3063 = vmatprep.mubr.f32.mxu0 %v2952
    %3064 = vmatmul.mubr.f32.gmra.mrb[0].mxu0 %v2951
    %v3065 = vpop.f32.mrb[0].mxu0
    %v3066 = vadd.f32 %v2970, %v3065
    %v3067 = vpop.f32.mrb[0].mxu0
    %3068 = vmatprep.mubr.f32.mxu0 %v2955
    %3069 = vmatmul.mubr.f32.gmra.mrb[0].mxu0 %v2954
    %v3070 = vpop.f32.mrb[0].mxu0
    %v3071 = vadd.f32 %v2975, %v3070
    %v3072 = vpop.f32.mrb[0].mxu0
    %3073 = vmatprep.mubr.f32.mxu0 %v2958
    %3074 = vmatmul.mubr.f32.gmra.mrb[0].mxu0 %v2957
    %v3075 = vpop.f32.mrb[0].mxu0
    %v3076 = vadd.f32 %v2980, %v3075
    %v3077 = vpop.f32.mrb[0].mxu0
    %3078 = vmatprep.mubr.f32.mxu0 %v2961
    %3079 = vmatmul.mubr.f32.gmra.mrb[0].mxu0 %v2960
    %v3080 = vpop.f32.mrb[0].mxu0
    %v3081 = vadd.f32 %v2985, %v3080
    %v3082 = vpop.f32.mrb[0].mxu0
    %3083 = vdwg.mxu0
    %3084 = vmatprep.subr.mxu0 0.0
    %3085 = vmatpush1.msra.mxu0 0.0
    %3086 = vmatprep.subr.mxu0 0.0
    %3087 = vmatpush1.msra.mxu0 0.0
    %3088 = vmatprep.subr.mxu0 0.0
    %3089 = vmatpush1.msra.mxu0 0.0
    %3090 = vmatprep.subr.mxu0 0.0
    %3091 = vmatpush1.msra.mxu0 0.0
    %3092 = vmatprep.subr.mxu0 0.0
    %3093 = vmatpush1.msra.mxu0 0.0
    %3094 = vmatprep.subr.mxu0 0.0
    %3095 = vmatpush1.msra.mxu0 0.0
    %3096 = vmatprep.subr.mxu0 0.0
    %3097 = vmatpush1.msra.mxu0 0.0
    %3098 = vmatprep.subr.mxu0 0.0
    %3099 = vmatpush1.msra.mxu0 0.0
    %3100 = vmatprep.subr.mxu0 0.0
    %3101 = vmatpush1.msra.mxu0 0.0
    %3102 = vmatprep.subr.mxu0 0.0
    %3103 = vmatpush1.msra.mxu0 0.0
    %3104 = vmatprep.subr.mxu0 0.0
    %3105 = vmatpush1.msra.mxu0 0.0
    %3106 = vmatprep.subr.mxu0 0.0
    %3107 = vmatpush1.msra.mxu0 0.0
    %3108 = vmatprep.subr.mxu0 0.0
    %3109 = vmatpush1.msra.mxu0 0.0
    %3110 = vmatprep.subr.mxu0 0.0
    %3111 = vmatpush1.msra.mxu0 0.0
    %3112 = vmatprep.subr.mxu0 0.0
    %3113 = vmatpush1.msra.mxu0 0.0
    %3114 = vmatprep.subr.mxu0 0.0
    %3115 = vmatpush1.msra.mxu0 0.0
    %3116 = vmatprep.subr.mxu0 0.0
    %3117 = vmatpush1.msra.mxu0 0.0
    %3118 = vmatprep.subr.mxu0 0.0
    %3119 = vmatpush1.msra.mxu0 0.0
    %3120 = vmatprep.subr.mxu0 0.0
    %3121 = vmatpush1.msra.mxu0 0.0
    %3122 = vmatprep.subr.mxu0 0.0
    %3123 = vmatpush1.msra.mxu0 0.0
    %3124 = vmatprep.subr.mxu0 0.0
    %3125 = vmatpush1.msra.mxu0 0.0
    %3126 = vmatprep.subr.mxu0 0.0
    %3127 = vmatpush1.msra.mxu0 0.0
    %3128 = vmatprep.subr.mxu0 0.0
    %3129 = vmatpush1.msra.mxu0 0.0
    %3130 = vmatprep.subr.mxu0 0.0
    %3131 = vmatpush1.msra.mxu0 0.0
    %3132 = vmatprep.subr.mxu0 0.0
    %3133 = vmatpush1.msra.mxu0 0.0
    %3134 = vmatprep.subr.mxu0 0.0
    %3135 = vmatpush1.msra.mxu0 0.0
    %3136 = vmatprep.subr.mxu0 0.0
    %3137 = vmatpush1.msra.mxu0 0.0
    %3138 = vmatprep.subr.mxu0 0.0
    %3139 = vmatpush1.msra.mxu0 0.0
    %3140 = vmatprep.subr.mxu0 0.0
    %3141 = vmatpush1.msra.mxu0 0.0
    %3142 = vmatprep.subr.mxu0 0.0
    %3143 = vmatpush1.msra.mxu0 0.0
    %3144 = vmatprep.subr.mxu0 0.0
    %3145 = vmatpush1.msra.mxu0 0.0
    %3146 = vmatprep.subr.mxu0 0.0
    %3147 = vmatpush1.msra.mxu0 0.0
    %3148 = vmatprep.mubr.f32.mxu0 0.0
    %3149 = vmatmul.mubr.f32.gmra.mrb[0].mxu0 %v2988
    %v3150 = vpop.f32.mrb[0].mxu0
    %v3151 = vadd.f32 %v3066, %v3150
    %v3152 = vpop.f32.mrb[0].mxu0
    %3153 = vmatprep.mubr.f32.mxu0 0.0
    %3154 = vmatmul.mubr.f32.gmra.mrb[0].mxu0 %v2991
    %v3155 = vpop.f32.mrb[0].mxu0
    %v3156 = vadd.f32 %v3071, %v3155
    %v3157 = vpop.f32.mrb[0].mxu0
    %3158 = vmatprep.mubr.f32.mxu0 0.0
    %3159 = vmatmul.mubr.f32.gmra.mrb[0].mxu0 %v2994
    %v3160 = vpop.f32.mrb[0].mxu0
    %v3161 = vadd.f32 %v3076, %v3160
    %v3162 = vpop.f32.mrb[0].mxu0
    %3163 = vmatprep.mubr.f32.mxu0 0.0
    %3164 = vmatmul.mubr.f32.gmra.mrb[0].mxu0 %v2997
    %v3165 = vpop.f32.mrb[0].mxu0
    %v3166 = vadd.f32 %v3081, %v3165
    %v3167 = vpop.f32.mrb[0].mxu0
    %3168 = vdwg.mxu0
    %v3169 = vmax.f32 %v3151, 0.0
    %v3170 = vmax.f32 %v3156, 0.0
    %v3171 = vmax.f32 %v3161, 0.0
    %v3172 = vmax.f32 %v3166, 0.0
    %v3173 = vadd.f32 %v3169, %v2852
    %v3174 = vadd.f32 %v3170, %v2853
    %v3175 = vadd.f32 %v3171, %v2854
    %v3176 = vadd.f32 %v3172, %v2855
    %v3177 = vld [vmem:[%s13] sm:$0xff]
    %v3178 = vld [vmem:[%s13 + $0x8] sm:$0xff]
    %v3179 = vld [vmem:[%s13 + $0x10] sm:$0xff]
    %v3180 = vld [vmem:[%s13 + $0x18] sm:$0xff]
    %v3181 = vld [vmem:[%s14] sm:$0xff]
    %v3182 = vld [vmem:[%s14 + $0x8] sm:$0xff]
    %v3183 = vld [vmem:[%s14 + $0x10] sm:$0xff]
    %v3184 = vld [vmem:[%s14 + $0x18] sm:$0xff]
    %3186 = vset.pattern.permute.xlu0 0
    %3187 = vperm.xlu0 %3186, %v3181
    %v3188 = vpop.permute.xlu0 %3187
    %3191 = vset.pattern.permute.xlu0 0
    %3192 = vperm.xlu0 %3191, %v3182
    %v3193 = vpop.permute.xlu0 %3192
    %3196 = vset.pattern.permute.xlu0 0
    %3197 = vperm.xlu0 %3196, %v3183
    %v3198 = vpop.permute.xlu0 %3197
    %3201 = vset.pattern.permute.xlu0 0
    %3202 = vperm.xlu0 %3201, %v3184
    %v3203 = vpop.permute.xlu0 %3202
    %v3206 = vsel %vm536, %v3177, 0
    %v3209 = vsel %vm536, %v3178, 0
    %v3212 = vsel %vm536, %v3179, 0
    %v3215 = vsel %vm536, %v3180, 0
    %3217 = vmatprep.subr.mxu0 0.0
    %3218 = vmatpush1.msra.mxu0 %v3173
    %3219 = vmatprep.subr.mxu0 0.0
    %3220 = vmatpush1.msra.mxu0 %v3174
    %3221 = vmatprep.subr.mxu0 0.0
    %3222 = vmatpush1.msra.mxu0 %v3175
    %3223 = vmatprep.subr.mxu0 0.0
    %3224 = vmatpush1.msra.mxu0 %v3176
    %3225 = vmatprep.subr.mxu0 0.0
    %3226 = vmatpush1.msra.mxu0 0.0
    %3227 = vmatprep.subr.mxu0 0.0
    %3228 = vmatpush1.msra.mxu0 0.0
    %3229 = vmatprep.subr.mxu0 0.0
    %3230 = vmatpush1.msra.mxu0 0.0
    %3231 = vmatprep.subr.mxu0 0.0
    %3232 = vmatpush1.msra.mxu0 0.0
    %3233 = vmatprep.subr.mxu0 0.0
    %3234 = vmatpush1.msra.mxu0 0.0
    %3235 = vmatprep.subr.mxu0 0.0
    %3236 = vmatpush1.msra.mxu0 0.0
    %3237 = vmatprep.subr.mxu0 0.0
    %3238 = vmatpush1.msra.mxu0 0.0
    %3239 = vmatprep.subr.mxu0 0.0
    %3240 = vmatpush1.msra.mxu0 0.0
    %3241 = vmatprep.subr.mxu0 0.0
    %3242 = vmatpush1.msra.mxu0 0.0
    %3243 = vmatprep.subr.mxu0 0.0
    %3244 = vmatpush1.msra.mxu0 0.0
    %3245 = vmatprep.subr.mxu0 0.0
    %3246 = vmatpush1.msra.mxu0 0.0
    %3247 = vmatprep.subr.mxu0 0.0
    %3248 = vmatpush1.msra.mxu0 0.0
    %3249 = vmatprep.subr.mxu0 0.0
    %3250 = vmatpush1.msra.mxu0 0.0
    %3251 = vmatprep.subr.mxu0 0.0
    %3252 = vmatpush1.msra.mxu0 0.0
    %3253 = vmatprep.subr.mxu0 0.0
    %3254 = vmatpush1.msra.mxu0 0.0
    %3255 = vmatprep.subr.mxu0 0.0
    %3256 = vmatpush1.msra.mxu0 0.0
    %3257 = vmatprep.subr.mxu0 0.0
    %3258 = vmatpush1.msra.mxu0 0.0
    %3259 = vmatprep.subr.mxu0 0.0
    %3260 = vmatpush1.msra.mxu0 0.0
    %3261 = vmatprep.subr.mxu0 0.0
    %3262 = vmatpush1.msra.mxu0 0.0
    %3263 = vmatprep.subr.mxu0 0.0
    %3264 = vmatpush1.msra.mxu0 0.0
    %3265 = vmatprep.subr.mxu0 0.0
    %3266 = vmatpush1.msra.mxu0 0.0
    %3267 = vmatprep.subr.mxu0 0.0
    %3268 = vmatpush1.msra.mxu0 0.0
    %3269 = vmatprep.subr.mxu0 0.0
    %3270 = vmatpush1.msra.mxu0 0.0
    %3271 = vmatprep.subr.mxu0 0.0
    %3272 = vmatpush1.msra.mxu0 0.0
    %3273 = vmatprep.subr.mxu0 0.0
    %3274 = vmatpush1.msra.mxu0 0.0
    %3275 = vmatprep.subr.mxu0 0.0
    %3276 = vmatpush1.msra.mxu0 0.0
    %3277 = vmatprep.subr.mxu0 0.0
    %3278 = vmatpush1.msra.mxu0 0.0
    %3279 = vmatprep.subr.mxu0 0.0
    %3280 = vmatpush1.msra.mxu0 0.0
    %3281 = vmatprep.mubr.f32.mxu0 0.0
    %3282 = vmatmul.mubr.f32.gmra.mrb[0].mxu0 %v3206
    %v3283 = vpop.f32.mrb[0].mxu0
    %v3284 = vadd.f32 %v3188, %v3283
    %v3285 = vpop.f32.mrb[0].mxu0
    %3286 = vmatprep.mubr.f32.mxu0 0.0
    %3287 = vmatmul.mubr.f32.gmra.mrb[0].mxu0 %v3209
    %v3288 = vpop.f32.mrb[0].mxu0
    %v3289 = vadd.f32 %v3193, %v3288
    %v3290 = vpop.f32.mrb[0].mxu0
    %3291 = vmatprep.mubr.f32.mxu0 0.0
    %3292 = vmatmul.mubr.f32.gmra.mrb[0].mxu0 %v3212
    %v3293 = vpop.f32.mrb[0].mxu0
    %v3294 = vadd.f32 %v3198, %v3293
    %v3295 = vpop.f32.mrb[0].mxu0
    %3296 = vmatprep.mubr.f32.mxu0 0.0
    %3297 = vmatmul.mubr.f32.gmra.mrb[0].mxu0 %v3215
    %v3298 = vpop.f32.mrb[0].mxu0
    %v3299 = vadd.f32 %v3203, %v3298
    %v3300 = vpop.f32.mrb[0].mxu0
    %3301 = vdwg.mxu0
    %v3302 = vmax.f32 %v3284, 0.0
    %v3303 = vmax.f32 %v3289, 0.0
    %v3304 = vmax.f32 %v3294, 0.0
    %v3305 = vmax.f32 %v3299, 0.0
    %v3306 = vld [vmem:[%s15] sm:$0xf]
    %v3307 = vld [vmem:[%s16] sm:$0xf]
    %3309 = vset.pattern.permute.xlu0 0
    %3310 = vperm.xlu0 %3309, %v3307
    %v3311 = vpop.permute.xlu0 %3310
    %v3314 = vsel %vm536, %v3306, 0
    %3316 = vmatprep.subr.mxu0 0.0
    %3317 = vmatpush1.msra.mxu0 %v3302
    %3318 = vmatprep.subr.mxu0 0.0
    %3319 = vmatpush1.msra.mxu0 %v3303
    %3320 = vmatprep.subr.mxu0 0.0
    %3321 = vmatpush1.msra.mxu0 %v3304
    %3322 = vmatprep.subr.mxu0 0.0
    %3323 = vmatpush1.msra.mxu0 %v3305
    %3324 = vmatprep.subr.mxu0 0.0
    %3325 = vmatpush1.msra.mxu0 0.0
    %3326 = vmatprep.subr.mxu0 0.0
    %3327 = vmatpush1.msra.mxu0 0.0
    %3328 = vmatprep.subr.mxu0 0.0
    %3329 = vmatpush1.msra.mxu0 0.0
    %3330 = vmatprep.subr.mxu0 0.0
    %3331 = vmatpush1.msra.mxu0 0.0
    %3332 = vmatprep.subr.mxu0 0.0
    %3333 = vmatpush1.msra.mxu0 0.0
    %3334 = vmatprep.subr.mxu0 0.0
    %3335 = vmatpush1.msra.mxu0 0.0
    %3336 = vmatprep.subr.mxu0 0.0
    %3337 = vmatpush1.msra.mxu0 0.0
    %3338 = vmatprep.subr.mxu0 0.0
    %3339 = vmatpush1.msra.mxu0 0.0
    %3340 = vmatprep.subr.mxu0 0.0
    %3341 = vmatpush1.msra.mxu0 0.0
    %3342 = vmatprep.subr.mxu0 0.0
    %3343 = vmatpush1.msra.mxu0 0.0
    %3344 = vmatprep.subr.mxu0 0.0
    %3345 = vmatpush1.msra.mxu0 0.0
    %3346 = vmatprep.subr.mxu0 0.0
    %3347 = vmatpush1.msra.mxu0 0.0
    %3348 = vmatprep.subr.mxu0 0.0
    %3349 = vmatpush1.msra.mxu0 0.0
    %3350 = vmatprep.subr.mxu0 0.0
    %3351 = vmatpush1.msra.mxu0 0.0
    %3352 = vmatprep.subr.mxu0 0.0
    %3353 = vmatpush1.msra.mxu0 0.0
    %3354 = vmatprep.subr.mxu0 0.0
    %3355 = vmatpush1.msra.mxu0 0.0
    %3356 = vmatprep.subr.mxu0 0.0
    %3357 = vmatpush1.msra.mxu0 0.0
    %3358 = vmatprep.subr.mxu0 0.0
    %3359 = vmatpush1.msra.mxu0 0.0
    %3360 = vmatprep.subr.mxu0 0.0
    %3361 = vmatpush1.msra.mxu0 0.0
    %3362 = vmatprep.subr.mxu0 0.0
    %3363 = vmatpush1.msra.mxu0 0.0
    %3364 = vmatprep.subr.mxu0 0.0
    %3365 = vmatpush1.msra.mxu0 0.0
    %3366 = vmatprep.subr.mxu0 0.0
    %3367 = vmatpush1.msra.mxu0 0.0
    %3368 = vmatprep.subr.mxu0 0.0
    %3369 = vmatpush1.msra.mxu0 0.0
    %3370 = vmatprep.subr.mxu0 0.0
    %3371 = vmatpush1.msra.mxu0 0.0
    %3372 = vmatprep.subr.mxu0 0.0
    %3373 = vmatpush1.msra.mxu0 0.0
    %3374 = vmatprep.subr.mxu0 0.0
    %3375 = vmatpush1.msra.mxu0 0.0
    %3376 = vmatprep.subr.mxu0 0.0
    %3377 = vmatpush1.msra.mxu0 0.0
    %3378 = vmatprep.subr.mxu0 0.0
    %3379 = vmatpush1.msra.mxu0 0.0
    %3380 = vmatprep.mubr.f32.mxu0 0.0
    %3381 = vmatmul.mubr.f32.gmra.mrb[0].mxu0 %v3314
    %v3382 = vpop.f32.mrb[0].mxu0
    %v3383 = vadd.f32 %v3311, %v3382
    %v3384 = vpop.f32.mrb[0].mxu0
    %3385 = vdwg.mxu0
    %3386 = vst [vmem:[#allocation2] sm:$0xf] %v3383
    // Predicated region
    $region70: #{tpu_custom_call.1} parent=1 // pred_check
      _
    $region71: #{tpu_custom_call.1} parent=1 // pred_check_branch
      %3388 = sbr.rel (0) target = $region73
    $region72: #{tpu_custom_call.1} parent=1 // pred_region
      %s3390 = ssub.s32 64, 64
      %3391 = vsyncadd [#allocation3], %s3390
      %s3393 = sshll.u32 [#allocation2], 4
      %s3394 = int_to_ptr.vmem [resolvable:$true] %s3393
      %3396 = dma.vmem_to_hbm [thread:$0]  %s3394, 64, %s17, [#allocation3]
    $region73: #{tpu_custom_call.1} parent=1 // pred_fallthru
      _
    // Predicated region
    $region74: #{tpu_custom_call.1} parent=1 // pred_check
      _
    $region75: #{tpu_custom_call.1} parent=1 // pred_check_branch
      %3398 = sbr.rel (0) target = $region77
    $region76: #{tpu_custom_call.1} parent=1 // pred_region
      %3399 = dma.done [#allocation3], 64
    $region77: #{tpu_custom_call.1} parent=1 // pred_fallthru
      _
    %3400 = vsyncpa [#allocation3], 1

</llo_original>
